<compile_context>
chip_gen: v7x
topology: tpu7x:2x2x1
jax: 0.10.0
libtpu: 0.0.40
codegen_flags: <defaults>
</compile_context>

<pallas_src>
import functools

import numpy as np
import jax
import jax.numpy as jnp
from jax.experimental import pallas as pl
from jax.experimental.pallas import tpu as pltpu


def _aux_head_kernel(xc_ref, w3_ref, bias_ref, a_ref, r2_ref, out_ref,
                     s3_ref, s2_ref):
    # xc_ref  : (H*W, 9*Cin)       bf16  im2col'd input, one batch element
    # w3_ref  : (9*Cin, Cmid)      bf16  3x3 conv weight, BN scale folded in
    # bias_ref: (1, Cmid)          f32   folded BN bias
    # a_ref   : (h, H)             bf16  row (H -> h) bilinear matrix
    # r2_ref  : (W*Cmid, w*Cout)   bf16  kron(B.T, w1): col upsample + 1x1 conv
    # out_ref : (h, w*Cout)        f32   lane-dense output (reshaped in wrapper)
    # s3_ref  : (H, W, Cmid)       bf16  VMEM scratch
    # s2_ref  : (H, W*Cmid)        bf16  VMEM scratch (lane-dense activation)
    H, W, Cmid = s3_ref.shape

    # 3x3 conv as ONE MXU matmul (M=H*W, K=9*Cin, N=Cmid) + folded BN + ReLU6.
    acc = jnp.dot(xc_ref[...], w3_ref[...], preferred_element_type=jnp.float32)
    act = jnp.clip(acc + bias_ref[...], 0.0, 6.0).astype(jnp.bfloat16)

    # Dropout(p=0.1): identity in eval mode.
    # TODO(synk): training-mode dropout (stateful PRNG mask) not implemented.

    # Relayout (H*W, Cmid) -> (H, W*Cmid) using only Mosaic-safe ops:
    # a major-dim reshape into a 3-D scratch, then W static 64-lane copies.
    s3_ref[...] = act.reshape(H, W, Cmid)
    for x in range(W):                         # W is small & static -> unrolled
        s2_ref[:, x * Cmid:(x + 1) * Cmid] = s3_ref[:, x, :]

    # Separable bilinear upsample (align_corners=False) with the 1x1 conv
    # folded into the column operator:
    #   rows      : t   = A @ S                -> (h, W*Cmid)
    #   cols + 1x1: out = t @ kron(B.T, w1)    -> (h, w*Cout)   (lane-dense)
    t = jnp.dot(a_ref[...], s2_ref[...], preferred_element_type=jnp.float32)
    out = jnp.dot(t.astype(jnp.bfloat16), r2_ref[...],
                  preferred_element_type=jnp.float32)
    out_ref[...] = out.astype(out_ref.dtype)


def _bilinear_matrix(out_size, in_size):
    """Row-stochastic (out_size, in_size) matrix matching PyTorch
    F.interpolate(mode='bilinear', align_corners=False) along one axis."""
    o = np.arange(out_size, dtype=np.float64)
    scale = in_size / out_size
    src = (o + 0.5) * scale - 0.5
    src = np.maximum(src, 0.0)
    i0 = np.minimum(np.floor(src).astype(np.int64), in_size - 1)
    i1 = np.minimum(i0 + 1, in_size - 1)
    lam = src - i0
    mat = np.zeros((out_size, in_size), dtype=np.float32)
    mat[np.arange(out_size), i0] += (1.0 - lam).astype(np.float32)
    mat[np.arange(out_size), i1] += lam.astype(np.float32)
    return mat


@functools.lru_cache(maxsize=16)
def _upsample_mats(h, w, H, W):
    """Cached numpy interpolation operands (computed once per size)."""
    A = _bilinear_matrix(h, H)          # (h, H)
    Bt = _bilinear_matrix(w, W).T.copy()  # (W, w)
    return A, Bt


def init_params(key, in_channels=64, num_classes=8):
    k1, k2, k3, k4, k5, k6 = jax.random.split(key, 6)
    # 3x3 conv weight in HWIO layout, deterministic synthetic init.
    w3 = 0.05 * jax.random.normal(k1, (3, 3, in_channels, in_channels), jnp.float32)
    gamma = 1.0 + 0.1 * jax.random.normal(k2, (in_channels,), jnp.float32)
    beta = 0.1 * jax.random.normal(k3, (in_channels,), jnp.float32)
    running_mean = 0.1 * jax.random.normal(k4, (in_channels,), jnp.float32)
    running_var = jnp.abs(jax.random.normal(k5, (in_channels,), jnp.float32)) + 0.5
    eps = 1e-5
    scale = gamma / jnp.sqrt(running_var + eps)
    bias = beta - running_mean * scale
    # 1x1 conv weight (Cin, Cout), kept in f32 (it is folded into R2 per call).
    w1 = 0.05 * jax.random.normal(k6, (in_channels, num_classes), jnp.float32)

    # Fold BN scale into the 3x3 conv weight ONCE (outside the per-call path)
    # and pre-pack the MXU operand in bf16.  K ordering is (tap, cin),
    # matching the wrapper's im2col concat order.
    w3_folded = (w3 * scale).reshape(9 * in_channels, in_channels)
    return {
        "w3f": w3_folded.astype(jnp.bfloat16),     # (9*Cin, Cmid) bf16
        "bias": bias.reshape(1, in_channels),       # (1, Cmid)     f32
        "w1": w1,                                   # (Cmid, Cout)  f32
    }


def aux_head_forward(x_nchw, params, h, w):
    """x_nchw: (N, Cin, H, W) float32 -> (N, num_classes, h, w) float32."""
    N, Cin, H, W = x_nchw.shape
    Cmid = params["w3f"].shape[1]
    Cout = params["w1"].shape[1]
    assert params["w3f"].shape[0] == 9 * Cin

    # NCHW -> NHWC, cast to bf16 FIRST (halves im2col read/write traffic),
    # zero-pad by 1, im2col to (N, H*W, 9*Cin).  Tap order (dy, dx) outer /
    # cin inner matches w3f's reshape order.
    x = jnp.transpose(x_nchw, (0, 2, 3, 1)).astype(jnp.bfloat16)
    xpad = jnp.pad(x, ((0, 0), (1, 1), (1, 1), (0, 0)))
    taps = [xpad[:, dy:dy + H, dx:dx + W, :]
            for dy in range(3) for dx in range(3)]
    x_cols = jnp.concatenate(taps, axis=-1).reshape(N, H * W, 9 * Cin)

    # Separable upsample operands; the 1x1 conv is folded into the column
    # operator R2 = kron(B.T, w1) -> (W*Cmid, w*Cout).  Tiny (<~1 MB bf16),
    # constant-folded under jit.
    A_np, Bt_np = _upsample_mats(h, w, H, W)
    A = jnp.asarray(A_np, dtype=jnp.bfloat16)                        # (h, H)
    R2 = jnp.kron(jnp.asarray(Bt_np), params["w1"]).astype(jnp.bfloat16)

    out = pl.pallas_call(
        _aux_head_kernel,
        out_shape=jax.ShapeDtypeStruct((N, h, w * Cout), jnp.float32),
        grid_spec=pltpu.PrefetchScalarGridSpec(
            num_scalar_prefetch=0,
            grid=(N,),
            in_specs=[
                pl.BlockSpec((pl.Squeezed(), H * W, 9 * Cin),
                             lambda n: (n, 0, 0)),
                pl.BlockSpec((9 * Cin, Cmid), lambda n: (0, 0)),
                pl.BlockSpec((1, Cmid), lambda n: (0, 0)),
                pl.BlockSpec((h, H), lambda n: (0, 0)),
                pl.BlockSpec((W * Cmid, w * Cout), lambda n: (0, 0)),
            ],
            out_specs=pl.BlockSpec((pl.Squeezed(), h, w * Cout),
                                   lambda n: (n, 0, 0)),
            scratch_shapes=[
                pltpu.VMEM((H, W, Cmid), jnp.bfloat16),
                pltpu.VMEM((H, W * Cmid), jnp.bfloat16),
            ],
        ),
        compiler_params=pltpu.CompilerParams(
            dimension_semantics=("parallel",),
            vmem_limit_bytes=32 * 1024 * 1024),
    )(x_cols, params["w3f"], params["bias"], A, R2)

    # (N, h, w*Cout) -> (N, h, w, Cout) -> NCHW (kept f32/NCHW for module parity).
    out = out.reshape(N, h, w, Cout)
    return jnp.transpose(out, (0, 3, 1, 2))


if __name__ == "__main__":
    key = jax.random.PRNGKey(0)
    kx, kp = jax.random.split(key)

    N, Cin, H, W = 2, 64, 16, 16     # in_channels=64 (module default)
    num_classes = 8
    h_out, w_out = 32, 32            # forward(x, h, w)

    x = jax.random.normal(kx, (N, Cin, H, W), jnp.float32)
    params = init_params(kp, in_channels=Cin, num_classes=num_classes)

    out = aux_head_forward(x, params, h_out, w_out)
    out = jax.block_until_ready(out)

    assert out.shape == (N, num_classes, h_out, w_out), out.shape
    assert bool(jnp.all(jnp.isfinite(out)))
    print("KERNEL_OK")
</pallas_src>

<mosaic_0001>
module attributes {stable_mosaic.version = 11 : i64} {
  func.func @_aux_head_kernel(%arg0: i32, %arg1: memref<1x256x576xbf16, #tpu.memory_space<vmem>>, %arg2: memref<576x64xbf16, #tpu.memory_space<vmem>>, %arg3: memref<1x64xf32, #tpu.memory_space<vmem>>, %arg4: memref<32x16xbf16, #tpu.memory_space<vmem>>, %arg5: memref<1024x256xbf16, #tpu.memory_space<vmem>>, %arg6: memref<1x32x256xf32, #tpu.memory_space<vmem>>, %arg7: memref<16x16x64xbf16, #tpu.memory_space<vmem>>, %arg8: memref<16x1024xbf16, #tpu.memory_space<vmem>>) attributes {dimension_semantics = [#tpu.dimension_semantics<parallel>], iteration_bounds = array<i64: 2>, scalar_prefetch = 0 : i64, scratch_operands = 2 : i64, tpu.core_type = #tpu.core_type<tc>, window_params = [{transform_indices = @transform_0, window_bounds = array<i64: 1, 256, 576>}, {pipeline_mode = #tpu.pipeline_mode<synchronous>, transform_indices = @transform_1, window_bounds = array<i64: 576, 64>}, {pipeline_mode = #tpu.pipeline_mode<synchronous>, transform_indices = @transform_2, window_bounds = array<i64: 1, 64>}, {pipeline_mode = #tpu.pipeline_mode<synchronous>, transform_indices = @transform_3, window_bounds = array<i64: 32, 16>}, {pipeline_mode = #tpu.pipeline_mode<synchronous>, transform_indices = @transform_4, window_bounds = array<i64: 1024, 256>}, {transform_indices = @transform_5, window_bounds = array<i64: 1, 32, 256>}]} {
    %c0 = arith.constant 0 : index
    %c0_0 = arith.constant 0 : index
    %c0_1 = arith.constant 0 : index
    %0 = vector.load %arg1[%c0, %c0_0, %c0_1] : memref<1x256x576xbf16, #tpu.memory_space<vmem>>, vector<1x256x576xbf16>
    %1 = vector.shape_cast %0 : vector<1x256x576xbf16> to vector<256x576xbf16>
    %c0_2 = arith.constant 0 : index
    %c0_3 = arith.constant 0 : index
    %2 = vector.load %arg2[%c0_2, %c0_3] : memref<576x64xbf16, #tpu.memory_space<vmem>>, vector<576x64xbf16>
    %cst = arith.constant dense<0.000000e+00> : vector<256x64xf32>
    %3 = tpu.matmul %1, %2, %cst {dimension_numbers = #tpu.dot_dimension_numbers<[1], [0], [0], [1], [0, 0, 1, 1], [], []>} : vector<256x576xbf16>, vector<576x64xbf16>, vector<256x64xf32> -> vector<256x64xf32>
    %c0_4 = arith.constant 0 : index
    %c0_5 = arith.constant 0 : index
    %4 = vector.load %arg3[%c0_4, %c0_5] : memref<1x64xf32, #tpu.memory_space<vmem>>, vector<1x64xf32>
    %5 = vector.broadcast %4 : vector<1x64xf32> to vector<256x64xf32>
    %6 = arith.addf %3, %5 : vector<256x64xf32>
    %cst_6 = arith.constant 0.000000e+00 : f32
    %cst_7 = arith.constant 6.000000e+00 : f32
    %7 = vector.broadcast %cst_6 : f32 to vector<256x64xf32>
    %8 = arith.maximumf %7, %6 : vector<256x64xf32>
    %9 = vector.broadcast %cst_7 : f32 to vector<256x64xf32>
    %10 = arith.minimumf %9, %8 : vector<256x64xf32>
    %11 = arith.truncf %10 : vector<256x64xf32> to vector<256x64xbf16>
    %12 = vector.shape_cast %11 : vector<256x64xbf16> to vector<16x16x64xbf16>
    %c0_8 = arith.constant 0 : index
    %c0_9 = arith.constant 0 : index
    %c0_10 = arith.constant 0 : index
    %13 = vector.load %arg7[%c0_8, %c0_9, %c0_10] : memref<16x16x64xbf16, #tpu.memory_space<vmem>>, vector<16x16x64xbf16>
    tpu.vector_store %arg7[%c0_8, %c0_9, %c0_10], %12 {strides = array<i32>} : memref<16x16x64xbf16, #tpu.memory_space<vmem>>, vector<16x16x64xbf16>,
    %c0_11 = arith.constant 0 : index
    %c0_12 = arith.constant 0 : index
    %c0_13 = arith.constant 0 : index
    %14 = vector.load %arg7[%c0_11, %c0_12, %c0_13] : memref<16x16x64xbf16, #tpu.memory_space<vmem>>, vector<16x1x64xbf16>
    %15 = vector.shape_cast %14 : vector<16x1x64xbf16> to vector<16x64xbf16>
    %c0_14 = arith.constant 0 : index
    %c0_15 = arith.constant 0 : index
    %16 = vector.load %arg8[%c0_14, %c0_15] : memref<16x1024xbf16, #tpu.memory_space<vmem>>, vector<16x64xbf16>
    tpu.vector_store %arg8[%c0_14, %c0_15], %15 {strides = array<i32>} : memref<16x1024xbf16, #tpu.memory_space<vmem>>, vector<16x64xbf16>,
    %c0_16 = arith.constant 0 : index
    %c1 = arith.constant 1 : index
    %c0_17 = arith.constant 0 : index
    %17 = vector.load %arg7[%c0_16, %c1, %c0_17] : memref<16x16x64xbf16, #tpu.memory_space<vmem>>, vector<16x1x64xbf16>
    %18 = vector.shape_cast %17 : vector<16x1x64xbf16> to vector<16x64xbf16>
    %c0_18 = arith.constant 0 : index
    %c64 = arith.constant 64 : index
    %19 = vector.load %arg8[%c0_18, %c64] : memref<16x1024xbf16, #tpu.memory_space<vmem>>, vector<16x64xbf16>
    tpu.vector_store %arg8[%c0_18, %c64], %18 {strides = array<i32>} : memref<16x1024xbf16, #tpu.memory_space<vmem>>, vector<16x64xbf16>,
    %c0_19 = arith.constant 0 : index
    %c2 = arith.constant 2 : index
    %c0_20 = arith.constant 0 : index
    %20 = vector.load %arg7[%c0_19, %c2, %c0_20] : memref<16x16x64xbf16, #tpu.memory_space<vmem>>, vector<16x1x64xbf16>
    %21 = vector.shape_cast %20 : vector<16x1x64xbf16> to vector<16x64xbf16>
    %c0_21 = arith.constant 0 : index
    %c128 = arith.constant 128 : index
    %22 = vector.load %arg8[%c0_21, %c128] : memref<16x1024xbf16, #tpu.memory_space<vmem>>, vector<16x64xbf16>
    tpu.vector_store %arg8[%c0_21, %c128], %21 {strides = array<i32>} : memref<16x1024xbf16, #tpu.memory_space<vmem>>, vector<16x64xbf16>,
    %c0_22 = arith.constant 0 : index
    %c3 = arith.constant 3 : index
    %c0_23 = arith.constant 0 : index
    %23 = vector.load %arg7[%c0_22, %c3, %c0_23] : memref<16x16x64xbf16, #tpu.memory_space<vmem>>, vector<16x1x64xbf16>
    %24 = vector.shape_cast %23 : vector<16x1x64xbf16> to vector<16x64xbf16>
    %c0_24 = arith.constant 0 : index
    %c192 = arith.constant 192 : index
    %25 = vector.load %arg8[%c0_24, %c192] : memref<16x1024xbf16, #tpu.memory_space<vmem>>, vector<16x64xbf16>
    tpu.vector_store %arg8[%c0_24, %c192], %24 {strides = array<i32>} : memref<16x1024xbf16, #tpu.memory_space<vmem>>, vector<16x64xbf16>,
    %c0_25 = arith.constant 0 : index
    %c4 = arith.constant 4 : index
    %c0_26 = arith.constant 0 : index
    %26 = vector.load %arg7[%c0_25, %c4, %c0_26] : memref<16x16x64xbf16, #tpu.memory_space<vmem>>, vector<16x1x64xbf16>
    %27 = vector.shape_cast %26 : vector<16x1x64xbf16> to vector<16x64xbf16>
    %c0_27 = arith.constant 0 : index
    %c256 = arith.constant 256 : index
    %28 = vector.load %arg8[%c0_27, %c256] : memref<16x1024xbf16, #tpu.memory_space<vmem>>, vector<16x64xbf16>
    tpu.vector_store %arg8[%c0_27, %c256], %27 {strides = array<i32>} : memref<16x1024xbf16, #tpu.memory_space<vmem>>, vector<16x64xbf16>,
    %c0_28 = arith.constant 0 : index
    %c5 = arith.constant 5 : index
    %c0_29 = arith.constant 0 : index
    %29 = vector.load %arg7[%c0_28, %c5, %c0_29] : memref<16x16x64xbf16, #tpu.memory_space<vmem>>, vector<16x1x64xbf16>
    %30 = vector.shape_cast %29 : vector<16x1x64xbf16> to vector<16x64xbf16>
    %c0_30 = arith.constant 0 : index
    %c320 = arith.constant 320 : index
    %31 = vector.load %arg8[%c0_30, %c320] : memref<16x1024xbf16, #tpu.memory_space<vmem>>, vector<16x64xbf16>
    tpu.vector_store %arg8[%c0_30, %c320], %30 {strides = array<i32>} : memref<16x1024xbf16, #tpu.memory_space<vmem>>, vector<16x64xbf16>,
    %c0_31 = arith.constant 0 : index
    %c6 = arith.constant 6 : index
    %c0_32 = arith.constant 0 : index
    %32 = vector.load %arg7[%c0_31, %c6, %c0_32] : memref<16x16x64xbf16, #tpu.memory_space<vmem>>, vector<16x1x64xbf16>
    %33 = vector.shape_cast %32 : vector<16x1x64xbf16> to vector<16x64xbf16>
    %c0_33 = arith.constant 0 : index
    %c384 = arith.constant 384 : index
    %34 = vector.load %arg8[%c0_33, %c384] : memref<16x1024xbf16, #tpu.memory_space<vmem>>, vector<16x64xbf16>
    tpu.vector_store %arg8[%c0_33, %c384], %33 {strides = array<i32>} : memref<16x1024xbf16, #tpu.memory_space<vmem>>, vector<16x64xbf16>,
    %c0_34 = arith.constant 0 : index
    %c7 = arith.constant 7 : index
    %c0_35 = arith.constant 0 : index
    %35 = vector.load %arg7[%c0_34, %c7, %c0_35] : memref<16x16x64xbf16, #tpu.memory_space<vmem>>, vector<16x1x64xbf16>
    %36 = vector.shape_cast %35 : vector<16x1x64xbf16> to vector<16x64xbf16>
    %c0_36 = arith.constant 0 : index
    %c448 = arith.constant 448 : index
    %37 = vector.load %arg8[%c0_36, %c448] : memref<16x1024xbf16, #tpu.memory_space<vmem>>, vector<16x64xbf16>
    tpu.vector_store %arg8[%c0_36, %c448], %36 {strides = array<i32>} : memref<16x1024xbf16, #tpu.memory_space<vmem>>, vector<16x64xbf16>,
    %c0_37 = arith.constant 0 : index
    %c8 = arith.constant 8 : index
    %c0_38 = arith.constant 0 : index
    %38 = vector.load %arg7[%c0_37, %c8, %c0_38] : memref<16x16x64xbf16, #tpu.memory_space<vmem>>, vector<16x1x64xbf16>
    %39 = vector.shape_cast %38 : vector<16x1x64xbf16> to vector<16x64xbf16>
    %c0_39 = arith.constant 0 : index
    %c512 = arith.constant 512 : index
    %40 = vector.load %arg8[%c0_39, %c512] : memref<16x1024xbf16, #tpu.memory_space<vmem>>, vector<16x64xbf16>
    tpu.vector_store %arg8[%c0_39, %c512], %39 {strides = array<i32>} : memref<16x1024xbf16, #tpu.memory_space<vmem>>, vector<16x64xbf16>,
    %c0_40 = arith.constant 0 : index
    %c9 = arith.constant 9 : index
    %c0_41 = arith.constant 0 : index
    %41 = vector.load %arg7[%c0_40, %c9, %c0_41] : memref<16x16x64xbf16, #tpu.memory_space<vmem>>, vector<16x1x64xbf16>
    %42 = vector.shape_cast %41 : vector<16x1x64xbf16> to vector<16x64xbf16>
    %c0_42 = arith.constant 0 : index
    %c576 = arith.constant 576 : index
    %43 = vector.load %arg8[%c0_42, %c576] : memref<16x1024xbf16, #tpu.memory_space<vmem>>, vector<16x64xbf16>
    tpu.vector_store %arg8[%c0_42, %c576], %42 {strides = array<i32>} : memref<16x1024xbf16, #tpu.memory_space<vmem>>, vector<16x64xbf16>,
    %c0_43 = arith.constant 0 : index
    %c10 = arith.constant 10 : index
    %c0_44 = arith.constant 0 : index
    %44 = vector.load %arg7[%c0_43, %c10, %c0_44] : memref<16x16x64xbf16, #tpu.memory_space<vmem>>, vector<16x1x64xbf16>
    %45 = vector.shape_cast %44 : vector<16x1x64xbf16> to vector<16x64xbf16>
    %c0_45 = arith.constant 0 : index
    %c640 = arith.constant 640 : index
    %46 = vector.load %arg8[%c0_45, %c640] : memref<16x1024xbf16, #tpu.memory_space<vmem>>, vector<16x64xbf16>
    tpu.vector_store %arg8[%c0_45, %c640], %45 {strides = array<i32>} : memref<16x1024xbf16, #tpu.memory_space<vmem>>, vector<16x64xbf16>,
    %c0_46 = arith.constant 0 : index
    %c11 = arith.constant 11 : index
    %c0_47 = arith.constant 0 : index
    %47 = vector.load %arg7[%c0_46, %c11, %c0_47] : memref<16x16x64xbf16, #tpu.memory_space<vmem>>, vector<16x1x64xbf16>
    %48 = vector.shape_cast %47 : vector<16x1x64xbf16> to vector<16x64xbf16>
    %c0_48 = arith.constant 0 : index
    %c704 = arith.constant 704 : index
    %49 = vector.load %arg8[%c0_48, %c704] : memref<16x1024xbf16, #tpu.memory_space<vmem>>, vector<16x64xbf16>
    tpu.vector_store %arg8[%c0_48, %c704], %48 {strides = array<i32>} : memref<16x1024xbf16, #tpu.memory_space<vmem>>, vector<16x64xbf16>,
    %c0_49 = arith.constant 0 : index
    %c12 = arith.constant 12 : index
    %c0_50 = arith.constant 0 : index
    %50 = vector.load %arg7[%c0_49, %c12, %c0_50] : memref<16x16x64xbf16, #tpu.memory_space<vmem>>, vector<16x1x64xbf16>
    %51 = vector.shape_cast %50 : vector<16x1x64xbf16> to vector<16x64xbf16>
    %c0_51 = arith.constant 0 : index
    %c768 = arith.constant 768 : index
    %52 = vector.load %arg8[%c0_51, %c768] : memref<16x1024xbf16, #tpu.memory_space<vmem>>, vector<16x64xbf16>
    tpu.vector_store %arg8[%c0_51, %c768], %51 {strides = array<i32>} : memref<16x1024xbf16, #tpu.memory_space<vmem>>, vector<16x64xbf16>,
    %c0_52 = arith.constant 0 : index
    %c13 = arith.constant 13 : index
    %c0_53 = arith.constant 0 : index
    %53 = vector.load %arg7[%c0_52, %c13, %c0_53] : memref<16x16x64xbf16, #tpu.memory_space<vmem>>, vector<16x1x64xbf16>
    %54 = vector.shape_cast %53 : vector<16x1x64xbf16> to vector<16x64xbf16>
    %c0_54 = arith.constant 0 : index
    %c832 = arith.constant 832 : index
    %55 = vector.load %arg8[%c0_54, %c832] : memref<16x1024xbf16, #tpu.memory_space<vmem>>, vector<16x64xbf16>
    tpu.vector_store %arg8[%c0_54, %c832], %54 {strides = array<i32>} : memref<16x1024xbf16, #tpu.memory_space<vmem>>, vector<16x64xbf16>,
    %c0_55 = arith.constant 0 : index
    %c14 = arith.constant 14 : index
    %c0_56 = arith.constant 0 : index
    %56 = vector.load %arg7[%c0_55, %c14, %c0_56] : memref<16x16x64xbf16, #tpu.memory_space<vmem>>, vector<16x1x64xbf16>
    %57 = vector.shape_cast %56 : vector<16x1x64xbf16> to vector<16x64xbf16>
    %c0_57 = arith.constant 0 : index
    %c896 = arith.constant 896 : index
    %58 = vector.load %arg8[%c0_57, %c896] : memref<16x1024xbf16, #tpu.memory_space<vmem>>, vector<16x64xbf16>
    tpu.vector_store %arg8[%c0_57, %c896], %57 {strides = array<i32>} : memref<16x1024xbf16, #tpu.memory_space<vmem>>, vector<16x64xbf16>,
    %c0_58 = arith.constant 0 : index
    %c15 = arith.constant 15 : index
    %c0_59 = arith.constant 0 : index
    %59 = vector.load %arg7[%c0_58, %c15, %c0_59] : memref<16x16x64xbf16, #tpu.memory_space<vmem>>, vector<16x1x64xbf16>
    %60 = vector.shape_cast %59 : vector<16x1x64xbf16> to vector<16x64xbf16>
    %c0_60 = arith.constant 0 : index
    %c960 = arith.constant 960 : index
    %61 = vector.load %arg8[%c0_60, %c960] : memref<16x1024xbf16, #tpu.memory_space<vmem>>, vector<16x64xbf16>
    tpu.vector_store %arg8[%c0_60, %c960], %60 {strides = array<i32>} : memref<16x1024xbf16, #tpu.memory_space<vmem>>, vector<16x64xbf16>,
    %c0_61 = arith.constant 0 : index
    %c0_62 = arith.constant 0 : index
    %62 = vector.load %arg4[%c0_61, %c0_62] : memref<32x16xbf16, #tpu.memory_space<vmem>>, vector<32x16xbf16>
    %c0_63 = arith.constant 0 : index
    %c0_64 = arith.constant 0 : index
    %63 = vector.load %arg8[%c0_63, %c0_64] : memref<16x1024xbf16, #tpu.memory_space<vmem>>, vector<16x1024xbf16>
    %cst_65 = arith.constant dense<0.000000e+00> : vector<32x1024xf32>
    %64 = tpu.matmul %62, %63, %cst_65 {dimension_numbers = #tpu.dot_dimension_numbers<[1], [0], [0], [1], [0, 0, 1, 1], [], []>} : vector<32x16xbf16>, vector<16x1024xbf16>, vector<32x1024xf32> -> vector<32x1024xf32>
    %65 = arith.truncf %64 : vector<32x1024xf32> to vector<32x1024xbf16>
    %c0_66 = arith.constant 0 : index
    %c0_67 = arith.constant 0 : index
    %66 = vector.load %arg5[%c0_66, %c0_67] : memref<1024x256xbf16, #tpu.memory_space<vmem>>, vector<1024x256xbf16>
    %cst_68 = arith.constant dense<0.000000e+00> : vector<32x256xf32>
    %67 = tpu.matmul %65, %66, %cst_68 {dimension_numbers = #tpu.dot_dimension_numbers<[1], [0], [0], [1], [0, 0, 1, 1], [], []>} : vector<32x1024xbf16>, vector<1024x256xbf16>, vector<32x256xf32> -> vector<32x256xf32>
    %c0_69 = arith.constant 0 : index
    %c0_70 = arith.constant 0 : index
    %c0_71 = arith.constant 0 : index
    %68 = vector.load %arg6[%c0_69, %c0_70, %c0_71] : memref<1x32x256xf32, #tpu.memory_space<vmem>>, vector<1x32x256xf32>
    %69 = vector.shape_cast %68 : vector<1x32x256xf32> to vector<32x256xf32>
    %70 = vector.shape_cast %67 : vector<32x256xf32> to vector<1x32x256xf32>
    tpu.vector_store %arg6[%c0_69, %c0_70, %c0_71], %70 {strides = array<i32>} : memref<1x32x256xf32, #tpu.memory_space<vmem>>, vector<1x32x256xf32>,
    return
  }
  func.func @transform_0(%arg0: i32) -> (i32, i32, i32) {
    %c0_i32 = arith.constant 0 : i32
    %c0_i32_0 = arith.constant 0 : i32
    %c0_i32_1 = arith.constant 0 : i32
    return %arg0, %c0_i32, %c0_i32_0 : i32, i32, i32
  }
  func.func @transform_1(%arg0: i32) -> (i32, i32) {
    %c0_i32 = arith.constant 0 : i32
    %c0_i32_0 = arith.constant 0 : i32
    %c0_i32_1 = arith.constant 0 : i32
    return %c0_i32, %c0_i32_0 : i32, i32
  }
  func.func @transform_2(%arg0: i32) -> (i32, i32) {
    %c0_i32 = arith.constant 0 : i32
    %c0_i32_0 = arith.constant 0 : i32
    %c0_i32_1 = arith.constant 0 : i32
    return %c0_i32, %c0_i32_0 : i32, i32
  }
  func.func @transform_3(%arg0: i32) -> (i32, i32) {
    %c0_i32 = arith.constant 0 : i32
    %c0_i32_0 = arith.constant 0 : i32
    %c0_i32_1 = arith.constant 0 : i32
    return %c0_i32, %c0_i32_0 : i32, i32
  }
  func.func @transform_4(%arg0: i32) -> (i32, i32) {
    %c0_i32 = arith.constant 0 : i32
    %c0_i32_0 = arith.constant 0 : i32
    %c0_i32_1 = arith.constant 0 : i32
    return %c0_i32, %c0_i32_0 : i32, i32
  }
  func.func @transform_5(%arg0: i32) -> (i32, i32, i32) {
    %c0_i32 = arith.constant 0 : i32
    %c0_i32_0 = arith.constant 0 : i32
    %c0_i32_1 = arith.constant 0 : i32
    return %arg0, %c0_i32, %c0_i32_0 : i32, i32, i32
  }
}

</mosaic_0001>

<llo_original>
// kernel: tpu_custom_call.1
$region0: #{tpu_custom_call.1}
  #allocation0 [shape = 'u32[]', space=smem, size = 0x4, offset = 0x4, fixed_abs, tag = 'smem constant byte address 0x4 - core index']
  #allocation1 [shape = 'u32[144,128]{1,0:T(1,128)}', space=vmem, size = 0x12000, scoped, tag = 'internal scratch']
  #allocation2 [shape = 'bf16[16,16,64]{2,1,0:T(16,128)(2,1)}', space=vmem, size = 0x10000, scoped, tag = 'scratch operand']
  #allocation3 [shape = 'bf16[16,1024]{1,0:T(16,128)(2,1)}', space=vmem, size = 0x8000, scoped, tag = 'scratch operand']
  %s0 = inlined_call_operand.vmem [shape: bf16[2,256,576], index: 0, kind: input, shape index: {}]
  %s1 = inlined_call_operand.vmem [shape: bf16[576,64], index: 1, kind: input, shape index: {}]
  %s2 = inlined_call_operand.vmem [shape: f32[1,64], index: 2, kind: input, shape index: {}]
  %s3 = inlined_call_operand.vmem [shape: bf16[32,16], index: 3, kind: input, shape index: {}]
  %s4 = inlined_call_operand.vmem [shape: bf16[1024,256], index: 4, kind: input, shape index: {}]
  %s5 = inlined_call_operand.hbm [shape: f32[2,32,256], index: 5, kind: output, shape index: {}]
  %s6 = sld [smem:[#allocation0]]
  $region53: #{tpu_custom_call.1} parent=0
    _
  %s8 = ssub.s32 1, %s6
  %s9 = scalar_select 0, %s8, %s6
  $region1: #{tpu_custom_call.1} parent=0
    #allocation4 [shape = 'u8[65536]{0}', space=vmem, size = 0x10000, scoped, tag = 'output window, operand 0']
    #allocation5 [shape = 's32[2]{0}', space=sflag, size = 0x8, scoped, tag = 'scoped memory for tpu_custom_call.1']
    %10 = vsyncpa [#allocation5], 0
    %s11 = scalar_lea.sflag [#allocation5], 1
    %12 = vsyncpa %s11, 0
    loop: start=0, step=1, limit=4
    $region2: #{tpu_custom_call.1} parent=1 // loop_pre_header
      _
    $region3: #{tpu_custom_call.1} parent=1 // loop_header
      %s14 = sphi 0, %s18
      %p15 = scmp.ge.s32.totalorder %s14, 4
      %s24 = sphi 0, %s26
      %s27 = sphi 0, %s24
      %s28 = sphi 0, %s27
      %s44 = sphi 0, %s28
      %s48 = sphi 0, %s48
      %s50 = sphi 0, %s48
      %s51 = sphi 0, %s50
      %s65 = sphi 0, %s51
      %s69 = sphi 0, %s69
      %s71 = sphi 0, %s69
      %s72 = sphi 0, %s71
      %s86 = sphi 0, %s72
      %s90 = sphi 0, %s90
      %s92 = sphi 0, %s90
      %s93 = sphi 0, %s92
      %s107 = sphi 0, %s93
      %s111 = sphi 0, %s111
      %s113 = sphi 0, %s111
      %s114 = sphi 0, %s113
      %s128 = sphi 0, %s114
      %s134 = sphi 0, %s136
      %s137 = sphi 0, %s134
      %s138 = sphi 0, %s137
      %s154 = sphi 0, %s138
    $region4: #{tpu_custom_call.1} parent=1 // loop_header_branch
      %17 = sbr.rel (%p15) target = $region8
    $region5: #{tpu_custom_call.1} parent=1 // loop_body
      %s19 = ssub.s32 %s14, 1
      %s20 = ssub.s32 %s14, 2
      %s21 = sadd.s32 %s14, 1
      %s22 = ssub.s32 %s14, %s21
      %p23 = scmp.eq.s32.totalorder %s22, 0
      %s25 = sadd.s32 %s24, 1
      %s26 = scalar_select %p23, %s24, %s25
      %p29 = pneg %p23
      %p30 = scmp.eq.s32.totalorder %s14, 1
      %p31 = por %p29, %p30
      %p32 = scmp.ne.s32.totalorder %s24, %s27
      %p33 = scmp.eq.s32.totalorder %s14, 0
      %p34 = por %p32, %p33
      %p35 = scmp.ne.s32.totalorder %s24, %s27
      %p36 = scmp.eq.s32.totalorder %s19, 1
      %p37 = por %p35, %p36
      %p38 = scmp.ne.s32.totalorder %s27, %s28
      %p39 = scmp.eq.s32.totalorder %s19, 0
      %p40 = por %p38, %p39
      %p41 = scmp.ne.s32.totalorder %s27, %s28
      %p42 = scmp.eq.s32.totalorder %s20, 1
      %p43 = por %p41, %p42
      %p45 = scmp.ne.s32.totalorder %s28, %s44
      %p46 = scmp.eq.s32.totalorder %s20, 0
      %p47 = por %p45, %p46
      %s49 = sadd.s32 %s48, 1
      %p52 = scmp.eq.s32.totalorder %s14, 1
      %p53 = scmp.ne.s32.totalorder %s48, %s50
      %p54 = scmp.eq.s32.totalorder %s14, 0
      %p55 = por %p53, %p54
      %p56 = scmp.ne.s32.totalorder %s48, %s50
      %p57 = scmp.eq.s32.totalorder %s19, 1
      %p58 = por %p56, %p57
      %p59 = scmp.ne.s32.totalorder %s50, %s51
      %p60 = scmp.eq.s32.totalorder %s19, 0
      %p61 = por %p59, %p60
      %p62 = scmp.ne.s32.totalorder %s50, %s51
      %p63 = scmp.eq.s32.totalorder %s20, 1
      %p64 = por %p62, %p63
      %p66 = scmp.ne.s32.totalorder %s51, %s65
      %p67 = scmp.eq.s32.totalorder %s20, 0
      %p68 = por %p66, %p67
      %s70 = sadd.s32 %s69, 1
      %p73 = scmp.eq.s32.totalorder %s14, 1
      %p74 = scmp.ne.s32.totalorder %s69, %s71
      %p75 = scmp.eq.s32.totalorder %s14, 0
      %p76 = por %p74, %p75
      %p77 = scmp.ne.s32.totalorder %s69, %s71
      %p78 = scmp.eq.s32.totalorder %s19, 1
      %p79 = por %p77, %p78
      %p80 = scmp.ne.s32.totalorder %s71, %s72
      %p81 = scmp.eq.s32.totalorder %s19, 0
      %p82 = por %p80, %p81
      %p83 = scmp.ne.s32.totalorder %s71, %s72
      %p84 = scmp.eq.s32.totalorder %s20, 1
      %p85 = por %p83, %p84
      %p87 = scmp.ne.s32.totalorder %s72, %s86
      %p88 = scmp.eq.s32.totalorder %s20, 0
      %p89 = por %p87, %p88
      %s91 = sadd.s32 %s90, 1
      %p94 = scmp.eq.s32.totalorder %s14, 1
      %p95 = scmp.ne.s32.totalorder %s90, %s92
      %p96 = scmp.eq.s32.totalorder %s14, 0
      %p97 = por %p95, %p96
      %p98 = scmp.ne.s32.totalorder %s90, %s92
      %p99 = scmp.eq.s32.totalorder %s19, 1
      %p100 = por %p98, %p99
      %p101 = scmp.ne.s32.totalorder %s92, %s93
      %p102 = scmp.eq.s32.totalorder %s19, 0
      %p103 = por %p101, %p102
      %p104 = scmp.ne.s32.totalorder %s92, %s93
      %p105 = scmp.eq.s32.totalorder %s20, 1
      %p106 = por %p104, %p105
      %p108 = scmp.ne.s32.totalorder %s93, %s107
      %p109 = scmp.eq.s32.totalorder %s20, 0
      %p110 = por %p108, %p109
      %s112 = sadd.s32 %s111, 1
      %p115 = scmp.eq.s32.totalorder %s14, 1
      %p116 = scmp.ne.s32.totalorder %s111, %s113
      %p117 = scmp.eq.s32.totalorder %s14, 0
      %p118 = por %p116, %p117
      %p119 = scmp.ne.s32.totalorder %s111, %s113
      %p120 = scmp.eq.s32.totalorder %s19, 1
      %p121 = por %p119, %p120
      %p122 = scmp.ne.s32.totalorder %s113, %s114
      %p123 = scmp.eq.s32.totalorder %s19, 0
      %p124 = por %p122, %p123
      %p125 = scmp.ne.s32.totalorder %s113, %s114
      %p126 = scmp.eq.s32.totalorder %s20, 1
      %p127 = por %p125, %p126
      %p129 = scmp.ne.s32.totalorder %s114, %s128
      %p130 = scmp.eq.s32.totalorder %s20, 0
      %p131 = por %p129, %p130
      %s132 = ssub.s32 %s14, %s21
      %p133 = scmp.eq.s32.totalorder %s132, 0
      %s135 = sadd.s32 %s134, 1
      %s136 = scalar_select %p133, %s134, %s135
      %p139 = pneg %p133
      %p140 = scmp.eq.s32.totalorder %s14, 1
      %p141 = por %p139, %p140
      %p142 = scmp.ne.s32.totalorder %s134, %s137
      %p143 = scmp.eq.s32.totalorder %s14, 0
      %p144 = por %p142, %p143
      %p145 = scmp.ne.s32.totalorder %s134, %s137
      %p146 = scmp.eq.s32.totalorder %s19, 1
      %p147 = por %p145, %p146
      %p148 = scmp.ne.s32.totalorder %s137, %s138
      %p149 = scmp.eq.s32.totalorder %s19, 0
      %p150 = por %p148, %p149
      %p151 = scmp.ne.s32.totalorder %s137, %s138
      %p152 = scmp.eq.s32.totalorder %s20, 1
      %p153 = por %p151, %p152
      %p155 = scmp.ne.s32.totalorder %s138, %s154
      %p156 = scmp.eq.s32.totalorder %s20, 0
      %p157 = por %p155, %p156
      %p158 = scmp.le.s32.totalorder 1, %s14
      %p159 = scmp.lt.s32.totalorder %s14, 3
      %p160 = pnand %p158, %p159
      %p161 = pneg %p160
      // Predicated region
      $region9: #{tpu_custom_call.1} parent=5 // pred_check
        _
      $region10: #{tpu_custom_call.1} parent=5 // pred_check_branch
        %163 = sbr.rel (%p160) target = $region12
      $region11: #{tpu_custom_call.1} parent=5 // pred_region
        %s164 = ssub.s32 %s14, 1
        // Predicated region
        $region13: #{tpu_custom_call.1} parent=11 // pred_check
          %p165 = pneg %p61
        $region14: #{tpu_custom_call.1} parent=11 // pred_check_branch
          %167 = sbr.rel (%p165) target = $region16
        $region15: #{tpu_custom_call.1} parent=11 // pred_region
          _
        $region16: #{tpu_custom_call.1} parent=11 // pred_fallthru
          _
        // Predicated region
        $region17: #{tpu_custom_call.1} parent=11 // pred_check
          %p168 = pneg %p82
        $region18: #{tpu_custom_call.1} parent=11 // pred_check_branch
          %170 = sbr.rel (%p168) target = $region20
        $region19: #{tpu_custom_call.1} parent=11 // pred_region
          _
        $region20: #{tpu_custom_call.1} parent=11 // pred_fallthru
          _
        // Predicated region
        $region21: #{tpu_custom_call.1} parent=11 // pred_check
          %p171 = pneg %p103
        $region22: #{tpu_custom_call.1} parent=11 // pred_check_branch
          %173 = sbr.rel (%p171) target = $region24
        $region23: #{tpu_custom_call.1} parent=11 // pred_region
          _
        $region24: #{tpu_custom_call.1} parent=11 // pred_fallthru
          _
        // Predicated region
        $region25: #{tpu_custom_call.1} parent=11 // pred_check
          %p174 = pneg %p124
        $region26: #{tpu_custom_call.1} parent=11 // pred_check_branch
          %176 = sbr.rel (%p174) target = $region28
        $region27: #{tpu_custom_call.1} parent=11 // pred_region
          _
        $region28: #{tpu_custom_call.1} parent=11 // pred_fallthru
          _
      $region12: #{tpu_custom_call.1} parent=5 // pred_fallthru
        _
      %p177 = scmp.lt.s32.totalorder %s14, 2
      // Predicated region
      $region29: #{tpu_custom_call.1} parent=5 // pred_check
        %p178 = pneg %p177
      $region30: #{tpu_custom_call.1} parent=5 // pred_check_branch
        %180 = sbr.rel (%p178) target = $region32
      $region31: #{tpu_custom_call.1} parent=5 // pred_region
        // Predicated region
        $region33: #{tpu_custom_call.1} parent=31 // pred_check
          %p181 = pneg %p34
        $region34: #{tpu_custom_call.1} parent=31 // pred_check_branch
          %183 = sbr.rel (%p181) target = $region36
        $region35: #{tpu_custom_call.1} parent=31 // pred_region
          %p184 = scmp.lt.s32.totalorder %s14, 1
          %s185 = scalar_select %p184, %s14, 1
          %s186 = smul.addr %s185, 160
          %s187 = smul.addr %s186, 4
          %s188 = scalar_lea.vmem %s0, %s187
        $region36: #{tpu_custom_call.1} parent=31 // pred_fallthru
          _
      $region32: #{tpu_custom_call.1} parent=5 // pred_fallthru
        _
      %p189 = scmp.le.s32.totalorder 1, %s14
      %p190 = scmp.lt.s32.totalorder %s14, 3
      %p191 = pnand %p189, %p190
      %p192 = pneg %p191
      // Predicated region
      $region37: #{tpu_custom_call.1} parent=5 // pred_check
        _
      $region38: #{tpu_custom_call.1} parent=5 // pred_check_branch
        %194 = sbr.rel (%p191) target = $region40
      $region39: #{tpu_custom_call.1} parent=5 // pred_region
        %s195 = ssub.s32 %s14, 1
        %p196 = scmp.lt.s32.totalorder %s19, 1
        %s197 = scalar_select %p196, %s19, 1
        %s198 = smul.addr %s197, 160
        %s199 = smul.addr %s198, 4
        %s200 = scalar_lea.vmem %s0, %s199
        %p201 = pneg %p40
        %p202 = pneg %p37
        %p203 = pneg %p61
        %p204 = pneg %p58
        %p205 = pneg %p82
        %p206 = pneg %p79
        %p207 = pneg %p103
        %p208 = pneg %p100
        %p209 = pneg %p124
        %p210 = pneg %p121
        %p211 = pneg %p150
        %p212 = pneg %p147
        %s213 = sand.u32 %s137, 1
        %s214 = scalar_lea.sflag [#allocation5], %s213
        %s215 = sand.u32 %s137, 1
        %s216 = smul.addr %s215, 64
        %s217 = scalar_lea.vmem [#allocation4], %s216
        %p218 = scmp.lt.s32.totalorder %s19, 1
        %s219 = scalar_select %p218, %s19, 1
        %s220 = smul.addr %s219, 160
        %s221 = smul.addr %s220, 4
        %s222 = scalar_lea.vmem %s0, %s221
        %v224 = vld [vmem:[%s222] sm:$0xff]
        %v225 = vld [vmem:[%s222 + $0x8] sm:$0xff]
        %v226 = vld [vmem:[%s222 + $0x10] sm:$0xf]
        %v227 = vld [vmem:[%s222 + $0x14] sm:$0xff]
        %v228 = vld [vmem:[%s222 + $0x1c] sm:$0xff]
        %v229 = vld [vmem:[%s222 + $0x24] sm:$0xf]
        %v230 = vld [vmem:[%s222 + $0x28] sm:$0xff]
        %v231 = vld [vmem:[%s222 + $0x30] sm:$0xff]
        %v232 = vld [vmem:[%s222 + $0x38] sm:$0xf]
        %v233 = vld [vmem:[%s222 + $0x3c] sm:$0xff]
        %v234 = vld [vmem:[%s222 + $0x44] sm:$0xff]
        %v235 = vld [vmem:[%s222 + $0x4c] sm:$0xf]
        %v236 = vld [vmem:[%s222 + $0x50] sm:$0xff]
        %v237 = vld [vmem:[%s222 + $0x58] sm:$0xff]
        %v238 = vld [vmem:[%s222 + $0x60] sm:$0xf]
        %v239 = vld [vmem:[%s222 + $0x64] sm:$0xff]
        %v240 = vld [vmem:[%s222 + $0x6c] sm:$0xff]
        %v241 = vld [vmem:[%s222 + $0x74] sm:$0xf]
        %v242 = vld [vmem:[%s222 + $0x78] sm:$0xff]
        %v243 = vld [vmem:[%s222 + $0x80] sm:$0xff]
        %v244 = vld [vmem:[%s222 + $0x88] sm:$0xf]
        %v245 = vld [vmem:[%s222 + $0x8c] sm:$0xff]
        %v246 = vld [vmem:[%s222 + $0x94] sm:$0xff]
        %v247 = vld [vmem:[%s222 + $0x9c] sm:$0xf]
        %v248 = vld [vmem:[%s222 + $0xa0] sm:$0xff]
        %v249 = vld [vmem:[%s222 + $0xa8] sm:$0xff]
        %v250 = vld [vmem:[%s222 + $0xb0] sm:$0xf]
        %v251 = vld [vmem:[%s222 + $0xb4] sm:$0xff]
        %v252 = vld [vmem:[%s222 + $0xbc] sm:$0xff]
        %v253 = vld [vmem:[%s222 + $0xc4] sm:$0xf]
        %v254 = vld [vmem:[%s222 + $0xc8] sm:$0xff]
        %v255 = vld [vmem:[%s222 + $0xd0] sm:$0xff]
        %v256 = vld [vmem:[%s222 + $0xd8] sm:$0xf]
        %v257 = vld [vmem:[%s222 + $0xdc] sm:$0xff]
        %v258 = vld [vmem:[%s222 + $0xe4] sm:$0xff]
        %v259 = vld [vmem:[%s222 + $0xec] sm:$0xf]
        %v260 = vld [vmem:[%s222 + $0xf0] sm:$0xff]
        %v261 = vld [vmem:[%s222 + $0xf8] sm:$0xff]
        %v262 = vld [vmem:[%s222 + $0x100] sm:$0xf]
        %v263 = vld [vmem:[%s222 + $0x104] sm:$0xff]
        %v264 = vld [vmem:[%s222 + $0x10c] sm:$0xff]
        %v265 = vld [vmem:[%s222 + $0x114] sm:$0xf]
        %v266 = vld [vmem:[%s222 + $0x118] sm:$0xff]
        %v267 = vld [vmem:[%s222 + $0x120] sm:$0xff]
        %v268 = vld [vmem:[%s222 + $0x128] sm:$0xf]
        %v269 = vld [vmem:[%s222 + $0x12c] sm:$0xff]
        %v270 = vld [vmem:[%s222 + $0x134] sm:$0xff]
        %v271 = vld [vmem:[%s222 + $0x13c] sm:$0xf]
        %v272 = vld [vmem:[%s222 + $0x140] sm:$0xff]
        %v273 = vld [vmem:[%s222 + $0x148] sm:$0xff]
        %v274 = vld [vmem:[%s222 + $0x150] sm:$0xf]
        %v275 = vld [vmem:[%s222 + $0x154] sm:$0xff]
        %v276 = vld [vmem:[%s222 + $0x15c] sm:$0xff]
        %v277 = vld [vmem:[%s222 + $0x164] sm:$0xf]
        %v278 = vld [vmem:[%s222 + $0x168] sm:$0xff]
        %v279 = vld [vmem:[%s222 + $0x170] sm:$0xff]
        %v280 = vld [vmem:[%s222 + $0x178] sm:$0xf]
        %v281 = vld [vmem:[%s222 + $0x17c] sm:$0xff]
        %v282 = vld [vmem:[%s222 + $0x184] sm:$0xff]
        %v283 = vld [vmem:[%s222 + $0x18c] sm:$0xf]
        %v284 = vld [vmem:[%s222 + $0x190] sm:$0xff]
        %v285 = vld [vmem:[%s222 + $0x198] sm:$0xff]
        %v286 = vld [vmem:[%s222 + $0x1a0] sm:$0xf]
        %v287 = vld [vmem:[%s222 + $0x1a4] sm:$0xff]
        %v288 = vld [vmem:[%s222 + $0x1ac] sm:$0xff]
        %v289 = vld [vmem:[%s222 + $0x1b4] sm:$0xf]
        %v290 = vld [vmem:[%s222 + $0x1b8] sm:$0xff]
        %v291 = vld [vmem:[%s222 + $0x1c0] sm:$0xff]
        %v292 = vld [vmem:[%s222 + $0x1c8] sm:$0xf]
        %v293 = vld [vmem:[%s222 + $0x1cc] sm:$0xff]
        %v294 = vld [vmem:[%s222 + $0x1d4] sm:$0xff]
        %v295 = vld [vmem:[%s222 + $0x1dc] sm:$0xf]
        %v296 = vld [vmem:[%s222 + $0x1e0] sm:$0xff]
        %v297 = vld [vmem:[%s222 + $0x1e8] sm:$0xff]
        %v298 = vld [vmem:[%s222 + $0x1f0] sm:$0xf]
        %v299 = vld [vmem:[%s222 + $0x1f4] sm:$0xff]
        %v300 = vld [vmem:[%s222 + $0x1fc] sm:$0xff]
        %v301 = vld [vmem:[%s222 + $0x204] sm:$0xf]
        %v302 = vld [vmem:[%s222 + $0x208] sm:$0xff]
        %v303 = vld [vmem:[%s222 + $0x210] sm:$0xff]
        %v304 = vld [vmem:[%s222 + $0x218] sm:$0xf]
        %v305 = vld [vmem:[%s222 + $0x21c] sm:$0xff]
        %v306 = vld [vmem:[%s222 + $0x224] sm:$0xff]
        %v307 = vld [vmem:[%s222 + $0x22c] sm:$0xf]
        %v308 = vld [vmem:[%s222 + $0x230] sm:$0xff]
        %v309 = vld [vmem:[%s222 + $0x238] sm:$0xff]
        %v310 = vld [vmem:[%s222 + $0x240] sm:$0xf]
        %v311 = vld [vmem:[%s222 + $0x244] sm:$0xff]
        %v312 = vld [vmem:[%s222 + $0x24c] sm:$0xff]
        %v313 = vld [vmem:[%s222 + $0x254] sm:$0xf]
        %v314 = vld [vmem:[%s222 + $0x258] sm:$0xff]
        %v315 = vld [vmem:[%s222 + $0x260] sm:$0xff]
        %v316 = vld [vmem:[%s222 + $0x268] sm:$0xf]
        %v317 = vld [vmem:[%s222 + $0x26c] sm:$0xff]
        %v318 = vld [vmem:[%s222 + $0x274] sm:$0xff]
        %v319 = vld [vmem:[%s222 + $0x27c] sm:$0xf]
        %v320 = vld [vmem:[%s1] sm:$0xf]
        %v321 = vld [vmem:[%s1 + $0x4] sm:$0xf]
        %v322 = vld [vmem:[%s1 + $0x8] sm:$0xf]
        %v323 = vld [vmem:[%s1 + $0xc] sm:$0xf]
        %v324 = vld [vmem:[%s1 + $0x10] sm:$0xf]
        %v325 = vld [vmem:[%s1 + $0x14] sm:$0xf]
        %v326 = vld [vmem:[%s1 + $0x18] sm:$0xf]
        %v327 = vld [vmem:[%s1 + $0x1c] sm:$0xf]
        %v328 = vld [vmem:[%s1 + $0x20] sm:$0xf]
        %v329 = vld [vmem:[%s1 + $0x24] sm:$0xf]
        %v330 = vld [vmem:[%s1 + $0x28] sm:$0xf]
        %v331 = vld [vmem:[%s1 + $0x2c] sm:$0xf]
        %v332 = vld [vmem:[%s1 + $0x30] sm:$0xf]
        %v333 = vld [vmem:[%s1 + $0x34] sm:$0xf]
        %v334 = vld [vmem:[%s1 + $0x38] sm:$0xf]
        %v335 = vld [vmem:[%s1 + $0x3c] sm:$0xf]
        %v336 = vld [vmem:[%s1 + $0x40] sm:$0xf]
        %v337 = vld [vmem:[%s1 + $0x44] sm:$0xf]
        %v338 = vld [vmem:[%s1 + $0x48] sm:$0xf]
        %v339 = vld [vmem:[%s1 + $0x4c] sm:$0xf]
        %v340 = vld [vmem:[%s1 + $0x50] sm:$0xf]
        %v341 = vld [vmem:[%s1 + $0x54] sm:$0xf]
        %v342 = vld [vmem:[%s1 + $0x58] sm:$0xf]
        %v343 = vld [vmem:[%s1 + $0x5c] sm:$0xf]
        %v344 = vld [vmem:[%s1 + $0x60] sm:$0xf]
        %v345 = vld [vmem:[%s1 + $0x64] sm:$0xf]
        %v346 = vld [vmem:[%s1 + $0x68] sm:$0xf]
        %v347 = vld [vmem:[%s1 + $0x6c] sm:$0xf]
        %v348 = vld [vmem:[%s1 + $0x70] sm:$0xf]
        %v349 = vld [vmem:[%s1 + $0x74] sm:$0xf]
        %v350 = vld [vmem:[%s1 + $0x78] sm:$0xf]
        %v351 = vld [vmem:[%s1 + $0x7c] sm:$0xf]
        %v352 = vld [vmem:[%s1 + $0x80] sm:$0xf]
        %v353 = vld [vmem:[%s1 + $0x84] sm:$0xf]
        %v354 = vld [vmem:[%s1 + $0x88] sm:$0xf]
        %v355 = vld [vmem:[%s1 + $0x8c] sm:$0xf]
        %v356 = vld [vmem:[%s1 + $0x90] sm:$0xf]
        %v357 = vld [vmem:[%s1 + $0x94] sm:$0xf]
        %v358 = vld [vmem:[%s1 + $0x98] sm:$0xf]
        %v359 = vld [vmem:[%s1 + $0x9c] sm:$0xf]
        %v360 = vld [vmem:[%s1 + $0xa0] sm:$0xf]
        %v361 = vld [vmem:[%s1 + $0xa4] sm:$0xf]
        %v362 = vld [vmem:[%s1 + $0xa8] sm:$0xf]
        %v363 = vld [vmem:[%s1 + $0xac] sm:$0xf]
        %v364 = vld [vmem:[%s1 + $0xb0] sm:$0xf]
        %v365 = vld [vmem:[%s1 + $0xb4] sm:$0xf]
        %v366 = vld [vmem:[%s1 + $0xb8] sm:$0xf]
        %v367 = vld [vmem:[%s1 + $0xbc] sm:$0xf]
        %v368 = vld [vmem:[%s1 + $0xc0] sm:$0xf]
        %v369 = vld [vmem:[%s1 + $0xc4] sm:$0xf]
        %v370 = vld [vmem:[%s1 + $0xc8] sm:$0xf]
        %v371 = vld [vmem:[%s1 + $0xcc] sm:$0xf]
        %v372 = vld [vmem:[%s1 + $0xd0] sm:$0xf]
        %v373 = vld [vmem:[%s1 + $0xd4] sm:$0xf]
        %v374 = vld [vmem:[%s1 + $0xd8] sm:$0xf]
        %v375 = vld [vmem:[%s1 + $0xdc] sm:$0xf]
        %v376 = vld [vmem:[%s1 + $0xe0] sm:$0xf]
        %v377 = vld [vmem:[%s1 + $0xe4] sm:$0xf]
        %v378 = vld [vmem:[%s1 + $0xe8] sm:$0xf]
        %v379 = vld [vmem:[%s1 + $0xec] sm:$0xf]
        %v380 = vld [vmem:[%s1 + $0xf0] sm:$0xf]
        %v381 = vld [vmem:[%s1 + $0xf4] sm:$0xf]
        %v382 = vld [vmem:[%s1 + $0xf8] sm:$0xf]
        %v383 = vld [vmem:[%s1 + $0xfc] sm:$0xf]
        %v384 = vld [vmem:[%s1 + $0x100] sm:$0xf]
        %v385 = vld [vmem:[%s1 + $0x104] sm:$0xf]
        %v386 = vld [vmem:[%s1 + $0x108] sm:$0xf]
        %v387 = vld [vmem:[%s1 + $0x10c] sm:$0xf]
        %v388 = vld [vmem:[%s1 + $0x110] sm:$0xf]
        %v389 = vld [vmem:[%s1 + $0x114] sm:$0xf]
        %v390 = vld [vmem:[%s1 + $0x118] sm:$0xf]
        %v391 = vld [vmem:[%s1 + $0x11c] sm:$0xf]
        %v392 = vld [vmem:[%s2] sm:$0x1]
        %v394 = vlaneseq
        %v395 = vshrl.u32 %v394, 7
        %v396 = vsub.s32 0, %v395
        %v397 = vrot.slane %v392, %v396
        %v495 = vunpack.c.l.b16 %v224
        %v496 = vunpack.c.h.b16 %v224
        %v497 = vunpack.c.l.b16 %v225
        %v498 = vunpack.c.h.b16 %v225
        %v499 = vunpack.c.l.b16 %v226
        %v500 = vunpack.c.l.b16 %v227
        %v501 = vunpack.c.h.b16 %v227
        %v502 = vunpack.c.l.b16 %v228
        %v503 = vunpack.c.h.b16 %v228
        %v504 = vunpack.c.l.b16 %v229
        %v505 = vunpack.c.l.b16 %v230
        %v506 = vunpack.c.h.b16 %v230
        %v507 = vunpack.c.l.b16 %v231
        %v508 = vunpack.c.h.b16 %v231
        %v509 = vunpack.c.l.b16 %v232
        %v510 = vunpack.c.l.b16 %v233
        %v511 = vunpack.c.h.b16 %v233
        %v512 = vunpack.c.l.b16 %v234
        %v513 = vunpack.c.h.b16 %v234
        %v514 = vunpack.c.l.b16 %v235
        %v515 = vunpack.c.l.b16 %v236
        %v516 = vunpack.c.h.b16 %v236
        %v517 = vunpack.c.l.b16 %v237
        %v518 = vunpack.c.h.b16 %v237
        %v519 = vunpack.c.l.b16 %v238
        %v520 = vunpack.c.l.b16 %v239
        %v521 = vunpack.c.h.b16 %v239
        %v522 = vunpack.c.l.b16 %v240
        %v523 = vunpack.c.h.b16 %v240
        %v524 = vunpack.c.l.b16 %v241
        %v525 = vunpack.c.l.b16 %v242
        %v526 = vunpack.c.h.b16 %v242
        %v527 = vunpack.c.l.b16 %v243
        %v528 = vunpack.c.h.b16 %v243
        %v529 = vunpack.c.l.b16 %v244
        %v530 = vunpack.c.l.b16 %v245
        %v531 = vunpack.c.h.b16 %v245
        %v532 = vunpack.c.l.b16 %v246
        %v533 = vunpack.c.h.b16 %v246
        %v534 = vunpack.c.l.b16 %v247
        %v535 = vunpack.c.l.b16 %v248
        %v536 = vunpack.c.h.b16 %v248
        %v537 = vunpack.c.l.b16 %v249
        %v538 = vunpack.c.h.b16 %v249
        %v539 = vunpack.c.l.b16 %v250
        %v540 = vunpack.c.l.b16 %v251
        %v541 = vunpack.c.h.b16 %v251
        %v542 = vunpack.c.l.b16 %v252
        %v543 = vunpack.c.h.b16 %v252
        %v544 = vunpack.c.l.b16 %v253
        %v545 = vunpack.c.l.b16 %v254
        %v546 = vunpack.c.h.b16 %v254
        %v547 = vunpack.c.l.b16 %v255
        %v548 = vunpack.c.h.b16 %v255
        %v549 = vunpack.c.l.b16 %v256
        %v550 = vunpack.c.l.b16 %v257
        %v551 = vunpack.c.h.b16 %v257
        %v552 = vunpack.c.l.b16 %v258
        %v553 = vunpack.c.h.b16 %v258
        %v554 = vunpack.c.l.b16 %v259
        %v555 = vunpack.c.l.b16 %v260
        %v556 = vunpack.c.h.b16 %v260
        %v557 = vunpack.c.l.b16 %v261
        %v558 = vunpack.c.h.b16 %v261
        %v559 = vunpack.c.l.b16 %v262
        %v560 = vunpack.c.l.b16 %v263
        %v561 = vunpack.c.h.b16 %v263
        %v562 = vunpack.c.l.b16 %v264
        %v563 = vunpack.c.h.b16 %v264
        %v564 = vunpack.c.l.b16 %v265
        %v565 = vunpack.c.l.b16 %v266
        %v566 = vunpack.c.h.b16 %v266
        %v567 = vunpack.c.l.b16 %v267
        %v568 = vunpack.c.h.b16 %v267
        %v569 = vunpack.c.l.b16 %v268
        %v570 = vunpack.c.l.b16 %v269
        %v571 = vunpack.c.h.b16 %v269
        %v572 = vunpack.c.l.b16 %v270
        %v573 = vunpack.c.h.b16 %v270
        %v574 = vunpack.c.l.b16 %v271
        %v575 = vunpack.c.l.b16 %v272
        %v576 = vunpack.c.h.b16 %v272
        %v577 = vunpack.c.l.b16 %v273
        %v578 = vunpack.c.h.b16 %v273
        %v579 = vunpack.c.l.b16 %v274
        %v580 = vunpack.c.l.b16 %v275
        %v581 = vunpack.c.h.b16 %v275
        %v582 = vunpack.c.l.b16 %v276
        %v583 = vunpack.c.h.b16 %v276
        %v584 = vunpack.c.l.b16 %v277
        %v585 = vunpack.c.l.b16 %v278
        %v586 = vunpack.c.h.b16 %v278
        %v587 = vunpack.c.l.b16 %v279
        %v588 = vunpack.c.h.b16 %v279
        %v589 = vunpack.c.l.b16 %v280
        %v590 = vunpack.c.l.b16 %v281
        %v591 = vunpack.c.h.b16 %v281
        %v592 = vunpack.c.l.b16 %v282
        %v593 = vunpack.c.h.b16 %v282
        %v594 = vunpack.c.l.b16 %v283
        %v595 = vunpack.c.l.b16 %v284
        %v596 = vunpack.c.h.b16 %v284
        %v597 = vunpack.c.l.b16 %v285
        %v598 = vunpack.c.h.b16 %v285
        %v599 = vunpack.c.l.b16 %v286
        %v600 = vunpack.c.l.b16 %v287
        %v601 = vunpack.c.h.b16 %v287
        %v602 = vunpack.c.l.b16 %v288
        %v603 = vunpack.c.h.b16 %v288
        %v604 = vunpack.c.l.b16 %v289
        %v605 = vunpack.c.l.b16 %v290
        %v606 = vunpack.c.h.b16 %v290
        %v607 = vunpack.c.l.b16 %v291
        %v608 = vunpack.c.h.b16 %v291
        %v609 = vunpack.c.l.b16 %v292
        %v610 = vunpack.c.l.b16 %v293
        %v611 = vunpack.c.h.b16 %v293
        %v612 = vunpack.c.l.b16 %v294
        %v613 = vunpack.c.h.b16 %v294
        %v614 = vunpack.c.l.b16 %v295
        %v615 = vunpack.c.l.b16 %v296
        %v616 = vunpack.c.h.b16 %v296
        %v617 = vunpack.c.l.b16 %v297
        %v618 = vunpack.c.h.b16 %v297
        %v619 = vunpack.c.l.b16 %v298
        %v620 = vunpack.c.l.b16 %v299
        %v621 = vunpack.c.h.b16 %v299
        %v622 = vunpack.c.l.b16 %v300
        %v623 = vunpack.c.h.b16 %v300
        %v624 = vunpack.c.l.b16 %v301
        %v625 = vunpack.c.l.b16 %v302
        %v626 = vunpack.c.h.b16 %v302
        %v627 = vunpack.c.l.b16 %v303
        %v628 = vunpack.c.h.b16 %v303
        %v629 = vunpack.c.l.b16 %v304
        %v630 = vunpack.c.l.b16 %v305
        %v631 = vunpack.c.h.b16 %v305
        %v632 = vunpack.c.l.b16 %v306
        %v633 = vunpack.c.h.b16 %v306
        %v634 = vunpack.c.l.b16 %v307
        %v635 = vunpack.c.l.b16 %v308
        %v636 = vunpack.c.h.b16 %v308
        %v637 = vunpack.c.l.b16 %v309
        %v638 = vunpack.c.h.b16 %v309
        %v639 = vunpack.c.l.b16 %v310
        %v640 = vunpack.c.l.b16 %v311
        %v641 = vunpack.c.h.b16 %v311
        %v642 = vunpack.c.l.b16 %v312
        %v643 = vunpack.c.h.b16 %v312
        %v644 = vunpack.c.l.b16 %v313
        %v645 = vunpack.c.l.b16 %v314
        %v646 = vunpack.c.h.b16 %v314
        %v647 = vunpack.c.l.b16 %v315
        %v648 = vunpack.c.h.b16 %v315
        %v649 = vunpack.c.l.b16 %v316
        %v650 = vunpack.c.l.b16 %v317
        %v651 = vunpack.c.h.b16 %v317
        %v652 = vunpack.c.l.b16 %v318
        %v653 = vunpack.c.h.b16 %v318
        %v654 = vunpack.c.l.b16 %v319
        %v655 = vpack.c.b16 %v500, %v495
        %v656 = vpack.c.b16 %v501, %v496
        %v657 = vpack.c.b16 %v502, %v497
        %v658 = vpack.c.b16 %v503, %v498
        %v659 = vpack.c.b16 %v504, %v499
        %v660 = vpack.c.b16 %v510, %v505
        %v661 = vpack.c.b16 %v511, %v506
        %v662 = vpack.c.b16 %v512, %v507
        %v663 = vpack.c.b16 %v513, %v508
        %v664 = vpack.c.b16 %v514, %v509
        %v665 = vpack.c.b16 %v520, %v515
        %v666 = vpack.c.b16 %v521, %v516
        %v667 = vpack.c.b16 %v522, %v517
        %v668 = vpack.c.b16 %v523, %v518
        %v669 = vpack.c.b16 %v524, %v519
        %v670 = vpack.c.b16 %v530, %v525
        %v671 = vpack.c.b16 %v531, %v526
        %v672 = vpack.c.b16 %v532, %v527
        %v673 = vpack.c.b16 %v533, %v528
        %v674 = vpack.c.b16 %v534, %v529
        %v675 = vpack.c.b16 %v540, %v535
        %v676 = vpack.c.b16 %v541, %v536
        %v677 = vpack.c.b16 %v542, %v537
        %v678 = vpack.c.b16 %v543, %v538
        %v679 = vpack.c.b16 %v544, %v539
        %v680 = vpack.c.b16 %v550, %v545
        %v681 = vpack.c.b16 %v551, %v546
        %v682 = vpack.c.b16 %v552, %v547
        %v683 = vpack.c.b16 %v553, %v548
        %v684 = vpack.c.b16 %v554, %v549
        %v685 = vpack.c.b16 %v560, %v555
        %v686 = vpack.c.b16 %v561, %v556
        %v687 = vpack.c.b16 %v562, %v557
        %v688 = vpack.c.b16 %v563, %v558
        %v689 = vpack.c.b16 %v564, %v559
        %v690 = vpack.c.b16 %v570, %v565
        %v691 = vpack.c.b16 %v571, %v566
        %v692 = vpack.c.b16 %v572, %v567
        %v693 = vpack.c.b16 %v573, %v568
        %v694 = vpack.c.b16 %v574, %v569
        %v695 = vpack.c.b16 %v580, %v575
        %v696 = vpack.c.b16 %v581, %v576
        %v697 = vpack.c.b16 %v582, %v577
        %v698 = vpack.c.b16 %v583, %v578
        %v699 = vpack.c.b16 %v584, %v579
        %v700 = vpack.c.b16 %v590, %v585
        %v701 = vpack.c.b16 %v591, %v586
        %v702 = vpack.c.b16 %v592, %v587
        %v703 = vpack.c.b16 %v593, %v588
        %v704 = vpack.c.b16 %v594, %v589
        %v705 = vpack.c.b16 %v600, %v595
        %v706 = vpack.c.b16 %v601, %v596
        %v707 = vpack.c.b16 %v602, %v597
        %v708 = vpack.c.b16 %v603, %v598
        %v709 = vpack.c.b16 %v604, %v599
        %v710 = vpack.c.b16 %v610, %v605
        %v711 = vpack.c.b16 %v611, %v606
        %v712 = vpack.c.b16 %v612, %v607
        %v713 = vpack.c.b16 %v613, %v608
        %v714 = vpack.c.b16 %v614, %v609
        %v715 = vpack.c.b16 %v620, %v615
        %v716 = vpack.c.b16 %v621, %v616
        %v717 = vpack.c.b16 %v622, %v617
        %v718 = vpack.c.b16 %v623, %v618
        %v719 = vpack.c.b16 %v624, %v619
        %v720 = vpack.c.b16 %v630, %v625
        %v721 = vpack.c.b16 %v631, %v626
        %v722 = vpack.c.b16 %v632, %v627
        %v723 = vpack.c.b16 %v633, %v628
        %v724 = vpack.c.b16 %v634, %v629
        %v725 = vpack.c.b16 %v640, %v635
        %v726 = vpack.c.b16 %v641, %v636
        %v727 = vpack.c.b16 %v642, %v637
        %v728 = vpack.c.b16 %v643, %v638
        %v729 = vpack.c.b16 %v644, %v639
        %v730 = vpack.c.b16 %v650, %v645
        %v731 = vpack.c.b16 %v651, %v646
        %v732 = vpack.c.b16 %v652, %v647
        %v733 = vpack.c.b16 %v653, %v648
        %v734 = vpack.c.b16 %v654, %v649
        %v871 = vunpack.c.l.b16 %v320
        %v872 = vunpack.c.l.b16 %v321
        %v873 = vunpack.c.l.b16 %v322
        %v874 = vunpack.c.l.b16 %v323
        %v875 = vunpack.c.l.b16 %v324
        %v876 = vunpack.c.l.b16 %v325
        %v877 = vunpack.c.l.b16 %v326
        %v878 = vunpack.c.l.b16 %v327
        %v879 = vunpack.c.l.b16 %v328
        %v880 = vunpack.c.l.b16 %v329
        %v881 = vunpack.c.l.b16 %v330
        %v882 = vunpack.c.l.b16 %v331
        %v883 = vunpack.c.l.b16 %v332
        %v884 = vunpack.c.l.b16 %v333
        %v885 = vunpack.c.l.b16 %v334
        %v886 = vunpack.c.l.b16 %v335
        %v887 = vunpack.c.l.b16 %v336
        %v888 = vunpack.c.l.b16 %v337
        %v889 = vunpack.c.l.b16 %v338
        %v890 = vunpack.c.l.b16 %v339
        %v891 = vunpack.c.l.b16 %v340
        %v892 = vunpack.c.l.b16 %v341
        %v893 = vunpack.c.l.b16 %v342
        %v894 = vunpack.c.l.b16 %v343
        %v895 = vunpack.c.l.b16 %v344
        %v896 = vunpack.c.l.b16 %v345
        %v897 = vunpack.c.l.b16 %v346
        %v898 = vunpack.c.l.b16 %v347
        %v899 = vunpack.c.l.b16 %v348
        %v900 = vunpack.c.l.b16 %v349
        %v901 = vunpack.c.l.b16 %v350
        %v902 = vunpack.c.l.b16 %v351
        %v903 = vunpack.c.l.b16 %v352
        %v904 = vunpack.c.l.b16 %v353
        %v905 = vunpack.c.l.b16 %v354
        %v906 = vunpack.c.l.b16 %v355
        %v907 = vunpack.c.l.b16 %v356
        %v908 = vunpack.c.l.b16 %v357
        %v909 = vunpack.c.l.b16 %v358
        %v910 = vunpack.c.l.b16 %v359
        %v911 = vunpack.c.l.b16 %v360
        %v912 = vunpack.c.l.b16 %v361
        %v913 = vunpack.c.l.b16 %v362
        %v914 = vunpack.c.l.b16 %v363
        %v915 = vunpack.c.l.b16 %v364
        %v916 = vunpack.c.l.b16 %v365
        %v917 = vunpack.c.l.b16 %v366
        %v918 = vunpack.c.l.b16 %v367
        %v919 = vunpack.c.l.b16 %v368
        %v920 = vunpack.c.l.b16 %v369
        %v921 = vunpack.c.l.b16 %v370
        %v922 = vunpack.c.l.b16 %v371
        %v923 = vunpack.c.l.b16 %v372
        %v924 = vunpack.c.l.b16 %v373
        %v925 = vunpack.c.l.b16 %v374
        %v926 = vunpack.c.l.b16 %v375
        %v927 = vunpack.c.l.b16 %v376
        %v928 = vunpack.c.l.b16 %v377
        %v929 = vunpack.c.l.b16 %v378
        %v930 = vunpack.c.l.b16 %v379
        %v931 = vunpack.c.l.b16 %v380
        %v932 = vunpack.c.l.b16 %v381
        %v933 = vunpack.c.l.b16 %v382
        %v934 = vunpack.c.l.b16 %v383
        %v935 = vunpack.c.l.b16 %v384
        %v936 = vunpack.c.l.b16 %v385
        %v937 = vunpack.c.l.b16 %v386
        %v938 = vunpack.c.l.b16 %v387
        %v939 = vunpack.c.l.b16 %v388
        %v940 = vunpack.c.l.b16 %v389
        %v941 = vunpack.c.l.b16 %v390
        %v942 = vunpack.c.l.b16 %v391
        %v943 = vpack.c.b16 %v872, %v871
        %v944 = vpack.c.b16 %v874, %v873
        %v945 = vpack.c.b16 %v876, %v875
        %v946 = vpack.c.b16 %v878, %v877
        %v947 = vpack.c.b16 %v880, %v879
        %v948 = vpack.c.b16 %v882, %v881
        %v949 = vpack.c.b16 %v884, %v883
        %v950 = vpack.c.b16 %v886, %v885
        %v951 = vpack.c.b16 %v888, %v887
        %v952 = vpack.c.b16 %v890, %v889
        %v953 = vpack.c.b16 %v892, %v891
        %v954 = vpack.c.b16 %v894, %v893
        %v955 = vpack.c.b16 %v896, %v895
        %v956 = vpack.c.b16 %v898, %v897
        %v957 = vpack.c.b16 %v900, %v899
        %v958 = vpack.c.b16 %v902, %v901
        %v959 = vpack.c.b16 %v904, %v903
        %v960 = vpack.c.b16 %v906, %v905
        %v961 = vpack.c.b16 %v908, %v907
        %v962 = vpack.c.b16 %v910, %v909
        %v963 = vpack.c.b16 %v912, %v911
        %v964 = vpack.c.b16 %v914, %v913
        %v965 = vpack.c.b16 %v916, %v915
        %v966 = vpack.c.b16 %v918, %v917
        %v967 = vpack.c.b16 %v920, %v919
        %v968 = vpack.c.b16 %v922, %v921
        %v969 = vpack.c.b16 %v924, %v923
        %v970 = vpack.c.b16 %v926, %v925
        %v971 = vpack.c.b16 %v928, %v927
        %v972 = vpack.c.b16 %v930, %v929
        %v973 = vpack.c.b16 %v932, %v931
        %v974 = vpack.c.b16 %v934, %v933
        %v975 = vpack.c.b16 %v936, %v935
        %v976 = vpack.c.b16 %v938, %v937
        %v977 = vpack.c.b16 %v940, %v939
        %v978 = vpack.c.b16 %v942, %v941
        %vm1015 = vcmask 523264
        %v1017 = vsel %vm1015, %v659, 0
        %v1020 = vsel %vm1015, %v664, 0
        %v1023 = vsel %vm1015, %v669, 0
        %v1026 = vsel %vm1015, %v674, 0
        %v1029 = vsel %vm1015, %v679, 0
        %v1032 = vsel %vm1015, %v684, 0
        %v1035 = vsel %vm1015, %v689, 0
        %v1038 = vsel %vm1015, %v694, 0
        %v1041 = vsel %vm1015, %v699, 0
        %v1044 = vsel %vm1015, %v704, 0
        %v1047 = vsel %vm1015, %v709, 0
        %v1050 = vsel %vm1015, %v714, 0
        %v1053 = vsel %vm1015, %v719, 0
        %v1056 = vsel %vm1015, %v724, 0
        %v1059 = vsel %vm1015, %v729, 0
        %v1062 = vsel %vm1015, %v734, 0
        %1064 = vmatprep.subr.bf16.mxu0 0
        %1065 = vmatpush1.bf16.msra.mxu0 %v943
        %1066 = vmatprep.subr.bf16.mxu0 0
        %1067 = vmatpush1.bf16.msra.mxu0 %v944
        %1068 = vmatprep.subr.bf16.mxu0 0
        %1069 = vmatpush1.bf16.msra.mxu0 %v945
        %1070 = vmatprep.subr.bf16.mxu0 0
        %1071 = vmatpush1.bf16.msra.mxu0 %v946
        %1072 = vmatprep.subr.bf16.mxu0 0
        %1073 = vmatpush1.bf16.msra.mxu0 %v947
        %1074 = vmatprep.subr.bf16.mxu0 0
        %1075 = vmatpush1.bf16.msra.mxu0 %v948
        %1076 = vmatprep.subr.bf16.mxu0 0
        %1077 = vmatpush1.bf16.msra.mxu0 %v949
        %1078 = vmatprep.subr.bf16.mxu0 0
        %1079 = vmatpush1.bf16.msra.mxu0 %v950
        %1080 = vmatprep.subr.bf16.mxu0 0
        %1081 = vmatpush1.bf16.msra.mxu0 %v951
        %1082 = vmatprep.subr.bf16.mxu0 0
        %1083 = vmatpush1.bf16.msra.mxu0 %v952
        %1084 = vmatprep.subr.bf16.mxu0 0
        %1085 = vmatpush1.bf16.msra.mxu0 %v953
        %1086 = vmatprep.subr.bf16.mxu0 0
        %1087 = vmatpush1.bf16.msra.mxu0 %v954
        %1088 = vmatprep.subr.bf16.mxu0 0
        %1089 = vmatpush1.bf16.msra.mxu0 %v955
        %1090 = vmatprep.subr.bf16.mxu0 0
        %1091 = vmatpush1.bf16.msra.mxu0 %v956
        %1092 = vmatprep.subr.bf16.mxu0 0
        %1093 = vmatpush1.bf16.msra.mxu0 %v957
        %1094 = vmatprep.subr.bf16.mxu0 0
        %1095 = vmatpush1.bf16.msra.mxu0 %v958
        %1096 = vmatprep.mubr.bf16.mxu0 %v656
        %1097 = vmatmul.mubr.bf16.gmra.mrb[0].mxu0 %v655
        %v1098 = vpop.f32.mrb[0].mxu0
        %v1099 = vadd.f32 %v397, %v1098
        %v1100 = vpop.f32.mrb[0].mxu0
        %v1101 = vpop.f32.mrb[0].mxu0
        %v1102 = vadd.f32 %v397, %v1101
        %v1103 = vpop.f32.mrb[0].mxu0
        %1104 = vmatprep.mubr.bf16.mxu0 %v661
        %1105 = vmatmul.mubr.bf16.gmra.mrb[0].mxu0 %v660
        %v1106 = vpop.f32.mrb[0].mxu0
        %v1107 = vadd.f32 %v397, %v1106
        %v1108 = vpop.f32.mrb[0].mxu0
        %v1109 = vpop.f32.mrb[0].mxu0
        %v1110 = vadd.f32 %v397, %v1109
        %v1111 = vpop.f32.mrb[0].mxu0
        %1112 = vmatprep.mubr.bf16.mxu0 %v666
        %1113 = vmatmul.mubr.bf16.gmra.mrb[0].mxu0 %v665
        %v1114 = vpop.f32.mrb[0].mxu0
        %v1115 = vadd.f32 %v397, %v1114
        %v1116 = vpop.f32.mrb[0].mxu0
        %v1117 = vpop.f32.mrb[0].mxu0
        %v1118 = vadd.f32 %v397, %v1117
        %v1119 = vpop.f32.mrb[0].mxu0
        %1120 = vmatprep.mubr.bf16.mxu0 %v671
        %1121 = vmatmul.mubr.bf16.gmra.mrb[0].mxu0 %v670
        %v1122 = vpop.f32.mrb[0].mxu0
        %v1123 = vadd.f32 %v397, %v1122
        %v1124 = vpop.f32.mrb[0].mxu0
        %v1125 = vpop.f32.mrb[0].mxu0
        %v1126 = vadd.f32 %v397, %v1125
        %v1127 = vpop.f32.mrb[0].mxu0
        %1128 = vmatprep.mubr.bf16.mxu0 %v676
        %1129 = vmatmul.mubr.bf16.gmra.mrb[0].mxu0 %v675
        %v1130 = vpop.f32.mrb[0].mxu0
        %v1131 = vadd.f32 %v397, %v1130
        %v1132 = vpop.f32.mrb[0].mxu0
        %v1133 = vpop.f32.mrb[0].mxu0
        %v1134 = vadd.f32 %v397, %v1133
        %v1135 = vpop.f32.mrb[0].mxu0
        %1136 = vmatprep.mubr.bf16.mxu0 %v681
        %1137 = vmatmul.mubr.bf16.gmra.mrb[0].mxu0 %v680
        %v1138 = vpop.f32.mrb[0].mxu0
        %v1139 = vadd.f32 %v397, %v1138
        %v1140 = vpop.f32.mrb[0].mxu0
        %v1141 = vpop.f32.mrb[0].mxu0
        %v1142 = vadd.f32 %v397, %v1141
        %v1143 = vpop.f32.mrb[0].mxu0
        %1144 = vmatprep.mubr.bf16.mxu0 %v686
        %1145 = vmatmul.mubr.bf16.gmra.mrb[0].mxu0 %v685
        %v1146 = vpop.f32.mrb[0].mxu0
        %v1147 = vadd.f32 %v397, %v1146
        %v1148 = vpop.f32.mrb[0].mxu0
        %v1149 = vpop.f32.mrb[0].mxu0
        %v1150 = vadd.f32 %v397, %v1149
        %v1151 = vpop.f32.mrb[0].mxu0
        %1152 = vmatprep.mubr.bf16.mxu0 %v691
        %1153 = vmatmul.mubr.bf16.gmra.mrb[0].mxu0 %v690
        %v1154 = vpop.f32.mrb[0].mxu0
        %v1155 = vadd.f32 %v397, %v1154
        %v1156 = vpop.f32.mrb[0].mxu0
        %v1157 = vpop.f32.mrb[0].mxu0
        %v1158 = vadd.f32 %v397, %v1157
        %v1159 = vpop.f32.mrb[0].mxu0
        %1160 = vmatprep.mubr.bf16.mxu0 %v696
        %1161 = vmatmul.mubr.bf16.gmra.mrb[0].mxu0 %v695
        %v1162 = vpop.f32.mrb[0].mxu0
        %v1163 = vadd.f32 %v397, %v1162
        %v1164 = vpop.f32.mrb[0].mxu0
        %v1165 = vpop.f32.mrb[0].mxu0
        %v1166 = vadd.f32 %v397, %v1165
        %v1167 = vpop.f32.mrb[0].mxu0
        %1168 = vmatprep.mubr.bf16.mxu0 %v701
        %1169 = vmatmul.mubr.bf16.gmra.mrb[0].mxu0 %v700
        %v1170 = vpop.f32.mrb[0].mxu0
        %v1171 = vadd.f32 %v397, %v1170
        %v1172 = vpop.f32.mrb[0].mxu0
        %v1173 = vpop.f32.mrb[0].mxu0
        %v1174 = vadd.f32 %v397, %v1173
        %v1175 = vpop.f32.mrb[0].mxu0
        %1176 = vmatprep.mubr.bf16.mxu0 %v706
        %1177 = vmatmul.mubr.bf16.gmra.mrb[0].mxu0 %v705
        %v1178 = vpop.f32.mrb[0].mxu0
        %v1179 = vadd.f32 %v397, %v1178
        %v1180 = vpop.f32.mrb[0].mxu0
        %v1181 = vpop.f32.mrb[0].mxu0
        %v1182 = vadd.f32 %v397, %v1181
        %v1183 = vpop.f32.mrb[0].mxu0
        %1184 = vmatprep.mubr.bf16.mxu0 %v711
        %1185 = vmatmul.mubr.bf16.gmra.mrb[0].mxu0 %v710
        %v1186 = vpop.f32.mrb[0].mxu0
        %v1187 = vadd.f32 %v397, %v1186
        %v1188 = vpop.f32.mrb[0].mxu0
        %v1189 = vpop.f32.mrb[0].mxu0
        %v1190 = vadd.f32 %v397, %v1189
        %v1191 = vpop.f32.mrb[0].mxu0
        %1192 = vmatprep.mubr.bf16.mxu0 %v716
        %1193 = vmatmul.mubr.bf16.gmra.mrb[0].mxu0 %v715
        %v1194 = vpop.f32.mrb[0].mxu0
        %v1195 = vadd.f32 %v397, %v1194
        %v1196 = vpop.f32.mrb[0].mxu0
        %v1197 = vpop.f32.mrb[0].mxu0
        %v1198 = vadd.f32 %v397, %v1197
        %v1199 = vpop.f32.mrb[0].mxu0
        %1200 = vmatprep.mubr.bf16.mxu0 %v721
        %1201 = vmatmul.mubr.bf16.gmra.mrb[0].mxu0 %v720
        %v1202 = vpop.f32.mrb[0].mxu0
        %v1203 = vadd.f32 %v397, %v1202
        %v1204 = vpop.f32.mrb[0].mxu0
        %v1205 = vpop.f32.mrb[0].mxu0
        %v1206 = vadd.f32 %v397, %v1205
        %v1207 = vpop.f32.mrb[0].mxu0
        %1208 = vmatprep.mubr.bf16.mxu0 %v726
        %1209 = vmatmul.mubr.bf16.gmra.mrb[0].mxu0 %v725
        %v1210 = vpop.f32.mrb[0].mxu0
        %v1211 = vadd.f32 %v397, %v1210
        %v1212 = vpop.f32.mrb[0].mxu0
        %v1213 = vpop.f32.mrb[0].mxu0
        %v1214 = vadd.f32 %v397, %v1213
        %v1215 = vpop.f32.mrb[0].mxu0
        %1216 = vmatprep.mubr.bf16.mxu0 %v731
        %1217 = vmatmul.mubr.bf16.gmra.mrb[0].mxu0 %v730
        %v1218 = vpop.f32.mrb[0].mxu0
        %v1219 = vadd.f32 %v397, %v1218
        %v1220 = vpop.f32.mrb[0].mxu0
        %v1221 = vpop.f32.mrb[0].mxu0
        %v1222 = vadd.f32 %v397, %v1221
        %v1223 = vpop.f32.mrb[0].mxu0
        %1224 = vdwg.mxu0
        %1225 = vmatprep.subr.bf16.mxu0 0
        %1226 = vmatpush1.bf16.msra.mxu0 %v959
        %1227 = vmatprep.subr.bf16.mxu0 0
        %1228 = vmatpush1.bf16.msra.mxu0 %v960
        %1229 = vmatprep.subr.bf16.mxu0 0
        %1230 = vmatpush1.bf16.msra.mxu0 %v961
        %1231 = vmatprep.subr.bf16.mxu0 0
        %1232 = vmatpush1.bf16.msra.mxu0 %v962
        %1233 = vmatprep.subr.bf16.mxu0 0
        %1234 = vmatpush1.bf16.msra.mxu0 %v963
        %1235 = vmatprep.subr.bf16.mxu0 0
        %1236 = vmatpush1.bf16.msra.mxu0 %v964
        %1237 = vmatprep.subr.bf16.mxu0 0
        %1238 = vmatpush1.bf16.msra.mxu0 %v965
        %1239 = vmatprep.subr.bf16.mxu0 0
        %1240 = vmatpush1.bf16.msra.mxu0 %v966
        %1241 = vmatprep.subr.bf16.mxu0 0
        %1242 = vmatpush1.bf16.msra.mxu0 %v967
        %1243 = vmatprep.subr.bf16.mxu0 0
        %1244 = vmatpush1.bf16.msra.mxu0 %v968
        %1245 = vmatprep.subr.bf16.mxu0 0
        %1246 = vmatpush1.bf16.msra.mxu0 %v969
        %1247 = vmatprep.subr.bf16.mxu0 0
        %1248 = vmatpush1.bf16.msra.mxu0 %v970
        %1249 = vmatprep.subr.bf16.mxu0 0
        %1250 = vmatpush1.bf16.msra.mxu0 %v971
        %1251 = vmatprep.subr.bf16.mxu0 0
        %1252 = vmatpush1.bf16.msra.mxu0 %v972
        %1253 = vmatprep.subr.bf16.mxu0 0
        %1254 = vmatpush1.bf16.msra.mxu0 %v973
        %1255 = vmatprep.subr.bf16.mxu0 0
        %1256 = vmatpush1.bf16.msra.mxu0 %v974
        %1257 = vmatprep.mubr.bf16.mxu0 %v658
        %1258 = vmatmul.mubr.bf16.gmra.mrb[0].mxu0 %v657
        %v1259 = vpop.f32.mrb[0].mxu0
        %v1260 = vadd.f32 %v1099, %v1259
        %v1261 = vpop.f32.mrb[0].mxu0
        %v1262 = vpop.f32.mrb[0].mxu0
        %v1263 = vadd.f32 %v1102, %v1262
        %v1264 = vpop.f32.mrb[0].mxu0
        %1265 = vmatprep.mubr.bf16.mxu0 %v663
        %1266 = vmatmul.mubr.bf16.gmra.mrb[0].mxu0 %v662
        %v1267 = vpop.f32.mrb[0].mxu0
        %v1268 = vadd.f32 %v1107, %v1267
        %v1269 = vpop.f32.mrb[0].mxu0
        %v1270 = vpop.f32.mrb[0].mxu0
        %v1271 = vadd.f32 %v1110, %v1270
        %v1272 = vpop.f32.mrb[0].mxu0
        %1273 = vmatprep.mubr.bf16.mxu0 %v668
        %1274 = vmatmul.mubr.bf16.gmra.mrb[0].mxu0 %v667
        %v1275 = vpop.f32.mrb[0].mxu0
        %v1276 = vadd.f32 %v1115, %v1275
        %v1277 = vpop.f32.mrb[0].mxu0
        %v1278 = vpop.f32.mrb[0].mxu0
        %v1279 = vadd.f32 %v1118, %v1278
        %v1280 = vpop.f32.mrb[0].mxu0
        %1281 = vmatprep.mubr.bf16.mxu0 %v673
        %1282 = vmatmul.mubr.bf16.gmra.mrb[0].mxu0 %v672
        %v1283 = vpop.f32.mrb[0].mxu0
        %v1284 = vadd.f32 %v1123, %v1283
        %v1285 = vpop.f32.mrb[0].mxu0
        %v1286 = vpop.f32.mrb[0].mxu0
        %v1287 = vadd.f32 %v1126, %v1286
        %v1288 = vpop.f32.mrb[0].mxu0
        %1289 = vmatprep.mubr.bf16.mxu0 %v678
        %1290 = vmatmul.mubr.bf16.gmra.mrb[0].mxu0 %v677
        %v1291 = vpop.f32.mrb[0].mxu0
        %v1292 = vadd.f32 %v1131, %v1291
        %v1293 = vpop.f32.mrb[0].mxu0
        %v1294 = vpop.f32.mrb[0].mxu0
        %v1295 = vadd.f32 %v1134, %v1294
        %v1296 = vpop.f32.mrb[0].mxu0
        %1297 = vmatprep.mubr.bf16.mxu0 %v683
        %1298 = vmatmul.mubr.bf16.gmra.mrb[0].mxu0 %v682
        %v1299 = vpop.f32.mrb[0].mxu0
        %v1300 = vadd.f32 %v1139, %v1299
        %v1301 = vpop.f32.mrb[0].mxu0
        %v1302 = vpop.f32.mrb[0].mxu0
        %v1303 = vadd.f32 %v1142, %v1302
        %v1304 = vpop.f32.mrb[0].mxu0
        %1305 = vmatprep.mubr.bf16.mxu0 %v688
        %1306 = vmatmul.mubr.bf16.gmra.mrb[0].mxu0 %v687
        %v1307 = vpop.f32.mrb[0].mxu0
        %v1308 = vadd.f32 %v1147, %v1307
        %v1309 = vpop.f32.mrb[0].mxu0
        %v1310 = vpop.f32.mrb[0].mxu0
        %v1311 = vadd.f32 %v1150, %v1310
        %v1312 = vpop.f32.mrb[0].mxu0
        %1313 = vmatprep.mubr.bf16.mxu0 %v693
        %1314 = vmatmul.mubr.bf16.gmra.mrb[0].mxu0 %v692
        %v1315 = vpop.f32.mrb[0].mxu0
        %v1316 = vadd.f32 %v1155, %v1315
        %v1317 = vpop.f32.mrb[0].mxu0
        %v1318 = vpop.f32.mrb[0].mxu0
        %v1319 = vadd.f32 %v1158, %v1318
        %v1320 = vpop.f32.mrb[0].mxu0
        %1321 = vmatprep.mubr.bf16.mxu0 %v698
        %1322 = vmatmul.mubr.bf16.gmra.mrb[0].mxu0 %v697
        %v1323 = vpop.f32.mrb[0].mxu0
        %v1324 = vadd.f32 %v1163, %v1323
        %v1325 = vpop.f32.mrb[0].mxu0
        %v1326 = vpop.f32.mrb[0].mxu0
        %v1327 = vadd.f32 %v1166, %v1326
        %v1328 = vpop.f32.mrb[0].mxu0
        %1329 = vmatprep.mubr.bf16.mxu0 %v703
        %1330 = vmatmul.mubr.bf16.gmra.mrb[0].mxu0 %v702
        %v1331 = vpop.f32.mrb[0].mxu0
        %v1332 = vadd.f32 %v1171, %v1331
        %v1333 = vpop.f32.mrb[0].mxu0
        %v1334 = vpop.f32.mrb[0].mxu0
        %v1335 = vadd.f32 %v1174, %v1334
        %v1336 = vpop.f32.mrb[0].mxu0
        %1337 = vmatprep.mubr.bf16.mxu0 %v708
        %1338 = vmatmul.mubr.bf16.gmra.mrb[0].mxu0 %v707
        %v1339 = vpop.f32.mrb[0].mxu0
        %v1340 = vadd.f32 %v1179, %v1339
        %v1341 = vpop.f32.mrb[0].mxu0
        %v1342 = vpop.f32.mrb[0].mxu0
        %v1343 = vadd.f32 %v1182, %v1342
        %v1344 = vpop.f32.mrb[0].mxu0
        %1345 = vmatprep.mubr.bf16.mxu0 %v713
        %1346 = vmatmul.mubr.bf16.gmra.mrb[0].mxu0 %v712
        %v1347 = vpop.f32.mrb[0].mxu0
        %v1348 = vadd.f32 %v1187, %v1347
        %v1349 = vpop.f32.mrb[0].mxu0
        %v1350 = vpop.f32.mrb[0].mxu0
        %v1351 = vadd.f32 %v1190, %v1350
        %v1352 = vpop.f32.mrb[0].mxu0
        %1353 = vmatprep.mubr.bf16.mxu0 %v718
        %1354 = vmatmul.mubr.bf16.gmra.mrb[0].mxu0 %v717
        %v1355 = vpop.f32.mrb[0].mxu0
        %v1356 = vadd.f32 %v1195, %v1355
        %v1357 = vpop.f32.mrb[0].mxu0
        %v1358 = vpop.f32.mrb[0].mxu0
        %v1359 = vadd.f32 %v1198, %v1358
        %v1360 = vpop.f32.mrb[0].mxu0
        %1361 = vmatprep.mubr.bf16.mxu0 %v723
        %1362 = vmatmul.mubr.bf16.gmra.mrb[0].mxu0 %v722
        %v1363 = vpop.f32.mrb[0].mxu0
        %v1364 = vadd.f32 %v1203, %v1363
        %v1365 = vpop.f32.mrb[0].mxu0
        %v1366 = vpop.f32.mrb[0].mxu0
        %v1367 = vadd.f32 %v1206, %v1366
        %v1368 = vpop.f32.mrb[0].mxu0
        %1369 = vmatprep.mubr.bf16.mxu0 %v728
        %1370 = vmatmul.mubr.bf16.gmra.mrb[0].mxu0 %v727
        %v1371 = vpop.f32.mrb[0].mxu0
        %v1372 = vadd.f32 %v1211, %v1371
        %v1373 = vpop.f32.mrb[0].mxu0
        %v1374 = vpop.f32.mrb[0].mxu0
        %v1375 = vadd.f32 %v1214, %v1374
        %v1376 = vpop.f32.mrb[0].mxu0
        %1377 = vmatprep.mubr.bf16.mxu0 %v733
        %1378 = vmatmul.mubr.bf16.gmra.mrb[0].mxu0 %v732
        %v1379 = vpop.f32.mrb[0].mxu0
        %v1380 = vadd.f32 %v1219, %v1379
        %v1381 = vpop.f32.mrb[0].mxu0
        %v1382 = vpop.f32.mrb[0].mxu0
        %v1383 = vadd.f32 %v1222, %v1382
        %v1384 = vpop.f32.mrb[0].mxu0
        %1385 = vdwg.mxu0
        %1386 = vmatprep.subr.bf16.mxu0 0
        %1387 = vmatpush1.bf16.msra.mxu0 %v975
        %1388 = vmatprep.subr.bf16.mxu0 0
        %1389 = vmatpush1.bf16.msra.mxu0 %v976
        %1390 = vmatprep.subr.bf16.mxu0 0
        %1391 = vmatpush1.bf16.msra.mxu0 %v977
        %1392 = vmatprep.subr.bf16.mxu0 0
        %1393 = vmatpush1.bf16.msra.mxu0 %v978
        %1394 = vmatprep.subr.bf16.mxu0 0
        %1395 = vmatpush1.bf16.msra.mxu0 0
        %1396 = vmatprep.subr.bf16.mxu0 0
        %1397 = vmatpush1.bf16.msra.mxu0 0
        %1398 = vmatprep.subr.bf16.mxu0 0
        %1399 = vmatpush1.bf16.msra.mxu0 0
        %1400 = vmatprep.subr.bf16.mxu0 0
        %1401 = vmatpush1.bf16.msra.mxu0 0
        %1402 = vmatprep.subr.bf16.mxu0 0
        %1403 = vmatpush1.bf16.msra.mxu0 0
        %1404 = vmatprep.subr.bf16.mxu0 0
        %1405 = vmatpush1.bf16.msra.mxu0 0
        %1406 = vmatprep.subr.bf16.mxu0 0
        %1407 = vmatpush1.bf16.msra.mxu0 0
        %1408 = vmatprep.subr.bf16.mxu0 0
        %1409 = vmatpush1.bf16.msra.mxu0 0
        %1410 = vmatprep.subr.bf16.mxu0 0
        %1411 = vmatpush1.bf16.msra.mxu0 0
        %1412 = vmatprep.subr.bf16.mxu0 0
        %1413 = vmatpush1.bf16.msra.mxu0 0
        %1414 = vmatprep.subr.bf16.mxu0 0
        %1415 = vmatpush1.bf16.msra.mxu0 0
        %1416 = vmatprep.subr.bf16.mxu0 0
        %1417 = vmatpush1.bf16.msra.mxu0 0
        %1418 = vmatprep.mubr.bf16.mxu0 0
        %1419 = vmatmul.mubr.bf16.gmra.mrb[0].mxu0 %v1017
        %v1420 = vpop.f32.mrb[0].mxu0
        %v1421 = vadd.f32 %v1260, %v1420
        %v1422 = vpop.f32.mrb[0].mxu0
        %v1423 = vpop.f32.mrb[0].mxu0
        %v1424 = vadd.f32 %v1263, %v1423
        %v1425 = vpop.f32.mrb[0].mxu0
        %1426 = vmatprep.mubr.bf16.mxu0 0
        %1427 = vmatmul.mubr.bf16.gmra.mrb[0].mxu0 %v1020
        %v1428 = vpop.f32.mrb[0].mxu0
        %v1429 = vadd.f32 %v1268, %v1428
        %v1430 = vpop.f32.mrb[0].mxu0
        %v1431 = vpop.f32.mrb[0].mxu0
        %v1432 = vadd.f32 %v1271, %v1431
        %v1433 = vpop.f32.mrb[0].mxu0
        %1434 = vmatprep.mubr.bf16.mxu0 0
        %1435 = vmatmul.mubr.bf16.gmra.mrb[0].mxu0 %v1023
        %v1436 = vpop.f32.mrb[0].mxu0
        %v1437 = vadd.f32 %v1276, %v1436
        %v1438 = vpop.f32.mrb[0].mxu0
        %v1439 = vpop.f32.mrb[0].mxu0
        %v1440 = vadd.f32 %v1279, %v1439
        %v1441 = vpop.f32.mrb[0].mxu0
        %1442 = vmatprep.mubr.bf16.mxu0 0
        %1443 = vmatmul.mubr.bf16.gmra.mrb[0].mxu0 %v1026
        %v1444 = vpop.f32.mrb[0].mxu0
        %v1445 = vadd.f32 %v1284, %v1444
        %v1446 = vpop.f32.mrb[0].mxu0
        %v1447 = vpop.f32.mrb[0].mxu0
        %v1448 = vadd.f32 %v1287, %v1447
        %v1449 = vpop.f32.mrb[0].mxu0
        %1450 = vmatprep.mubr.bf16.mxu0 0
        %1451 = vmatmul.mubr.bf16.gmra.mrb[0].mxu0 %v1029
        %v1452 = vpop.f32.mrb[0].mxu0
        %v1453 = vadd.f32 %v1292, %v1452
        %v1454 = vpop.f32.mrb[0].mxu0
        %v1455 = vpop.f32.mrb[0].mxu0
        %v1456 = vadd.f32 %v1295, %v1455
        %v1457 = vpop.f32.mrb[0].mxu0
        %1458 = vmatprep.mubr.bf16.mxu0 0
        %1459 = vmatmul.mubr.bf16.gmra.mrb[0].mxu0 %v1032
        %v1460 = vpop.f32.mrb[0].mxu0
        %v1461 = vadd.f32 %v1300, %v1460
        %v1462 = vpop.f32.mrb[0].mxu0
        %v1463 = vpop.f32.mrb[0].mxu0
        %v1464 = vadd.f32 %v1303, %v1463
        %v1465 = vpop.f32.mrb[0].mxu0
        %1466 = vmatprep.mubr.bf16.mxu0 0
        %1467 = vmatmul.mubr.bf16.gmra.mrb[0].mxu0 %v1035
        %v1468 = vpop.f32.mrb[0].mxu0
        %v1469 = vadd.f32 %v1308, %v1468
        %v1470 = vpop.f32.mrb[0].mxu0
        %v1471 = vpop.f32.mrb[0].mxu0
        %v1472 = vadd.f32 %v1311, %v1471
        %v1473 = vpop.f32.mrb[0].mxu0
        %1474 = vmatprep.mubr.bf16.mxu0 0
        %1475 = vmatmul.mubr.bf16.gmra.mrb[0].mxu0 %v1038
        %v1476 = vpop.f32.mrb[0].mxu0
        %v1477 = vadd.f32 %v1316, %v1476
        %v1478 = vpop.f32.mrb[0].mxu0
        %v1479 = vpop.f32.mrb[0].mxu0
        %v1480 = vadd.f32 %v1319, %v1479
        %v1481 = vpop.f32.mrb[0].mxu0
        %1482 = vmatprep.mubr.bf16.mxu0 0
        %1483 = vmatmul.mubr.bf16.gmra.mrb[0].mxu0 %v1041
        %v1484 = vpop.f32.mrb[0].mxu0
        %v1485 = vadd.f32 %v1324, %v1484
        %v1486 = vpop.f32.mrb[0].mxu0
        %v1487 = vpop.f32.mrb[0].mxu0
        %v1488 = vadd.f32 %v1327, %v1487
        %v1489 = vpop.f32.mrb[0].mxu0
        %1490 = vmatprep.mubr.bf16.mxu0 0
        %1491 = vmatmul.mubr.bf16.gmra.mrb[0].mxu0 %v1044
        %v1492 = vpop.f32.mrb[0].mxu0
        %v1493 = vadd.f32 %v1332, %v1492
        %v1494 = vpop.f32.mrb[0].mxu0
        %v1495 = vpop.f32.mrb[0].mxu0
        %v1496 = vadd.f32 %v1335, %v1495
        %v1497 = vpop.f32.mrb[0].mxu0
        %1498 = vmatprep.mubr.bf16.mxu0 0
        %1499 = vmatmul.mubr.bf16.gmra.mrb[0].mxu0 %v1047
        %v1500 = vpop.f32.mrb[0].mxu0
        %v1501 = vadd.f32 %v1340, %v1500
        %v1502 = vpop.f32.mrb[0].mxu0
        %v1503 = vpop.f32.mrb[0].mxu0
        %v1504 = vadd.f32 %v1343, %v1503
        %v1505 = vpop.f32.mrb[0].mxu0
        %1506 = vmatprep.mubr.bf16.mxu0 0
        %1507 = vmatmul.mubr.bf16.gmra.mrb[0].mxu0 %v1050
        %v1508 = vpop.f32.mrb[0].mxu0
        %v1509 = vadd.f32 %v1348, %v1508
        %v1510 = vpop.f32.mrb[0].mxu0
        %v1511 = vpop.f32.mrb[0].mxu0
        %v1512 = vadd.f32 %v1351, %v1511
        %v1513 = vpop.f32.mrb[0].mxu0
        %1514 = vmatprep.mubr.bf16.mxu0 0
        %1515 = vmatmul.mubr.bf16.gmra.mrb[0].mxu0 %v1053
        %v1516 = vpop.f32.mrb[0].mxu0
        %v1517 = vadd.f32 %v1356, %v1516
        %v1518 = vpop.f32.mrb[0].mxu0
        %v1519 = vpop.f32.mrb[0].mxu0
        %v1520 = vadd.f32 %v1359, %v1519
        %v1521 = vpop.f32.mrb[0].mxu0
        %1522 = vmatprep.mubr.bf16.mxu0 0
        %1523 = vmatmul.mubr.bf16.gmra.mrb[0].mxu0 %v1056
        %v1524 = vpop.f32.mrb[0].mxu0
        %v1525 = vadd.f32 %v1364, %v1524
        %v1526 = vpop.f32.mrb[0].mxu0
        %v1527 = vpop.f32.mrb[0].mxu0
        %v1528 = vadd.f32 %v1367, %v1527
        %v1529 = vpop.f32.mrb[0].mxu0
        %1530 = vmatprep.mubr.bf16.mxu0 0
        %1531 = vmatmul.mubr.bf16.gmra.mrb[0].mxu0 %v1059
        %v1532 = vpop.f32.mrb[0].mxu0
        %v1533 = vadd.f32 %v1372, %v1532
        %v1534 = vpop.f32.mrb[0].mxu0
        %v1535 = vpop.f32.mrb[0].mxu0
        %v1536 = vadd.f32 %v1375, %v1535
        %v1537 = vpop.f32.mrb[0].mxu0
        %1538 = vmatprep.mubr.bf16.mxu0 0
        %1539 = vmatmul.mubr.bf16.gmra.mrb[0].mxu0 %v1062
        %v1540 = vpop.f32.mrb[0].mxu0
        %v1541 = vadd.f32 %v1380, %v1540
        %v1542 = vpop.f32.mrb[0].mxu0
        %v1543 = vpop.f32.mrb[0].mxu0
        %v1544 = vadd.f32 %v1383, %v1543
        %v1545 = vpop.f32.mrb[0].mxu0
        %1546 = vdwg.mxu0
        %v1547 = vmax.f32 %v1421, 0.0
        %v1548 = vmax.f32 %v1424, 0.0
        %v1549 = vmax.f32 %v1429, 0.0
        %v1550 = vmax.f32 %v1432, 0.0
        %v1551 = vmax.f32 %v1437, 0.0
        %v1552 = vmax.f32 %v1440, 0.0
        %v1553 = vmax.f32 %v1445, 0.0
        %v1554 = vmax.f32 %v1448, 0.0
        %v1555 = vmax.f32 %v1453, 0.0
        %v1556 = vmax.f32 %v1456, 0.0
        %v1557 = vmax.f32 %v1461, 0.0
        %v1558 = vmax.f32 %v1464, 0.0
        %v1559 = vmax.f32 %v1469, 0.0
        %v1560 = vmax.f32 %v1472, 0.0
        %v1561 = vmax.f32 %v1477, 0.0
        %v1562 = vmax.f32 %v1480, 0.0
        %v1563 = vmax.f32 %v1485, 0.0
        %v1564 = vmax.f32 %v1488, 0.0
        %v1565 = vmax.f32 %v1493, 0.0
        %v1566 = vmax.f32 %v1496, 0.0
        %v1567 = vmax.f32 %v1501, 0.0
        %v1568 = vmax.f32 %v1504, 0.0
        %v1569 = vmax.f32 %v1509, 0.0
        %v1570 = vmax.f32 %v1512, 0.0
        %v1571 = vmax.f32 %v1517, 0.0
        %v1572 = vmax.f32 %v1520, 0.0
        %v1573 = vmax.f32 %v1525, 0.0
        %v1574 = vmax.f32 %v1528, 0.0
        %v1575 = vmax.f32 %v1533, 0.0
        %v1576 = vmax.f32 %v1536, 0.0
        %v1577 = vmax.f32 %v1541, 0.0
        %v1578 = vmax.f32 %v1544, 0.0
        %v1579 = vmin.f32 %v1547, 6.0
        %v1580 = vmin.f32 %v1548, 6.0
        %v1581 = vmin.f32 %v1549, 6.0
        %v1582 = vmin.f32 %v1550, 6.0
        %v1583 = vmin.f32 %v1551, 6.0
        %v1584 = vmin.f32 %v1552, 6.0
        %v1585 = vmin.f32 %v1553, 6.0
        %v1586 = vmin.f32 %v1554, 6.0
        %v1587 = vmin.f32 %v1555, 6.0
        %v1588 = vmin.f32 %v1556, 6.0
        %v1589 = vmin.f32 %v1557, 6.0
        %v1590 = vmin.f32 %v1558, 6.0
        %v1591 = vmin.f32 %v1559, 6.0
        %v1592 = vmin.f32 %v1560, 6.0
        %v1593 = vmin.f32 %v1561, 6.0
        %v1594 = vmin.f32 %v1562, 6.0
        %v1595 = vmin.f32 %v1563, 6.0
        %v1596 = vmin.f32 %v1564, 6.0
        %v1597 = vmin.f32 %v1565, 6.0
        %v1598 = vmin.f32 %v1566, 6.0
        %v1599 = vmin.f32 %v1567, 6.0
        %v1600 = vmin.f32 %v1568, 6.0
        %v1601 = vmin.f32 %v1569, 6.0
        %v1602 = vmin.f32 %v1570, 6.0
        %v1603 = vmin.f32 %v1571, 6.0
        %v1604 = vmin.f32 %v1572, 6.0
        %v1605 = vmin.f32 %v1573, 6.0
        %v1606 = vmin.f32 %v1574, 6.0
        %v1607 = vmin.f32 %v1575, 6.0
        %v1608 = vmin.f32 %v1576, 6.0
        %v1609 = vmin.f32 %v1577, 6.0
        %v1610 = vmin.f32 %v1578, 6.0
        %v1611 = vpack.c.bf16 %v1580, %v1579
        %v1612 = vpack.c.bf16 %v1582, %v1581
        %v1613 = vpack.c.bf16 %v1584, %v1583
        %v1614 = vpack.c.bf16 %v1586, %v1585
        %v1615 = vpack.c.bf16 %v1588, %v1587
        %v1616 = vpack.c.bf16 %v1590, %v1589
        %v1617 = vpack.c.bf16 %v1592, %v1591
        %v1618 = vpack.c.bf16 %v1594, %v1593
        %v1619 = vpack.c.bf16 %v1596, %v1595
        %v1620 = vpack.c.bf16 %v1598, %v1597
        %v1621 = vpack.c.bf16 %v1600, %v1599
        %v1622 = vpack.c.bf16 %v1602, %v1601
        %v1623 = vpack.c.bf16 %v1604, %v1603
        %v1624 = vpack.c.bf16 %v1606, %v1605
        %v1625 = vpack.c.bf16 %v1608, %v1607
        %v1626 = vpack.c.bf16 %v1610, %v1609
        %1627 = vst.msk [vmem:[#allocation2] sm:$0xff] %vm1015, %v1611
        %1628 = vst.msk [vmem:[#allocation2 + $0x8] sm:$0xff] %vm1015, %v1612
        %1629 = vst.msk [vmem:[#allocation2 + $0x10] sm:$0xff] %vm1015, %v1613
        %1630 = vst.msk [vmem:[#allocation2 + $0x18] sm:$0xff] %vm1015, %v1614
        %1631 = vst.msk [vmem:[#allocation2 + $0x20] sm:$0xff] %vm1015, %v1615
        %1632 = vst.msk [vmem:[#allocation2 + $0x28] sm:$0xff] %vm1015, %v1616
        %1633 = vst.msk [vmem:[#allocation2 + $0x30] sm:$0xff] %vm1015, %v1617
        %1634 = vst.msk [vmem:[#allocation2 + $0x38] sm:$0xff] %vm1015, %v1618
        %1635 = vst.msk [vmem:[#allocation2 + $0x40] sm:$0xff] %vm1015, %v1619
        %1636 = vst.msk [vmem:[#allocation2 + $0x48] sm:$0xff] %vm1015, %v1620
        %1637 = vst.msk [vmem:[#allocation2 + $0x50] sm:$0xff] %vm1015, %v1621
        %1638 = vst.msk [vmem:[#allocation2 + $0x58] sm:$0xff] %vm1015, %v1622
        %1639 = vst.msk [vmem:[#allocation2 + $0x60] sm:$0xff] %vm1015, %v1623
        %1640 = vst.msk [vmem:[#allocation2 + $0x68] sm:$0xff] %vm1015, %v1624
        %1641 = vst.msk [vmem:[#allocation2 + $0x70] sm:$0xff] %vm1015, %v1625
        %1642 = vst.msk [vmem:[#allocation2 + $0x78] sm:$0xff] %vm1015, %v1626
        %v1643 = vld [vmem:[#allocation2] sm:$0x1]
        %v1644 = vld [vmem:[#allocation2 + $0x8] sm:$0x1]
        %v1645 = vld [vmem:[#allocation2 + $0x10] sm:$0x1]
        %v1646 = vld [vmem:[#allocation2 + $0x18] sm:$0x1]
        %v1647 = vld [vmem:[#allocation2 + $0x20] sm:$0x1]
        %v1648 = vld [vmem:[#allocation2 + $0x28] sm:$0x1]
        %v1649 = vld [vmem:[#allocation2 + $0x30] sm:$0x1]
        %v1650 = vld [vmem:[#allocation2 + $0x38] sm:$0x1]
        %v1651 = vld [vmem:[#allocation2 + $0x40] sm:$0x1]
        %v1652 = vld [vmem:[#allocation2 + $0x48] sm:$0x1]
        %v1653 = vld [vmem:[#allocation2 + $0x50] sm:$0x1]
        %v1654 = vld [vmem:[#allocation2 + $0x58] sm:$0x1]
        %v1655 = vld [vmem:[#allocation2 + $0x60] sm:$0x1]
        %v1656 = vld [vmem:[#allocation2 + $0x68] sm:$0x1]
        %v1657 = vld [vmem:[#allocation2 + $0x70] sm:$0x1]
        %v1658 = vld [vmem:[#allocation2 + $0x78] sm:$0x1]
        %v1675 = vunpack.c.l.b16 %v1643
        %v1676 = vunpack.c.l.b16 %v1644
        %v1677 = vunpack.c.l.b16 %v1645
        %v1678 = vunpack.c.l.b16 %v1646
        %v1679 = vunpack.c.l.b16 %v1647
        %v1680 = vunpack.c.l.b16 %v1648
        %v1681 = vunpack.c.l.b16 %v1649
        %v1682 = vunpack.c.l.b16 %v1650
        %v1683 = vunpack.c.l.b16 %v1651
        %v1684 = vunpack.c.l.b16 %v1652
        %v1685 = vunpack.c.l.b16 %v1653
        %v1686 = vunpack.c.l.b16 %v1654
        %v1687 = vunpack.c.l.b16 %v1655
        %v1688 = vunpack.c.l.b16 %v1656
        %v1689 = vunpack.c.l.b16 %v1657
        %v1690 = vunpack.c.l.b16 %v1658
        %v1691 = vrot.slane %v1676, 7
        %vm1692 = vcmask 1041409
        %v1693 = vsel %vm1692, %v1691, %v1675
        %v1694 = vrot.slane %v1677, 6
        %vm1695 = vcmask 1042434
        %v1696 = vsel %vm1695, %v1694, %v1693
        %v1697 = vrot.slane %v1678, 5
        %vm1698 = vcmask 1043459
        %v1699 = vsel %vm1698, %v1697, %v1696
        %v1700 = vrot.slane %v1679, 4
        %vm1701 = vcmask 1044484
        %v1702 = vsel %vm1701, %v1700, %v1699
        %v1703 = vrot.slane %v1680, 3
        %vm1704 = vcmask 1045509
        %v1705 = vsel %vm1704, %v1703, %v1702
        %v1706 = vrot.slane %v1681, 2
        %vm1707 = vcmask 1046534
        %v1708 = vsel %vm1707, %v1706, %v1705
        %v1709 = vrot.slane %v1682, 1
        %vm1710 = vcmask 1047559
        %v1711 = vsel %vm1710, %v1709, %v1708
        %v1712 = vrot.slane %v1684, 7
        %v1713 = vsel %vm1692, %v1712, %v1683
        %v1714 = vrot.slane %v1685, 6
        %v1715 = vsel %vm1695, %v1714, %v1713
        %v1716 = vrot.slane %v1686, 5
        %v1717 = vsel %vm1698, %v1716, %v1715
        %v1718 = vrot.slane %v1687, 4
        %v1719 = vsel %vm1701, %v1718, %v1717
        %v1720 = vrot.slane %v1688, 3
        %v1721 = vsel %vm1704, %v1720, %v1719
        %v1722 = vrot.slane %v1689, 2
        %v1723 = vsel %vm1707, %v1722, %v1721
        %v1724 = vrot.slane %v1690, 1
        %v1725 = vsel %vm1710, %v1724, %v1723
        %v1726 = vpack.c.b16 %v1725, %v1711
        %1728 = vst.msk [vmem:[#allocation3] sm:$0xff] %vm1015, %v1726
        %v1729 = vld [vmem:[#allocation2] sm:$0x1]
        %v1730 = vld [vmem:[#allocation2 + $0x8] sm:$0x1]
        %v1731 = vld [vmem:[#allocation2 + $0x10] sm:$0x1]
        %v1732 = vld [vmem:[#allocation2 + $0x18] sm:$0x1]
        %v1733 = vld [vmem:[#allocation2 + $0x20] sm:$0x1]
        %v1734 = vld [vmem:[#allocation2 + $0x28] sm:$0x1]
        %v1735 = vld [vmem:[#allocation2 + $0x30] sm:$0x1]
        %v1736 = vld [vmem:[#allocation2 + $0x38] sm:$0x1]
        %v1737 = vld [vmem:[#allocation2 + $0x40] sm:$0x1]
        %v1738 = vld [vmem:[#allocation2 + $0x48] sm:$0x1]
        %v1739 = vld [vmem:[#allocation2 + $0x50] sm:$0x1]
        %v1740 = vld [vmem:[#allocation2 + $0x58] sm:$0x1]
        %v1741 = vld [vmem:[#allocation2 + $0x60] sm:$0x1]
        %v1742 = vld [vmem:[#allocation2 + $0x68] sm:$0x1]
        %v1743 = vld [vmem:[#allocation2 + $0x70] sm:$0x1]
        %v1744 = vld [vmem:[#allocation2 + $0x78] sm:$0x1]
        %v1761 = vunpack.c.l.b16 %v1729
        %v1762 = vunpack.c.l.b16 %v1730
        %v1763 = vunpack.c.l.b16 %v1731
        %v1764 = vunpack.c.l.b16 %v1732
        %v1765 = vunpack.c.l.b16 %v1733
        %v1766 = vunpack.c.l.b16 %v1734
        %v1767 = vunpack.c.l.b16 %v1735
        %v1768 = vunpack.c.l.b16 %v1736
        %v1769 = vunpack.c.l.b16 %v1737
        %v1770 = vunpack.c.l.b16 %v1738
        %v1771 = vunpack.c.l.b16 %v1739
        %v1772 = vunpack.c.l.b16 %v1740
        %v1773 = vunpack.c.l.b16 %v1741
        %v1774 = vunpack.c.l.b16 %v1742
        %v1775 = vunpack.c.l.b16 %v1743
        %v1776 = vunpack.c.l.b16 %v1744
        %v1777 = vrot.slane %v1761, 1
        %v1778 = vsel %vm1692, %v1762, %v1777
        %v1779 = vrot.slane %v1763, 7
        %v1780 = vsel %vm1695, %v1779, %v1778
        %v1781 = vrot.slane %v1764, 6
        %v1782 = vsel %vm1698, %v1781, %v1780
        %v1783 = vrot.slane %v1765, 5
        %v1784 = vsel %vm1701, %v1783, %v1782
        %v1785 = vrot.slane %v1766, 4
        %v1786 = vsel %vm1704, %v1785, %v1784
        %v1787 = vrot.slane %v1767, 3
        %v1788 = vsel %vm1707, %v1787, %v1786
        %v1789 = vrot.slane %v1768, 2
        %v1790 = vsel %vm1710, %v1789, %v1788
        %v1791 = vrot.slane %v1769, 1
        %v1792 = vsel %vm1692, %v1770, %v1791
        %v1793 = vrot.slane %v1771, 7
        %v1794 = vsel %vm1695, %v1793, %v1792
        %v1795 = vrot.slane %v1772, 6
        %v1796 = vsel %vm1698, %v1795, %v1794
        %v1797 = vrot.slane %v1773, 5
        %v1798 = vsel %vm1701, %v1797, %v1796
        %v1799 = vrot.slane %v1774, 4
        %v1800 = vsel %vm1704, %v1799, %v1798
        %v1801 = vrot.slane %v1775, 3
        %v1802 = vsel %vm1707, %v1801, %v1800
        %v1803 = vrot.slane %v1776, 2
        %v1804 = vsel %vm1710, %v1803, %v1802
        %v1805 = vpack.c.b16 %v1804, %v1790
        %1806 = vrot.lane.b32.xlu0 %v1805, 64
        %v1807 = vpop.permute.xlu0 %1806
        %vm1809 = vcmask 1048064
        %1810 = vst.msk [vmem:[#allocation3] sm:$0xff] %vm1809, %v1807
        %v1811 = vld [vmem:[#allocation2] sm:$0x2]
        %v1812 = vld [vmem:[#allocation2 + $0x8] sm:$0x2]
        %v1813 = vld [vmem:[#allocation2 + $0x10] sm:$0x2]
        %v1814 = vld [vmem:[#allocation2 + $0x18] sm:$0x2]
        %v1815 = vld [vmem:[#allocation2 + $0x20] sm:$0x2]
        %v1816 = vld [vmem:[#allocation2 + $0x28] sm:$0x2]
        %v1817 = vld [vmem:[#allocation2 + $0x30] sm:$0x2]
        %v1818 = vld [vmem:[#allocation2 + $0x38] sm:$0x2]
        %v1819 = vld [vmem:[#allocation2 + $0x40] sm:$0x2]
        %v1820 = vld [vmem:[#allocation2 + $0x48] sm:$0x2]
        %v1821 = vld [vmem:[#allocation2 + $0x50] sm:$0x2]
        %v1822 = vld [vmem:[#allocation2 + $0x58] sm:$0x2]
        %v1823 = vld [vmem:[#allocation2 + $0x60] sm:$0x2]
        %v1824 = vld [vmem:[#allocation2 + $0x68] sm:$0x2]
        %v1825 = vld [vmem:[#allocation2 + $0x70] sm:$0x2]
        %v1826 = vld [vmem:[#allocation2 + $0x78] sm:$0x2]
        %v1843 = vunpack.c.l.b16 %v1811
        %v1844 = vunpack.c.l.b16 %v1812
        %v1845 = vunpack.c.l.b16 %v1813
        %v1846 = vunpack.c.l.b16 %v1814
        %v1847 = vunpack.c.l.b16 %v1815
        %v1848 = vunpack.c.l.b16 %v1816
        %v1849 = vunpack.c.l.b16 %v1817
        %v1850 = vunpack.c.l.b16 %v1818
        %v1851 = vunpack.c.l.b16 %v1819
        %v1852 = vunpack.c.l.b16 %v1820
        %v1853 = vunpack.c.l.b16 %v1821
        %v1854 = vunpack.c.l.b16 %v1822
        %v1855 = vunpack.c.l.b16 %v1823
        %v1856 = vunpack.c.l.b16 %v1824
        %v1857 = vunpack.c.l.b16 %v1825
        %v1858 = vunpack.c.l.b16 %v1826
        %v1859 = vrot.slane %v1843, 2
        %v1860 = vrot.slane %v1844, 1
        %v1861 = vsel %vm1692, %v1860, %v1859
        %v1862 = vsel %vm1695, %v1845, %v1861
        %v1863 = vrot.slane %v1846, 7
        %v1864 = vsel %vm1698, %v1863, %v1862
        %v1865 = vrot.slane %v1847, 6
        %v1866 = vsel %vm1701, %v1865, %v1864
        %v1867 = vrot.slane %v1848, 5
        %v1868 = vsel %vm1704, %v1867, %v1866
        %v1869 = vrot.slane %v1849, 4
        %v1870 = vsel %vm1707, %v1869, %v1868
        %v1871 = vrot.slane %v1850, 3
        %v1872 = vsel %vm1710, %v1871, %v1870
        %v1873 = vrot.slane %v1851, 2
        %v1874 = vrot.slane %v1852, 1
        %v1875 = vsel %vm1692, %v1874, %v1873
        %v1876 = vsel %vm1695, %v1853, %v1875
        %v1877 = vrot.slane %v1854, 7
        %v1878 = vsel %vm1698, %v1877, %v1876
        %v1879 = vrot.slane %v1855, 6
        %v1880 = vsel %vm1701, %v1879, %v1878
        %v1881 = vrot.slane %v1856, 5
        %v1882 = vsel %vm1704, %v1881, %v1880
        %v1883 = vrot.slane %v1857, 4
        %v1884 = vsel %vm1707, %v1883, %v1882
        %v1885 = vrot.slane %v1858, 3
        %v1886 = vsel %vm1710, %v1885, %v1884
        %v1887 = vpack.c.b16 %v1886, %v1872
        %1889 = vst.msk [vmem:[#allocation3 + $0x8] sm:$0xff] %vm1015, %v1887
        %v1890 = vld [vmem:[#allocation2] sm:$0x2]
        %v1891 = vld [vmem:[#allocation2 + $0x8] sm:$0x2]
        %v1892 = vld [vmem:[#allocation2 + $0x10] sm:$0x2]
        %v1893 = vld [vmem:[#allocation2 + $0x18] sm:$0x2]
        %v1894 = vld [vmem:[#allocation2 + $0x20] sm:$0x2]
        %v1895 = vld [vmem:[#allocation2 + $0x28] sm:$0x2]
        %v1896 = vld [vmem:[#allocation2 + $0x30] sm:$0x2]
        %v1897 = vld [vmem:[#allocation2 + $0x38] sm:$0x2]
        %v1898 = vld [vmem:[#allocation2 + $0x40] sm:$0x2]
        %v1899 = vld [vmem:[#allocation2 + $0x48] sm:$0x2]
        %v1900 = vld [vmem:[#allocation2 + $0x50] sm:$0x2]
        %v1901 = vld [vmem:[#allocation2 + $0x58] sm:$0x2]
        %v1902 = vld [vmem:[#allocation2 + $0x60] sm:$0x2]
        %v1903 = vld [vmem:[#allocation2 + $0x68] sm:$0x2]
        %v1904 = vld [vmem:[#allocation2 + $0x70] sm:$0x2]
        %v1905 = vld [vmem:[#allocation2 + $0x78] sm:$0x2]
        %v1922 = vunpack.c.l.b16 %v1890
        %v1923 = vunpack.c.l.b16 %v1891
        %v1924 = vunpack.c.l.b16 %v1892
        %v1925 = vunpack.c.l.b16 %v1893
        %v1926 = vunpack.c.l.b16 %v1894
        %v1927 = vunpack.c.l.b16 %v1895
        %v1928 = vunpack.c.l.b16 %v1896
        %v1929 = vunpack.c.l.b16 %v1897
        %v1930 = vunpack.c.l.b16 %v1898
        %v1931 = vunpack.c.l.b16 %v1899
        %v1932 = vunpack.c.l.b16 %v1900
        %v1933 = vunpack.c.l.b16 %v1901
        %v1934 = vunpack.c.l.b16 %v1902
        %v1935 = vunpack.c.l.b16 %v1903
        %v1936 = vunpack.c.l.b16 %v1904
        %v1937 = vunpack.c.l.b16 %v1905
        %v1938 = vrot.slane %v1922, 3
        %v1939 = vrot.slane %v1923, 2
        %v1940 = vsel %vm1692, %v1939, %v1938
        %v1941 = vrot.slane %v1924, 1
        %v1942 = vsel %vm1695, %v1941, %v1940
        %v1943 = vsel %vm1698, %v1925, %v1942
        %v1944 = vrot.slane %v1926, 7
        %v1945 = vsel %vm1701, %v1944, %v1943
        %v1946 = vrot.slane %v1927, 6
        %v1947 = vsel %vm1704, %v1946, %v1945
        %v1948 = vrot.slane %v1928, 5
        %v1949 = vsel %vm1707, %v1948, %v1947
        %v1950 = vrot.slane %v1929, 4
        %v1951 = vsel %vm1710, %v1950, %v1949
        %v1952 = vrot.slane %v1930, 3
        %v1953 = vrot.slane %v1931, 2
        %v1954 = vsel %vm1692, %v1953, %v1952
        %v1955 = vrot.slane %v1932, 1
        %v1956 = vsel %vm1695, %v1955, %v1954
        %v1957 = vsel %vm1698, %v1933, %v1956
        %v1958 = vrot.slane %v1934, 7
        %v1959 = vsel %vm1701, %v1958, %v1957
        %v1960 = vrot.slane %v1935, 6
        %v1961 = vsel %vm1704, %v1960, %v1959
        %v1962 = vrot.slane %v1936, 5
        %v1963 = vsel %vm1707, %v1962, %v1961
        %v1964 = vrot.slane %v1937, 4
        %v1965 = vsel %vm1710, %v1964, %v1963
        %v1966 = vpack.c.b16 %v1965, %v1951
        %1967 = vrot.lane.b32.xlu0 %v1966, 64
        %v1968 = vpop.permute.xlu0 %1967
        %1970 = vst.msk [vmem:[#allocation3 + $0x8] sm:$0xff] %vm1809, %v1968
        %v1971 = vld [vmem:[#allocation2] sm:$0x4]
        %v1972 = vld [vmem:[#allocation2 + $0x8] sm:$0x4]
        %v1973 = vld [vmem:[#allocation2 + $0x10] sm:$0x4]
        %v1974 = vld [vmem:[#allocation2 + $0x18] sm:$0x4]
        %v1975 = vld [vmem:[#allocation2 + $0x20] sm:$0x4]
        %v1976 = vld [vmem:[#allocation2 + $0x28] sm:$0x4]
        %v1977 = vld [vmem:[#allocation2 + $0x30] sm:$0x4]
        %v1978 = vld [vmem:[#allocation2 + $0x38] sm:$0x4]
        %v1979 = vld [vmem:[#allocation2 + $0x40] sm:$0x4]
        %v1980 = vld [vmem:[#allocation2 + $0x48] sm:$0x4]
        %v1981 = vld [vmem:[#allocation2 + $0x50] sm:$0x4]
        %v1982 = vld [vmem:[#allocation2 + $0x58] sm:$0x4]
        %v1983 = vld [vmem:[#allocation2 + $0x60] sm:$0x4]
        %v1984 = vld [vmem:[#allocation2 + $0x68] sm:$0x4]
        %v1985 = vld [vmem:[#allocation2 + $0x70] sm:$0x4]
        %v1986 = vld [vmem:[#allocation2 + $0x78] sm:$0x4]
        %v2003 = vunpack.c.l.b16 %v1971
        %v2004 = vunpack.c.l.b16 %v1972
        %v2005 = vunpack.c.l.b16 %v1973
        %v2006 = vunpack.c.l.b16 %v1974
        %v2007 = vunpack.c.l.b16 %v1975
        %v2008 = vunpack.c.l.b16 %v1976
        %v2009 = vunpack.c.l.b16 %v1977
        %v2010 = vunpack.c.l.b16 %v1978
        %v2011 = vunpack.c.l.b16 %v1979
        %v2012 = vunpack.c.l.b16 %v1980
        %v2013 = vunpack.c.l.b16 %v1981
        %v2014 = vunpack.c.l.b16 %v1982
        %v2015 = vunpack.c.l.b16 %v1983
        %v2016 = vunpack.c.l.b16 %v1984
        %v2017 = vunpack.c.l.b16 %v1985
        %v2018 = vunpack.c.l.b16 %v1986
        %v2019 = vrot.slane %v2003, 4
        %v2020 = vrot.slane %v2004, 3
        %v2021 = vsel %vm1692, %v2020, %v2019
        %v2022 = vrot.slane %v2005, 2
        %v2023 = vsel %vm1695, %v2022, %v2021
        %v2024 = vrot.slane %v2006, 1
        %v2025 = vsel %vm1698, %v2024, %v2023
        %v2026 = vsel %vm1701, %v2007, %v2025
        %v2027 = vrot.slane %v2008, 7
        %v2028 = vsel %vm1704, %v2027, %v2026
        %v2029 = vrot.slane %v2009, 6
        %v2030 = vsel %vm1707, %v2029, %v2028
        %v2031 = vrot.slane %v2010, 5
        %v2032 = vsel %vm1710, %v2031, %v2030
        %v2033 = vrot.slane %v2011, 4
        %v2034 = vrot.slane %v2012, 3
        %v2035 = vsel %vm1692, %v2034, %v2033
        %v2036 = vrot.slane %v2013, 2
        %v2037 = vsel %vm1695, %v2036, %v2035
        %v2038 = vrot.slane %v2014, 1
        %v2039 = vsel %vm1698, %v2038, %v2037
        %v2040 = vsel %vm1701, %v2015, %v2039
        %v2041 = vrot.slane %v2016, 7
        %v2042 = vsel %vm1704, %v2041, %v2040
        %v2043 = vrot.slane %v2017, 6
        %v2044 = vsel %vm1707, %v2043, %v2042
        %v2045 = vrot.slane %v2018, 5
        %v2046 = vsel %vm1710, %v2045, %v2044
        %v2047 = vpack.c.b16 %v2046, %v2032
        %2049 = vst.msk [vmem:[#allocation3 + $0x10] sm:$0xff] %vm1015, %v2047
        %v2050 = vld [vmem:[#allocation2] sm:$0x4]
        %v2051 = vld [vmem:[#allocation2 + $0x8] sm:$0x4]
        %v2052 = vld [vmem:[#allocation2 + $0x10] sm:$0x4]
        %v2053 = vld [vmem:[#allocation2 + $0x18] sm:$0x4]
        %v2054 = vld [vmem:[#allocation2 + $0x20] sm:$0x4]
        %v2055 = vld [vmem:[#allocation2 + $0x28] sm:$0x4]
        %v2056 = vld [vmem:[#allocation2 + $0x30] sm:$0x4]
        %v2057 = vld [vmem:[#allocation2 + $0x38] sm:$0x4]
        %v2058 = vld [vmem:[#allocation2 + $0x40] sm:$0x4]
        %v2059 = vld [vmem:[#allocation2 + $0x48] sm:$0x4]
        %v2060 = vld [vmem:[#allocation2 + $0x50] sm:$0x4]
        %v2061 = vld [vmem:[#allocation2 + $0x58] sm:$0x4]
        %v2062 = vld [vmem:[#allocation2 + $0x60] sm:$0x4]
        %v2063 = vld [vmem:[#allocation2 + $0x68] sm:$0x4]
        %v2064 = vld [vmem:[#allocation2 + $0x70] sm:$0x4]
        %v2065 = vld [vmem:[#allocation2 + $0x78] sm:$0x4]
        %v2082 = vunpack.c.l.b16 %v2050
        %v2083 = vunpack.c.l.b16 %v2051
        %v2084 = vunpack.c.l.b16 %v2052
        %v2085 = vunpack.c.l.b16 %v2053
        %v2086 = vunpack.c.l.b16 %v2054
        %v2087 = vunpack.c.l.b16 %v2055
        %v2088 = vunpack.c.l.b16 %v2056
        %v2089 = vunpack.c.l.b16 %v2057
        %v2090 = vunpack.c.l.b16 %v2058
        %v2091 = vunpack.c.l.b16 %v2059
        %v2092 = vunpack.c.l.b16 %v2060
        %v2093 = vunpack.c.l.b16 %v2061
        %v2094 = vunpack.c.l.b16 %v2062
        %v2095 = vunpack.c.l.b16 %v2063
        %v2096 = vunpack.c.l.b16 %v2064
        %v2097 = vunpack.c.l.b16 %v2065
        %v2098 = vrot.slane %v2082, 5
        %v2099 = vrot.slane %v2083, 4
        %v2100 = vsel %vm1692, %v2099, %v2098
        %v2101 = vrot.slane %v2084, 3
        %v2102 = vsel %vm1695, %v2101, %v2100
        %v2103 = vrot.slane %v2085, 2
        %v2104 = vsel %vm1698, %v2103, %v2102
        %v2105 = vrot.slane %v2086, 1
        %v2106 = vsel %vm1701, %v2105, %v2104
        %v2107 = vsel %vm1704, %v2087, %v2106
        %v2108 = vrot.slane %v2088, 7
        %v2109 = vsel %vm1707, %v2108, %v2107
        %v2110 = vrot.slane %v2089, 6
        %v2111 = vsel %vm1710, %v2110, %v2109
        %v2112 = vrot.slane %v2090, 5
        %v2113 = vrot.slane %v2091, 4
        %v2114 = vsel %vm1692, %v2113, %v2112
        %v2115 = vrot.slane %v2092, 3
        %v2116 = vsel %vm1695, %v2115, %v2114
        %v2117 = vrot.slane %v2093, 2
        %v2118 = vsel %vm1698, %v2117, %v2116
        %v2119 = vrot.slane %v2094, 1
        %v2120 = vsel %vm1701, %v2119, %v2118
        %v2121 = vsel %vm1704, %v2095, %v2120
        %v2122 = vrot.slane %v2096, 7
        %v2123 = vsel %vm1707, %v2122, %v2121
        %v2124 = vrot.slane %v2097, 6
        %v2125 = vsel %vm1710, %v2124, %v2123
        %v2126 = vpack.c.b16 %v2125, %v2111
        %2127 = vrot.lane.b32.xlu0 %v2126, 64
        %v2128 = vpop.permute.xlu0 %2127
        %2130 = vst.msk [vmem:[#allocation3 + $0x10] sm:$0xff] %vm1809, %v2128
        %v2131 = vld [vmem:[#allocation2] sm:$0x8]
        %v2132 = vld [vmem:[#allocation2 + $0x8] sm:$0x8]
        %v2133 = vld [vmem:[#allocation2 + $0x10] sm:$0x8]
        %v2134 = vld [vmem:[#allocation2 + $0x18] sm:$0x8]
        %v2135 = vld [vmem:[#allocation2 + $0x20] sm:$0x8]
        %v2136 = vld [vmem:[#allocation2 + $0x28] sm:$0x8]
        %v2137 = vld [vmem:[#allocation2 + $0x30] sm:$0x8]
        %v2138 = vld [vmem:[#allocation2 + $0x38] sm:$0x8]
        %v2139 = vld [vmem:[#allocation2 + $0x40] sm:$0x8]
        %v2140 = vld [vmem:[#allocation2 + $0x48] sm:$0x8]
        %v2141 = vld [vmem:[#allocation2 + $0x50] sm:$0x8]
        %v2142 = vld [vmem:[#allocation2 + $0x58] sm:$0x8]
        %v2143 = vld [vmem:[#allocation2 + $0x60] sm:$0x8]
        %v2144 = vld [vmem:[#allocation2 + $0x68] sm:$0x8]
        %v2145 = vld [vmem:[#allocation2 + $0x70] sm:$0x8]
        %v2146 = vld [vmem:[#allocation2 + $0x78] sm:$0x8]
        %v2163 = vunpack.c.l.b16 %v2131
        %v2164 = vunpack.c.l.b16 %v2132
        %v2165 = vunpack.c.l.b16 %v2133
        %v2166 = vunpack.c.l.b16 %v2134
        %v2167 = vunpack.c.l.b16 %v2135
        %v2168 = vunpack.c.l.b16 %v2136
        %v2169 = vunpack.c.l.b16 %v2137
        %v2170 = vunpack.c.l.b16 %v2138
        %v2171 = vunpack.c.l.b16 %v2139
        %v2172 = vunpack.c.l.b16 %v2140
        %v2173 = vunpack.c.l.b16 %v2141
        %v2174 = vunpack.c.l.b16 %v2142
        %v2175 = vunpack.c.l.b16 %v2143
        %v2176 = vunpack.c.l.b16 %v2144
        %v2177 = vunpack.c.l.b16 %v2145
        %v2178 = vunpack.c.l.b16 %v2146
        %v2179 = vrot.slane %v2163, 6
        %v2180 = vrot.slane %v2164, 5
        %v2181 = vsel %vm1692, %v2180, %v2179
        %v2182 = vrot.slane %v2165, 4
        %v2183 = vsel %vm1695, %v2182, %v2181
        %v2184 = vrot.slane %v2166, 3
        %v2185 = vsel %vm1698, %v2184, %v2183
        %v2186 = vrot.slane %v2167, 2
        %v2187 = vsel %vm1701, %v2186, %v2185
        %v2188 = vrot.slane %v2168, 1
        %v2189 = vsel %vm1704, %v2188, %v2187
        %v2190 = vsel %vm1707, %v2169, %v2189
        %v2191 = vrot.slane %v2170, 7
        %v2192 = vsel %vm1710, %v2191, %v2190
        %v2193 = vrot.slane %v2171, 6
        %v2194 = vrot.slane %v2172, 5
        %v2195 = vsel %vm1692, %v2194, %v2193
        %v2196 = vrot.slane %v2173, 4
        %v2197 = vsel %vm1695, %v2196, %v2195
        %v2198 = vrot.slane %v2174, 3
        %v2199 = vsel %vm1698, %v2198, %v2197
        %v2200 = vrot.slane %v2175, 2
        %v2201 = vsel %vm1701, %v2200, %v2199
        %v2202 = vrot.slane %v2176, 1
        %v2203 = vsel %vm1704, %v2202, %v2201
        %v2204 = vsel %vm1707, %v2177, %v2203
        %v2205 = vrot.slane %v2178, 7
        %v2206 = vsel %vm1710, %v2205, %v2204
        %v2207 = vpack.c.b16 %v2206, %v2192
        %2209 = vst.msk [vmem:[#allocation3 + $0x18] sm:$0xff] %vm1015, %v2207
        %v2210 = vld [vmem:[#allocation2] sm:$0x8]
        %v2211 = vld [vmem:[#allocation2 + $0x8] sm:$0x8]
        %v2212 = vld [vmem:[#allocation2 + $0x10] sm:$0x8]
        %v2213 = vld [vmem:[#allocation2 + $0x18] sm:$0x8]
        %v2214 = vld [vmem:[#allocation2 + $0x20] sm:$0x8]
        %v2215 = vld [vmem:[#allocation2 + $0x28] sm:$0x8]
        %v2216 = vld [vmem:[#allocation2 + $0x30] sm:$0x8]
        %v2217 = vld [vmem:[#allocation2 + $0x38] sm:$0x8]
        %v2218 = vld [vmem:[#allocation2 + $0x40] sm:$0x8]
        %v2219 = vld [vmem:[#allocation2 + $0x48] sm:$0x8]
        %v2220 = vld [vmem:[#allocation2 + $0x50] sm:$0x8]
        %v2221 = vld [vmem:[#allocation2 + $0x58] sm:$0x8]
        %v2222 = vld [vmem:[#allocation2 + $0x60] sm:$0x8]
        %v2223 = vld [vmem:[#allocation2 + $0x68] sm:$0x8]
        %v2224 = vld [vmem:[#allocation2 + $0x70] sm:$0x8]
        %v2225 = vld [vmem:[#allocation2 + $0x78] sm:$0x8]
        %v2242 = vunpack.c.l.b16 %v2210
        %v2243 = vunpack.c.l.b16 %v2211
        %v2244 = vunpack.c.l.b16 %v2212
        %v2245 = vunpack.c.l.b16 %v2213
        %v2246 = vunpack.c.l.b16 %v2214
        %v2247 = vunpack.c.l.b16 %v2215
        %v2248 = vunpack.c.l.b16 %v2216
        %v2249 = vunpack.c.l.b16 %v2217
        %v2250 = vunpack.c.l.b16 %v2218
        %v2251 = vunpack.c.l.b16 %v2219
        %v2252 = vunpack.c.l.b16 %v2220
        %v2253 = vunpack.c.l.b16 %v2221
        %v2254 = vunpack.c.l.b16 %v2222
        %v2255 = vunpack.c.l.b16 %v2223
        %v2256 = vunpack.c.l.b16 %v2224
        %v2257 = vunpack.c.l.b16 %v2225
        %v2258 = vrot.slane %v2242, 7
        %v2259 = vrot.slane %v2243, 6
        %v2260 = vsel %vm1692, %v2259, %v2258
        %v2261 = vrot.slane %v2244, 5
        %v2262 = vsel %vm1695, %v2261, %v2260
        %v2263 = vrot.slane %v2245, 4
        %v2264 = vsel %vm1698, %v2263, %v2262
        %v2265 = vrot.slane %v2246, 3
        %v2266 = vsel %vm1701, %v2265, %v2264
        %v2267 = vrot.slane %v2247, 2
        %v2268 = vsel %vm1704, %v2267, %v2266
        %v2269 = vrot.slane %v2248, 1
        %v2270 = vsel %vm1707, %v2269, %v2268
        %v2271 = vsel %vm1710, %v2249, %v2270
        %v2272 = vrot.slane %v2250, 7
        %v2273 = vrot.slane %v2251, 6
        %v2274 = vsel %vm1692, %v2273, %v2272
        %v2275 = vrot.slane %v2252, 5
        %v2276 = vsel %vm1695, %v2275, %v2274
        %v2277 = vrot.slane %v2253, 4
        %v2278 = vsel %vm1698, %v2277, %v2276
        %v2279 = vrot.slane %v2254, 3
        %v2280 = vsel %vm1701, %v2279, %v2278
        %v2281 = vrot.slane %v2255, 2
        %v2282 = vsel %vm1704, %v2281, %v2280
        %v2283 = vrot.slane %v2256, 1
        %v2284 = vsel %vm1707, %v2283, %v2282
        %v2285 = vsel %vm1710, %v2257, %v2284
        %v2286 = vpack.c.b16 %v2285, %v2271
        %2287 = vrot.lane.b32.xlu0 %v2286, 64
        %v2288 = vpop.permute.xlu0 %2287
        %2290 = vst.msk [vmem:[#allocation3 + $0x18] sm:$0xff] %vm1809, %v2288
        %v2291 = vld [vmem:[#allocation2] sm:$0x10]
        %v2292 = vld [vmem:[#allocation2 + $0x8] sm:$0x10]
        %v2293 = vld [vmem:[#allocation2 + $0x10] sm:$0x10]
        %v2294 = vld [vmem:[#allocation2 + $0x18] sm:$0x10]
        %v2295 = vld [vmem:[#allocation2 + $0x20] sm:$0x10]
        %v2296 = vld [vmem:[#allocation2 + $0x28] sm:$0x10]
        %v2297 = vld [vmem:[#allocation2 + $0x30] sm:$0x10]
        %v2298 = vld [vmem:[#allocation2 + $0x38] sm:$0x10]
        %v2299 = vld [vmem:[#allocation2 + $0x40] sm:$0x10]
        %v2300 = vld [vmem:[#allocation2 + $0x48] sm:$0x10]
        %v2301 = vld [vmem:[#allocation2 + $0x50] sm:$0x10]
        %v2302 = vld [vmem:[#allocation2 + $0x58] sm:$0x10]
        %v2303 = vld [vmem:[#allocation2 + $0x60] sm:$0x10]
        %v2304 = vld [vmem:[#allocation2 + $0x68] sm:$0x10]
        %v2305 = vld [vmem:[#allocation2 + $0x70] sm:$0x10]
        %v2306 = vld [vmem:[#allocation2 + $0x78] sm:$0x10]
        %v2323 = vunpack.c.h.b16 %v2291
        %v2324 = vunpack.c.h.b16 %v2292
        %v2325 = vunpack.c.h.b16 %v2293
        %v2326 = vunpack.c.h.b16 %v2294
        %v2327 = vunpack.c.h.b16 %v2295
        %v2328 = vunpack.c.h.b16 %v2296
        %v2329 = vunpack.c.h.b16 %v2297
        %v2330 = vunpack.c.h.b16 %v2298
        %v2331 = vunpack.c.h.b16 %v2299
        %v2332 = vunpack.c.h.b16 %v2300
        %v2333 = vunpack.c.h.b16 %v2301
        %v2334 = vunpack.c.h.b16 %v2302
        %v2335 = vunpack.c.h.b16 %v2303
        %v2336 = vunpack.c.h.b16 %v2304
        %v2337 = vunpack.c.h.b16 %v2305
        %v2338 = vunpack.c.h.b16 %v2306
        %v2339 = vrot.slane %v2324, 7
        %v2340 = vsel %vm1692, %v2339, %v2323
        %v2341 = vrot.slane %v2325, 6
        %v2342 = vsel %vm1695, %v2341, %v2340
        %v2343 = vrot.slane %v2326, 5
        %v2344 = vsel %vm1698, %v2343, %v2342
        %v2345 = vrot.slane %v2327, 4
        %v2346 = vsel %vm1701, %v2345, %v2344
        %v2347 = vrot.slane %v2328, 3
        %v2348 = vsel %vm1704, %v2347, %v2346
        %v2349 = vrot.slane %v2329, 2
        %v2350 = vsel %vm1707, %v2349, %v2348
        %v2351 = vrot.slane %v2330, 1
        %v2352 = vsel %vm1710, %v2351, %v2350
        %v2353 = vrot.slane %v2332, 7
        %v2354 = vsel %vm1692, %v2353, %v2331
        %v2355 = vrot.slane %v2333, 6
        %v2356 = vsel %vm1695, %v2355, %v2354
        %v2357 = vrot.slane %v2334, 5
        %v2358 = vsel %vm1698, %v2357, %v2356
        %v2359 = vrot.slane %v2335, 4
        %v2360 = vsel %vm1701, %v2359, %v2358
        %v2361 = vrot.slane %v2336, 3
        %v2362 = vsel %vm1704, %v2361, %v2360
        %v2363 = vrot.slane %v2337, 2
        %v2364 = vsel %vm1707, %v2363, %v2362
        %v2365 = vrot.slane %v2338, 1
        %v2366 = vsel %vm1710, %v2365, %v2364
        %v2367 = vpack.c.b16 %v2366, %v2352
        %2369 = vst.msk [vmem:[#allocation3 + $0x20] sm:$0xff] %vm1015, %v2367
        %v2370 = vld [vmem:[#allocation2] sm:$0x10]
        %v2371 = vld [vmem:[#allocation2 + $0x8] sm:$0x10]
        %v2372 = vld [vmem:[#allocation2 + $0x10] sm:$0x10]
        %v2373 = vld [vmem:[#allocation2 + $0x18] sm:$0x10]
        %v2374 = vld [vmem:[#allocation2 + $0x20] sm:$0x10]
        %v2375 = vld [vmem:[#allocation2 + $0x28] sm:$0x10]
        %v2376 = vld [vmem:[#allocation2 + $0x30] sm:$0x10]
        %v2377 = vld [vmem:[#allocation2 + $0x38] sm:$0x10]
        %v2378 = vld [vmem:[#allocation2 + $0x40] sm:$0x10]
        %v2379 = vld [vmem:[#allocation2 + $0x48] sm:$0x10]
        %v2380 = vld [vmem:[#allocation2 + $0x50] sm:$0x10]
        %v2381 = vld [vmem:[#allocation2 + $0x58] sm:$0x10]
        %v2382 = vld [vmem:[#allocation2 + $0x60] sm:$0x10]
        %v2383 = vld [vmem:[#allocation2 + $0x68] sm:$0x10]
        %v2384 = vld [vmem:[#allocation2 + $0x70] sm:$0x10]
        %v2385 = vld [vmem:[#allocation2 + $0x78] sm:$0x10]
        %v2402 = vunpack.c.h.b16 %v2370
        %v2403 = vunpack.c.h.b16 %v2371
        %v2404 = vunpack.c.h.b16 %v2372
        %v2405 = vunpack.c.h.b16 %v2373
        %v2406 = vunpack.c.h.b16 %v2374
        %v2407 = vunpack.c.h.b16 %v2375
        %v2408 = vunpack.c.h.b16 %v2376
        %v2409 = vunpack.c.h.b16 %v2377
        %v2410 = vunpack.c.h.b16 %v2378
        %v2411 = vunpack.c.h.b16 %v2379
        %v2412 = vunpack.c.h.b16 %v2380
        %v2413 = vunpack.c.h.b16 %v2381
        %v2414 = vunpack.c.h.b16 %v2382
        %v2415 = vunpack.c.h.b16 %v2383
        %v2416 = vunpack.c.h.b16 %v2384
        %v2417 = vunpack.c.h.b16 %v2385
        %v2418 = vrot.slane %v2402, 1
        %v2419 = vsel %vm1692, %v2403, %v2418
        %v2420 = vrot.slane %v2404, 7
        %v2421 = vsel %vm1695, %v2420, %v2419
        %v2422 = vrot.slane %v2405, 6
        %v2423 = vsel %vm1698, %v2422, %v2421
        %v2424 = vrot.slane %v2406, 5
        %v2425 = vsel %vm1701, %v2424, %v2423
        %v2426 = vrot.slane %v2407, 4
        %v2427 = vsel %vm1704, %v2426, %v2425
        %v2428 = vrot.slane %v2408, 3
        %v2429 = vsel %vm1707, %v2428, %v2427
        %v2430 = vrot.slane %v2409, 2
        %v2431 = vsel %vm1710, %v2430, %v2429
        %v2432 = vrot.slane %v2410, 1
        %v2433 = vsel %vm1692, %v2411, %v2432
        %v2434 = vrot.slane %v2412, 7
        %v2435 = vsel %vm1695, %v2434, %v2433
        %v2436 = vrot.slane %v2413, 6
        %v2437 = vsel %vm1698, %v2436, %v2435
        %v2438 = vrot.slane %v2414, 5
        %v2439 = vsel %vm1701, %v2438, %v2437
        %v2440 = vrot.slane %v2415, 4
        %v2441 = vsel %vm1704, %v2440, %v2439
        %v2442 = vrot.slane %v2416, 3
        %v2443 = vsel %vm1707, %v2442, %v2441
        %v2444 = vrot.slane %v2417, 2
        %v2445 = vsel %vm1710, %v2444, %v2443
        %v2446 = vpack.c.b16 %v2445, %v2431
        %2447 = vrot.lane.b32.xlu0 %v2446, 64
        %v2448 = vpop.permute.xlu0 %2447
        %2450 = vst.msk [vmem:[#allocation3 + $0x20] sm:$0xff] %vm1809, %v2448
        %v2451 = vld [vmem:[#allocation2] sm:$0x20]
        %v2452 = vld [vmem:[#allocation2 + $0x8] sm:$0x20]
        %v2453 = vld [vmem:[#allocation2 + $0x10] sm:$0x20]
        %v2454 = vld [vmem:[#allocation2 + $0x18] sm:$0x20]
        %v2455 = vld [vmem:[#allocation2 + $0x20] sm:$0x20]
        %v2456 = vld [vmem:[#allocation2 + $0x28] sm:$0x20]
        %v2457 = vld [vmem:[#allocation2 + $0x30] sm:$0x20]
        %v2458 = vld [vmem:[#allocation2 + $0x38] sm:$0x20]
        %v2459 = vld [vmem:[#allocation2 + $0x40] sm:$0x20]
        %v2460 = vld [vmem:[#allocation2 + $0x48] sm:$0x20]
        %v2461 = vld [vmem:[#allocation2 + $0x50] sm:$0x20]
        %v2462 = vld [vmem:[#allocation2 + $0x58] sm:$0x20]
        %v2463 = vld [vmem:[#allocation2 + $0x60] sm:$0x20]
        %v2464 = vld [vmem:[#allocation2 + $0x68] sm:$0x20]
        %v2465 = vld [vmem:[#allocation2 + $0x70] sm:$0x20]
        %v2466 = vld [vmem:[#allocation2 + $0x78] sm:$0x20]
        %v2483 = vunpack.c.h.b16 %v2451
        %v2484 = vunpack.c.h.b16 %v2452
        %v2485 = vunpack.c.h.b16 %v2453
        %v2486 = vunpack.c.h.b16 %v2454
        %v2487 = vunpack.c.h.b16 %v2455
        %v2488 = vunpack.c.h.b16 %v2456
        %v2489 = vunpack.c.h.b16 %v2457
        %v2490 = vunpack.c.h.b16 %v2458
        %v2491 = vunpack.c.h.b16 %v2459
        %v2492 = vunpack.c.h.b16 %v2460
        %v2493 = vunpack.c.h.b16 %v2461
        %v2494 = vunpack.c.h.b16 %v2462
        %v2495 = vunpack.c.h.b16 %v2463
        %v2496 = vunpack.c.h.b16 %v2464
        %v2497 = vunpack.c.h.b16 %v2465
        %v2498 = vunpack.c.h.b16 %v2466
        %v2499 = vrot.slane %v2483, 2
        %v2500 = vrot.slane %v2484, 1
        %v2501 = vsel %vm1692, %v2500, %v2499
        %v2502 = vsel %vm1695, %v2485, %v2501
        %v2503 = vrot.slane %v2486, 7
        %v2504 = vsel %vm1698, %v2503, %v2502
        %v2505 = vrot.slane %v2487, 6
        %v2506 = vsel %vm1701, %v2505, %v2504
        %v2507 = vrot.slane %v2488, 5
        %v2508 = vsel %vm1704, %v2507, %v2506
        %v2509 = vrot.slane %v2489, 4
        %v2510 = vsel %vm1707, %v2509, %v2508
        %v2511 = vrot.slane %v2490, 3
        %v2512 = vsel %vm1710, %v2511, %v2510
        %v2513 = vrot.slane %v2491, 2
        %v2514 = vrot.slane %v2492, 1
        %v2515 = vsel %vm1692, %v2514, %v2513
        %v2516 = vsel %vm1695, %v2493, %v2515
        %v2517 = vrot.slane %v2494, 7
        %v2518 = vsel %vm1698, %v2517, %v2516
        %v2519 = vrot.slane %v2495, 6
        %v2520 = vsel %vm1701, %v2519, %v2518
        %v2521 = vrot.slane %v2496, 5
        %v2522 = vsel %vm1704, %v2521, %v2520
        %v2523 = vrot.slane %v2497, 4
        %v2524 = vsel %vm1707, %v2523, %v2522
        %v2525 = vrot.slane %v2498, 3
        %v2526 = vsel %vm1710, %v2525, %v2524
        %v2527 = vpack.c.b16 %v2526, %v2512
        %2529 = vst.msk [vmem:[#allocation3 + $0x28] sm:$0xff] %vm1015, %v2527
        %v2530 = vld [vmem:[#allocation2] sm:$0x20]
        %v2531 = vld [vmem:[#allocation2 + $0x8] sm:$0x20]
        %v2532 = vld [vmem:[#allocation2 + $0x10] sm:$0x20]
        %v2533 = vld [vmem:[#allocation2 + $0x18] sm:$0x20]
        %v2534 = vld [vmem:[#allocation2 + $0x20] sm:$0x20]
        %v2535 = vld [vmem:[#allocation2 + $0x28] sm:$0x20]
        %v2536 = vld [vmem:[#allocation2 + $0x30] sm:$0x20]
        %v2537 = vld [vmem:[#allocation2 + $0x38] sm:$0x20]
        %v2538 = vld [vmem:[#allocation2 + $0x40] sm:$0x20]
        %v2539 = vld [vmem:[#allocation2 + $0x48] sm:$0x20]
        %v2540 = vld [vmem:[#allocation2 + $0x50] sm:$0x20]
        %v2541 = vld [vmem:[#allocation2 + $0x58] sm:$0x20]
        %v2542 = vld [vmem:[#allocation2 + $0x60] sm:$0x20]
        %v2543 = vld [vmem:[#allocation2 + $0x68] sm:$0x20]
        %v2544 = vld [vmem:[#allocation2 + $0x70] sm:$0x20]
        %v2545 = vld [vmem:[#allocation2 + $0x78] sm:$0x20]
        %v2562 = vunpack.c.h.b16 %v2530
        %v2563 = vunpack.c.h.b16 %v2531
        %v2564 = vunpack.c.h.b16 %v2532
        %v2565 = vunpack.c.h.b16 %v2533
        %v2566 = vunpack.c.h.b16 %v2534
        %v2567 = vunpack.c.h.b16 %v2535
        %v2568 = vunpack.c.h.b16 %v2536
        %v2569 = vunpack.c.h.b16 %v2537
        %v2570 = vunpack.c.h.b16 %v2538
        %v2571 = vunpack.c.h.b16 %v2539
        %v2572 = vunpack.c.h.b16 %v2540
        %v2573 = vunpack.c.h.b16 %v2541
        %v2574 = vunpack.c.h.b16 %v2542
        %v2575 = vunpack.c.h.b16 %v2543
        %v2576 = vunpack.c.h.b16 %v2544
        %v2577 = vunpack.c.h.b16 %v2545
        %v2578 = vrot.slane %v2562, 3
        %v2579 = vrot.slane %v2563, 2
        %v2580 = vsel %vm1692, %v2579, %v2578
        %v2581 = vrot.slane %v2564, 1
        %v2582 = vsel %vm1695, %v2581, %v2580
        %v2583 = vsel %vm1698, %v2565, %v2582
        %v2584 = vrot.slane %v2566, 7
        %v2585 = vsel %vm1701, %v2584, %v2583
        %v2586 = vrot.slane %v2567, 6
        %v2587 = vsel %vm1704, %v2586, %v2585
        %v2588 = vrot.slane %v2568, 5
        %v2589 = vsel %vm1707, %v2588, %v2587
        %v2590 = vrot.slane %v2569, 4
        %v2591 = vsel %vm1710, %v2590, %v2589
        %v2592 = vrot.slane %v2570, 3
        %v2593 = vrot.slane %v2571, 2
        %v2594 = vsel %vm1692, %v2593, %v2592
        %v2595 = vrot.slane %v2572, 1
        %v2596 = vsel %vm1695, %v2595, %v2594
        %v2597 = vsel %vm1698, %v2573, %v2596
        %v2598 = vrot.slane %v2574, 7
        %v2599 = vsel %vm1701, %v2598, %v2597
        %v2600 = vrot.slane %v2575, 6
        %v2601 = vsel %vm1704, %v2600, %v2599
        %v2602 = vrot.slane %v2576, 5
        %v2603 = vsel %vm1707, %v2602, %v2601
        %v2604 = vrot.slane %v2577, 4
        %v2605 = vsel %vm1710, %v2604, %v2603
        %v2606 = vpack.c.b16 %v2605, %v2591
        %2607 = vrot.lane.b32.xlu0 %v2606, 64
        %v2608 = vpop.permute.xlu0 %2607
        %2610 = vst.msk [vmem:[#allocation3 + $0x28] sm:$0xff] %vm1809, %v2608
        %v2611 = vld [vmem:[#allocation2] sm:$0x40]
        %v2612 = vld [vmem:[#allocation2 + $0x8] sm:$0x40]
        %v2613 = vld [vmem:[#allocation2 + $0x10] sm:$0x40]
        %v2614 = vld [vmem:[#allocation2 + $0x18] sm:$0x40]
        %v2615 = vld [vmem:[#allocation2 + $0x20] sm:$0x40]
        %v2616 = vld [vmem:[#allocation2 + $0x28] sm:$0x40]
        %v2617 = vld [vmem:[#allocation2 + $0x30] sm:$0x40]
        %v2618 = vld [vmem:[#allocation2 + $0x38] sm:$0x40]
        %v2619 = vld [vmem:[#allocation2 + $0x40] sm:$0x40]
        %v2620 = vld [vmem:[#allocation2 + $0x48] sm:$0x40]
        %v2621 = vld [vmem:[#allocation2 + $0x50] sm:$0x40]
        %v2622 = vld [vmem:[#allocation2 + $0x58] sm:$0x40]
        %v2623 = vld [vmem:[#allocation2 + $0x60] sm:$0x40]
        %v2624 = vld [vmem:[#allocation2 + $0x68] sm:$0x40]
        %v2625 = vld [vmem:[#allocation2 + $0x70] sm:$0x40]
        %v2626 = vld [vmem:[#allocation2 + $0x78] sm:$0x40]
        %v2643 = vunpack.c.h.b16 %v2611
        %v2644 = vunpack.c.h.b16 %v2612
        %v2645 = vunpack.c.h.b16 %v2613
        %v2646 = vunpack.c.h.b16 %v2614
        %v2647 = vunpack.c.h.b16 %v2615
        %v2648 = vunpack.c.h.b16 %v2616
        %v2649 = vunpack.c.h.b16 %v2617
        %v2650 = vunpack.c.h.b16 %v2618
        %v2651 = vunpack.c.h.b16 %v2619
        %v2652 = vunpack.c.h.b16 %v2620
        %v2653 = vunpack.c.h.b16 %v2621
        %v2654 = vunpack.c.h.b16 %v2622
        %v2655 = vunpack.c.h.b16 %v2623
        %v2656 = vunpack.c.h.b16 %v2624
        %v2657 = vunpack.c.h.b16 %v2625
        %v2658 = vunpack.c.h.b16 %v2626
        %v2659 = vrot.slane %v2643, 4
        %v2660 = vrot.slane %v2644, 3
        %v2661 = vsel %vm1692, %v2660, %v2659
        %v2662 = vrot.slane %v2645, 2
        %v2663 = vsel %vm1695, %v2662, %v2661
        %v2664 = vrot.slane %v2646, 1
        %v2665 = vsel %vm1698, %v2664, %v2663
        %v2666 = vsel %vm1701, %v2647, %v2665
        %v2667 = vrot.slane %v2648, 7
        %v2668 = vsel %vm1704, %v2667, %v2666
        %v2669 = vrot.slane %v2649, 6
        %v2670 = vsel %vm1707, %v2669, %v2668
        %v2671 = vrot.slane %v2650, 5
        %v2672 = vsel %vm1710, %v2671, %v2670
        %v2673 = vrot.slane %v2651, 4
        %v2674 = vrot.slane %v2652, 3
        %v2675 = vsel %vm1692, %v2674, %v2673
        %v2676 = vrot.slane %v2653, 2
        %v2677 = vsel %vm1695, %v2676, %v2675
        %v2678 = vrot.slane %v2654, 1
        %v2679 = vsel %vm1698, %v2678, %v2677
        %v2680 = vsel %vm1701, %v2655, %v2679
        %v2681 = vrot.slane %v2656, 7
        %v2682 = vsel %vm1704, %v2681, %v2680
        %v2683 = vrot.slane %v2657, 6
        %v2684 = vsel %vm1707, %v2683, %v2682
        %v2685 = vrot.slane %v2658, 5
        %v2686 = vsel %vm1710, %v2685, %v2684
        %v2687 = vpack.c.b16 %v2686, %v2672
        %2689 = vst.msk [vmem:[#allocation3 + $0x30] sm:$0xff] %vm1015, %v2687
        %v2690 = vld [vmem:[#allocation2] sm:$0x40]
        %v2691 = vld [vmem:[#allocation2 + $0x8] sm:$0x40]
        %v2692 = vld [vmem:[#allocation2 + $0x10] sm:$0x40]
        %v2693 = vld [vmem:[#allocation2 + $0x18] sm:$0x40]
        %v2694 = vld [vmem:[#allocation2 + $0x20] sm:$0x40]
        %v2695 = vld [vmem:[#allocation2 + $0x28] sm:$0x40]
        %v2696 = vld [vmem:[#allocation2 + $0x30] sm:$0x40]
        %v2697 = vld [vmem:[#allocation2 + $0x38] sm:$0x40]
        %v2698 = vld [vmem:[#allocation2 + $0x40] sm:$0x40]
        %v2699 = vld [vmem:[#allocation2 + $0x48] sm:$0x40]
        %v2700 = vld [vmem:[#allocation2 + $0x50] sm:$0x40]
        %v2701 = vld [vmem:[#allocation2 + $0x58] sm:$0x40]
        %v2702 = vld [vmem:[#allocation2 + $0x60] sm:$0x40]
        %v2703 = vld [vmem:[#allocation2 + $0x68] sm:$0x40]
        %v2704 = vld [vmem:[#allocation2 + $0x70] sm:$0x40]
        %v2705 = vld [vmem:[#allocation2 + $0x78] sm:$0x40]
        %v2722 = vunpack.c.h.b16 %v2690
        %v2723 = vunpack.c.h.b16 %v2691
        %v2724 = vunpack.c.h.b16 %v2692
        %v2725 = vunpack.c.h.b16 %v2693
        %v2726 = vunpack.c.h.b16 %v2694
        %v2727 = vunpack.c.h.b16 %v2695
        %v2728 = vunpack.c.h.b16 %v2696
        %v2729 = vunpack.c.h.b16 %v2697
        %v2730 = vunpack.c.h.b16 %v2698
        %v2731 = vunpack.c.h.b16 %v2699
        %v2732 = vunpack.c.h.b16 %v2700
        %v2733 = vunpack.c.h.b16 %v2701
        %v2734 = vunpack.c.h.b16 %v2702
        %v2735 = vunpack.c.h.b16 %v2703
        %v2736 = vunpack.c.h.b16 %v2704
        %v2737 = vunpack.c.h.b16 %v2705
        %v2738 = vrot.slane %v2722, 5
        %v2739 = vrot.slane %v2723, 4
        %v2740 = vsel %vm1692, %v2739, %v2738
        %v2741 = vrot.slane %v2724, 3
        %v2742 = vsel %vm1695, %v2741, %v2740
        %v2743 = vrot.slane %v2725, 2
        %v2744 = vsel %vm1698, %v2743, %v2742
        %v2745 = vrot.slane %v2726, 1
        %v2746 = vsel %vm1701, %v2745, %v2744
        %v2747 = vsel %vm1704, %v2727, %v2746
        %v2748 = vrot.slane %v2728, 7
        %v2749 = vsel %vm1707, %v2748, %v2747
        %v2750 = vrot.slane %v2729, 6
        %v2751 = vsel %vm1710, %v2750, %v2749
        %v2752 = vrot.slane %v2730, 5
        %v2753 = vrot.slane %v2731, 4
        %v2754 = vsel %vm1692, %v2753, %v2752
        %v2755 = vrot.slane %v2732, 3
        %v2756 = vsel %vm1695, %v2755, %v2754
        %v2757 = vrot.slane %v2733, 2
        %v2758 = vsel %vm1698, %v2757, %v2756
        %v2759 = vrot.slane %v2734, 1
        %v2760 = vsel %vm1701, %v2759, %v2758
        %v2761 = vsel %vm1704, %v2735, %v2760
        %v2762 = vrot.slane %v2736, 7
        %v2763 = vsel %vm1707, %v2762, %v2761
        %v2764 = vrot.slane %v2737, 6
        %v2765 = vsel %vm1710, %v2764, %v2763
        %v2766 = vpack.c.b16 %v2765, %v2751
        %2767 = vrot.lane.b32.xlu0 %v2766, 64
        %v2768 = vpop.permute.xlu0 %2767
        %2770 = vst.msk [vmem:[#allocation3 + $0x30] sm:$0xff] %vm1809, %v2768
        %v2771 = vld [vmem:[#allocation2] sm:$0x80]
        %v2772 = vld [vmem:[#allocation2 + $0x8] sm:$0x80]
        %v2773 = vld [vmem:[#allocation2 + $0x10] sm:$0x80]
        %v2774 = vld [vmem:[#allocation2 + $0x18] sm:$0x80]
        %v2775 = vld [vmem:[#allocation2 + $0x20] sm:$0x80]
        %v2776 = vld [vmem:[#allocation2 + $0x28] sm:$0x80]
        %v2777 = vld [vmem:[#allocation2 + $0x30] sm:$0x80]
        %v2778 = vld [vmem:[#allocation2 + $0x38] sm:$0x80]
        %v2779 = vld [vmem:[#allocation2 + $0x40] sm:$0x80]
        %v2780 = vld [vmem:[#allocation2 + $0x48] sm:$0x80]
        %v2781 = vld [vmem:[#allocation2 + $0x50] sm:$0x80]
        %v2782 = vld [vmem:[#allocation2 + $0x58] sm:$0x80]
        %v2783 = vld [vmem:[#allocation2 + $0x60] sm:$0x80]
        %v2784 = vld [vmem:[#allocation2 + $0x68] sm:$0x80]
        %v2785 = vld [vmem:[#allocation2 + $0x70] sm:$0x80]
        %v2786 = vld [vmem:[#allocation2 + $0x78] sm:$0x80]
        %v2803 = vunpack.c.h.b16 %v2771
        %v2804 = vunpack.c.h.b16 %v2772
        %v2805 = vunpack.c.h.b16 %v2773
        %v2806 = vunpack.c.h.b16 %v2774
        %v2807 = vunpack.c.h.b16 %v2775
        %v2808 = vunpack.c.h.b16 %v2776
        %v2809 = vunpack.c.h.b16 %v2777
        %v2810 = vunpack.c.h.b16 %v2778
        %v2811 = vunpack.c.h.b16 %v2779
        %v2812 = vunpack.c.h.b16 %v2780
        %v2813 = vunpack.c.h.b16 %v2781
        %v2814 = vunpack.c.h.b16 %v2782
        %v2815 = vunpack.c.h.b16 %v2783
        %v2816 = vunpack.c.h.b16 %v2784
        %v2817 = vunpack.c.h.b16 %v2785
        %v2818 = vunpack.c.h.b16 %v2786
        %v2819 = vrot.slane %v2803, 6
        %v2820 = vrot.slane %v2804, 5
        %v2821 = vsel %vm1692, %v2820, %v2819
        %v2822 = vrot.slane %v2805, 4
        %v2823 = vsel %vm1695, %v2822, %v2821
        %v2824 = vrot.slane %v2806, 3
        %v2825 = vsel %vm1698, %v2824, %v2823
        %v2826 = vrot.slane %v2807, 2
        %v2827 = vsel %vm1701, %v2826, %v2825
        %v2828 = vrot.slane %v2808, 1
        %v2829 = vsel %vm1704, %v2828, %v2827
        %v2830 = vsel %vm1707, %v2809, %v2829
        %v2831 = vrot.slane %v2810, 7
        %v2832 = vsel %vm1710, %v2831, %v2830
        %v2833 = vrot.slane %v2811, 6
        %v2834 = vrot.slane %v2812, 5
        %v2835 = vsel %vm1692, %v2834, %v2833
        %v2836 = vrot.slane %v2813, 4
        %v2837 = vsel %vm1695, %v2836, %v2835
        %v2838 = vrot.slane %v2814, 3
        %v2839 = vsel %vm1698, %v2838, %v2837
        %v2840 = vrot.slane %v2815, 2
        %v2841 = vsel %vm1701, %v2840, %v2839
        %v2842 = vrot.slane %v2816, 1
        %v2843 = vsel %vm1704, %v2842, %v2841
        %v2844 = vsel %vm1707, %v2817, %v2843
        %v2845 = vrot.slane %v2818, 7
        %v2846 = vsel %vm1710, %v2845, %v2844
        %v2847 = vpack.c.b16 %v2846, %v2832
        %2849 = vst.msk [vmem:[#allocation3 + $0x38] sm:$0xff] %vm1015, %v2847
        %v2850 = vld [vmem:[#allocation2] sm:$0x80]
        %v2851 = vld [vmem:[#allocation2 + $0x8] sm:$0x80]
        %v2852 = vld [vmem:[#allocation2 + $0x10] sm:$0x80]
        %v2853 = vld [vmem:[#allocation2 + $0x18] sm:$0x80]
        %v2854 = vld [vmem:[#allocation2 + $0x20] sm:$0x80]
        %v2855 = vld [vmem:[#allocation2 + $0x28] sm:$0x80]
        %v2856 = vld [vmem:[#allocation2 + $0x30] sm:$0x80]
        %v2857 = vld [vmem:[#allocation2 + $0x38] sm:$0x80]
        %v2858 = vld [vmem:[#allocation2 + $0x40] sm:$0x80]
        %v2859 = vld [vmem:[#allocation2 + $0x48] sm:$0x80]
        %v2860 = vld [vmem:[#allocation2 + $0x50] sm:$0x80]
        %v2861 = vld [vmem:[#allocation2 + $0x58] sm:$0x80]
        %v2862 = vld [vmem:[#allocation2 + $0x60] sm:$0x80]
        %v2863 = vld [vmem:[#allocation2 + $0x68] sm:$0x80]
        %v2864 = vld [vmem:[#allocation2 + $0x70] sm:$0x80]
        %v2865 = vld [vmem:[#allocation2 + $0x78] sm:$0x80]
        %v2882 = vunpack.c.h.b16 %v2850
        %v2883 = vunpack.c.h.b16 %v2851
        %v2884 = vunpack.c.h.b16 %v2852
        %v2885 = vunpack.c.h.b16 %v2853
        %v2886 = vunpack.c.h.b16 %v2854
        %v2887 = vunpack.c.h.b16 %v2855
        %v2888 = vunpack.c.h.b16 %v2856
        %v2889 = vunpack.c.h.b16 %v2857
        %v2890 = vunpack.c.h.b16 %v2858
        %v2891 = vunpack.c.h.b16 %v2859
        %v2892 = vunpack.c.h.b16 %v2860
        %v2893 = vunpack.c.h.b16 %v2861
        %v2894 = vunpack.c.h.b16 %v2862
        %v2895 = vunpack.c.h.b16 %v2863
        %v2896 = vunpack.c.h.b16 %v2864
        %v2897 = vunpack.c.h.b16 %v2865
        %v2898 = vrot.slane %v2882, 7
        %v2899 = vrot.slane %v2883, 6
        %v2900 = vsel %vm1692, %v2899, %v2898
        %v2901 = vrot.slane %v2884, 5
        %v2902 = vsel %vm1695, %v2901, %v2900
        %v2903 = vrot.slane %v2885, 4
        %v2904 = vsel %vm1698, %v2903, %v2902
        %v2905 = vrot.slane %v2886, 3
        %v2906 = vsel %vm1701, %v2905, %v2904
        %v2907 = vrot.slane %v2887, 2
        %v2908 = vsel %vm1704, %v2907, %v2906
        %v2909 = vrot.slane %v2888, 1
        %v2910 = vsel %vm1707, %v2909, %v2908
        %v2911 = vsel %vm1710, %v2889, %v2910
        %v2912 = vrot.slane %v2890, 7
        %v2913 = vrot.slane %v2891, 6
        %v2914 = vsel %vm1692, %v2913, %v2912
        %v2915 = vrot.slane %v2892, 5
        %v2916 = vsel %vm1695, %v2915, %v2914
        %v2917 = vrot.slane %v2893, 4
        %v2918 = vsel %vm1698, %v2917, %v2916
        %v2919 = vrot.slane %v2894, 3
        %v2920 = vsel %vm1701, %v2919, %v2918
        %v2921 = vrot.slane %v2895, 2
        %v2922 = vsel %vm1704, %v2921, %v2920
        %v2923 = vrot.slane %v2896, 1
        %v2924 = vsel %vm1707, %v2923, %v2922
        %v2925 = vsel %vm1710, %v2897, %v2924
        %v2926 = vpack.c.b16 %v2925, %v2911
        %2927 = vrot.lane.b32.xlu0 %v2926, 64
        %v2928 = vpop.permute.xlu0 %2927
        %2930 = vst.msk [vmem:[#allocation3 + $0x38] sm:$0xff] %vm1809, %v2928
        %v2931 = vld [vmem:[%s3] sm:$0xf]
        %v2932 = vld [vmem:[%s3 + $0x4] sm:$0xf]
        %v2933 = vld [vmem:[%s3 + $0x8] sm:$0xf]
        %v2934 = vld [vmem:[%s3 + $0xc] sm:$0xf]
        %v2935 = vld [vmem:[#allocation3] sm:$0xff]
        %v2936 = vld [vmem:[#allocation3 + $0x8] sm:$0xff]
        %v2937 = vld [vmem:[#allocation3 + $0x10] sm:$0xff]
        %v2938 = vld [vmem:[#allocation3 + $0x18] sm:$0xff]
        %v2939 = vld [vmem:[#allocation3 + $0x20] sm:$0xff]
        %v2940 = vld [vmem:[#allocation3 + $0x28] sm:$0xff]
        %v2941 = vld [vmem:[#allocation3 + $0x30] sm:$0xff]
        %v2942 = vld [vmem:[#allocation3 + $0x38] sm:$0xff]
        %v2947 = vunpack.c.l.b16 %v2931
        %v2948 = vunpack.c.l.b16 %v2932
        %v2949 = vunpack.c.l.b16 %v2933
        %v2950 = vunpack.c.l.b16 %v2934
        %v2951 = vpack.c.b16 %v2948, %v2947
        %v2952 = vpack.c.b16 %v2950, %v2949
        %vm2953 = vcmask 130048
        %v2955 = vsel %vm2953, %v2951, 0
        %v2958 = vsel %vm2953, %v2952, 0
        %2960 = vmatprep.subr.bf16.mxu0 %v2936
        %2961 = vmatpush1.bf16.msra.mxu0 %v2935
        %2962 = vmatprep.subr.bf16.mxu0 0
        %2963 = vmatpush1.bf16.msra.mxu0 0
        %2964 = vmatprep.subr.bf16.mxu0 0
        %2965 = vmatpush1.bf16.msra.mxu0 0
        %2966 = vmatprep.subr.bf16.mxu0 0
        %2967 = vmatpush1.bf16.msra.mxu0 0
        %2968 = vmatprep.subr.bf16.mxu0 0
        %2969 = vmatpush1.bf16.msra.mxu0 0
        %2970 = vmatprep.subr.bf16.mxu0 0
        %2971 = vmatpush1.bf16.msra.mxu0 0
        %2972 = vmatprep.subr.bf16.mxu0 0
        %2973 = vmatpush1.bf16.msra.mxu0 0
        %2974 = vmatprep.subr.bf16.mxu0 0
        %2975 = vmatpush1.bf16.msra.mxu0 0
        %2976 = vmatprep.subr.bf16.mxu0 0
        %2977 = vmatpush1.bf16.msra.mxu0 0
        %2978 = vmatprep.subr.bf16.mxu0 0
        %2979 = vmatpush1.bf16.msra.mxu0 0
        %2980 = vmatprep.subr.bf16.mxu0 0
        %2981 = vmatpush1.bf16.msra.mxu0 0
        %2982 = vmatprep.subr.bf16.mxu0 0
        %2983 = vmatpush1.bf16.msra.mxu0 0
        %2984 = vmatprep.subr.bf16.mxu0 0
        %2985 = vmatpush1.bf16.msra.mxu0 0
        %2986 = vmatprep.subr.bf16.mxu0 0
        %2987 = vmatpush1.bf16.msra.mxu0 0
        %2988 = vmatprep.subr.bf16.mxu0 0
        %2989 = vmatpush1.bf16.msra.mxu0 0
        %2990 = vmatprep.subr.bf16.mxu0 0
        %2991 = vmatpush1.bf16.msra.mxu0 0
        %2992 = vmatprep.mubr.bf16.mxu0 0
        %2993 = vmatmul.mubr.bf16.gmra.mrb[0].mxu0 %v2955
        %v2994 = vpop.f32.mrb[0].mxu0
        %v2995 = vadd.f32 0.0, %v2994
        %v2996 = vpop.f32.mrb[0].mxu0
        %v2997 = vadd.f32 0.0, %v2996
        %v2998 = vpop.f32.mrb[0].mxu0
        %v2999 = vadd.f32 0.0, %v2998
        %v3000 = vpop.f32.mrb[0].mxu0
        %v3001 = vadd.f32 0.0, %v3000
        %3002 = vmatprep.mubr.bf16.mxu0 0
        %3003 = vmatmul.mubr.bf16.gmra.mrb[0].mxu0 %v2958
        %v3004 = vpop.f32.mrb[0].mxu0
        %v3005 = vadd.f32 0.0, %v3004
        %v3006 = vpop.f32.mrb[0].mxu0
        %v3007 = vadd.f32 0.0, %v3006
        %v3008 = vpop.f32.mrb[0].mxu0
        %v3009 = vadd.f32 0.0, %v3008
        %v3010 = vpop.f32.mrb[0].mxu0
        %v3011 = vadd.f32 0.0, %v3010
        %3012 = vdwg.mxu0
        %3013 = vmatprep.subr.bf16.mxu0 %v2938
        %3014 = vmatpush1.bf16.msra.mxu0 %v2937
        %3015 = vmatprep.subr.bf16.mxu0 0
        %3016 = vmatpush1.bf16.msra.mxu0 0
        %3017 = vmatprep.subr.bf16.mxu0 0
        %3018 = vmatpush1.bf16.msra.mxu0 0
        %3019 = vmatprep.subr.bf16.mxu0 0
        %3020 = vmatpush1.bf16.msra.mxu0 0
        %3021 = vmatprep.subr.bf16.mxu0 0
        %3022 = vmatpush1.bf16.msra.mxu0 0
        %3023 = vmatprep.subr.bf16.mxu0 0
        %3024 = vmatpush1.bf16.msra.mxu0 0
        %3025 = vmatprep.subr.bf16.mxu0 0
        %3026 = vmatpush1.bf16.msra.mxu0 0
        %3027 = vmatprep.subr.bf16.mxu0 0
        %3028 = vmatpush1.bf16.msra.mxu0 0
        %3029 = vmatprep.subr.bf16.mxu0 0
        %3030 = vmatpush1.bf16.msra.mxu0 0
        %3031 = vmatprep.subr.bf16.mxu0 0
        %3032 = vmatpush1.bf16.msra.mxu0 0
        %3033 = vmatprep.subr.bf16.mxu0 0
        %3034 = vmatpush1.bf16.msra.mxu0 0
        %3035 = vmatprep.subr.bf16.mxu0 0
        %3036 = vmatpush1.bf16.msra.mxu0 0
        %3037 = vmatprep.subr.bf16.mxu0 0
        %3038 = vmatpush1.bf16.msra.mxu0 0
        %3039 = vmatprep.subr.bf16.mxu0 0
        %3040 = vmatpush1.bf16.msra.mxu0 0
        %3041 = vmatprep.subr.bf16.mxu0 0
        %3042 = vmatpush1.bf16.msra.mxu0 0
        %3043 = vmatprep.subr.bf16.mxu0 0
        %3044 = vmatpush1.bf16.msra.mxu0 0
        %3045 = vmatprep.mubr.bf16.mxu0 0
        %3046 = vmatmul.mubr.bf16.gmra.mrb[0].mxu0 %v2955
        %v3047 = vpop.f32.mrb[0].mxu0
        %v3048 = vadd.f32 0.0, %v3047
        %v3049 = vpop.f32.mrb[0].mxu0
        %v3050 = vadd.f32 0.0, %v3049
        %v3051 = vpop.f32.mrb[0].mxu0
        %v3052 = vadd.f32 0.0, %v3051
        %v3053 = vpop.f32.mrb[0].mxu0
        %v3054 = vadd.f32 0.0, %v3053
        %3055 = vmatprep.mubr.bf16.mxu0 0
        %3056 = vmatmul.mubr.bf16.gmra.mrb[0].mxu0 %v2958
        %v3057 = vpop.f32.mrb[0].mxu0
        %v3058 = vadd.f32 0.0, %v3057
        %v3059 = vpop.f32.mrb[0].mxu0
        %v3060 = vadd.f32 0.0, %v3059
        %v3061 = vpop.f32.mrb[0].mxu0
        %v3062 = vadd.f32 0.0, %v3061
        %v3063 = vpop.f32.mrb[0].mxu0
        %v3064 = vadd.f32 0.0, %v3063
        %3065 = vdwg.mxu0
        %3066 = vmatprep.subr.bf16.mxu0 %v2940
        %3067 = vmatpush1.bf16.msra.mxu0 %v2939
        %3068 = vmatprep.subr.bf16.mxu0 0
        %3069 = vmatpush1.bf16.msra.mxu0 0
        %3070 = vmatprep.subr.bf16.mxu0 0
        %3071 = vmatpush1.bf16.msra.mxu0 0
        %3072 = vmatprep.subr.bf16.mxu0 0
        %3073 = vmatpush1.bf16.msra.mxu0 0
        %3074 = vmatprep.subr.bf16.mxu0 0
        %3075 = vmatpush1.bf16.msra.mxu0 0
        %3076 = vmatprep.subr.bf16.mxu0 0
        %3077 = vmatpush1.bf16.msra.mxu0 0
        %3078 = vmatprep.subr.bf16.mxu0 0
        %3079 = vmatpush1.bf16.msra.mxu0 0
        %3080 = vmatprep.subr.bf16.mxu0 0
        %3081 = vmatpush1.bf16.msra.mxu0 0
        %3082 = vmatprep.subr.bf16.mxu0 0
        %3083 = vmatpush1.bf16.msra.mxu0 0
        %3084 = vmatprep.subr.bf16.mxu0 0
        %3085 = vmatpush1.bf16.msra.mxu0 0
        %3086 = vmatprep.subr.bf16.mxu0 0
        %3087 = vmatpush1.bf16.msra.mxu0 0
        %3088 = vmatprep.subr.bf16.mxu0 0
        %3089 = vmatpush1.bf16.msra.mxu0 0
        %3090 = vmatprep.subr.bf16.mxu0 0
        %3091 = vmatpush1.bf16.msra.mxu0 0
        %3092 = vmatprep.subr.bf16.mxu0 0
        %3093 = vmatpush1.bf16.msra.mxu0 0
        %3094 = vmatprep.subr.bf16.mxu0 0
        %3095 = vmatpush1.bf16.msra.mxu0 0
        %3096 = vmatprep.subr.bf16.mxu0 0
        %3097 = vmatpush1.bf16.msra.mxu0 0
        %3098 = vmatprep.mubr.bf16.mxu0 0
        %3099 = vmatmul.mubr.bf16.gmra.mrb[0].mxu0 %v2955
        %v3100 = vpop.f32.mrb[0].mxu0
        %v3101 = vadd.f32 0.0, %v3100
        %v3102 = vpop.f32.mrb[0].mxu0
        %v3103 = vadd.f32 0.0, %v3102
        %v3104 = vpop.f32.mrb[0].mxu0
        %v3105 = vadd.f32 0.0, %v3104
        %v3106 = vpop.f32.mrb[0].mxu0
        %v3107 = vadd.f32 0.0, %v3106
        %3108 = vmatprep.mubr.bf16.mxu0 0
        %3109 = vmatmul.mubr.bf16.gmra.mrb[0].mxu0 %v2958
        %v3110 = vpop.f32.mrb[0].mxu0
        %v3111 = vadd.f32 0.0, %v3110
        %v3112 = vpop.f32.mrb[0].mxu0
        %v3113 = vadd.f32 0.0, %v3112
        %v3114 = vpop.f32.mrb[0].mxu0
        %v3115 = vadd.f32 0.0, %v3114
        %v3116 = vpop.f32.mrb[0].mxu0
        %v3117 = vadd.f32 0.0, %v3116
        %3118 = vdwg.mxu0
        %3119 = vmatprep.subr.bf16.mxu0 %v2942
        %3120 = vmatpush1.bf16.msra.mxu0 %v2941
        %3121 = vmatprep.subr.bf16.mxu0 0
        %3122 = vmatpush1.bf16.msra.mxu0 0
        %3123 = vmatprep.subr.bf16.mxu0 0
        %3124 = vmatpush1.bf16.msra.mxu0 0
        %3125 = vmatprep.subr.bf16.mxu0 0
        %3126 = vmatpush1.bf16.msra.mxu0 0
        %3127 = vmatprep.subr.bf16.mxu0 0
        %3128 = vmatpush1.bf16.msra.mxu0 0
        %3129 = vmatprep.subr.bf16.mxu0 0
        %3130 = vmatpush1.bf16.msra.mxu0 0
        %3131 = vmatprep.subr.bf16.mxu0 0
        %3132 = vmatpush1.bf16.msra.mxu0 0
        %3133 = vmatprep.subr.bf16.mxu0 0
        %3134 = vmatpush1.bf16.msra.mxu0 0
        %3135 = vmatprep.subr.bf16.mxu0 0
        %3136 = vmatpush1.bf16.msra.mxu0 0
        %3137 = vmatprep.subr.bf16.mxu0 0
        %3138 = vmatpush1.bf16.msra.mxu0 0
        %3139 = vmatprep.subr.bf16.mxu0 0
        %3140 = vmatpush1.bf16.msra.mxu0 0
        %3141 = vmatprep.subr.bf16.mxu0 0
        %3142 = vmatpush1.bf16.msra.mxu0 0
        %3143 = vmatprep.subr.bf16.mxu0 0
        %3144 = vmatpush1.bf16.msra.mxu0 0
        %3145 = vmatprep.subr.bf16.mxu0 0
        %3146 = vmatpush1.bf16.msra.mxu0 0
        %3147 = vmatprep.subr.bf16.mxu0 0
        %3148 = vmatpush1.bf16.msra.mxu0 0
        %3149 = vmatprep.subr.bf16.mxu0 0
        %3150 = vmatpush1.bf16.msra.mxu0 0
        %3151 = vmatprep.mubr.bf16.mxu0 0
        %3152 = vmatmul.mubr.bf16.gmra.mrb[0].mxu0 %v2955
        %v3153 = vpop.f32.mrb[0].mxu0
        %v3154 = vadd.f32 0.0, %v3153
        %v3155 = vpop.f32.mrb[0].mxu0
        %v3156 = vadd.f32 0.0, %v3155
        %v3157 = vpop.f32.mrb[0].mxu0
        %v3158 = vadd.f32 0.0, %v3157
        %v3159 = vpop.f32.mrb[0].mxu0
        %v3160 = vadd.f32 0.0, %v3159
        %3161 = vmatprep.mubr.bf16.mxu0 0
        %3162 = vmatmul.mubr.bf16.gmra.mrb[0].mxu0 %v2958
        %v3163 = vpop.f32.mrb[0].mxu0
        %v3164 = vadd.f32 0.0, %v3163
        %v3165 = vpop.f32.mrb[0].mxu0
        %v3166 = vadd.f32 0.0, %v3165
        %v3167 = vpop.f32.mrb[0].mxu0
        %v3168 = vadd.f32 0.0, %v3167
        %v3169 = vpop.f32.mrb[0].mxu0
        %v3170 = vadd.f32 0.0, %v3169
        %3171 = vdwg.mxu0
        %v3172 = vpack.c.bf16 %v2999, %v2995
        %v3173 = vpack.c.bf16 %v3001, %v2997
        %v3174 = vpack.c.bf16 %v3052, %v3048
        %v3175 = vpack.c.bf16 %v3054, %v3050
        %v3176 = vpack.c.bf16 %v3105, %v3101
        %v3177 = vpack.c.bf16 %v3107, %v3103
        %v3178 = vpack.c.bf16 %v3158, %v3154
        %v3179 = vpack.c.bf16 %v3160, %v3156
        %v3180 = vpack.c.bf16 %v3009, %v3005
        %v3181 = vpack.c.bf16 %v3011, %v3007
        %v3182 = vpack.c.bf16 %v3062, %v3058
        %v3183 = vpack.c.bf16 %v3064, %v3060
        %v3184 = vpack.c.bf16 %v3115, %v3111
        %v3185 = vpack.c.bf16 %v3117, %v3113
        %v3186 = vpack.c.bf16 %v3168, %v3164
        %v3187 = vpack.c.bf16 %v3170, %v3166
        %v3188 = vld [vmem:[%s4] sm:$0xff]
        %v3189 = vld [vmem:[%s4 + $0x8] sm:$0xff]
        %v3190 = vld [vmem:[%s4 + $0x10] sm:$0xff]
        %v3191 = vld [vmem:[%s4 + $0x18] sm:$0xff]
        %v3192 = vld [vmem:[%s4 + $0x20] sm:$0xff]
        %v3193 = vld [vmem:[%s4 + $0x28] sm:$0xff]
        %v3194 = vld [vmem:[%s4 + $0x30] sm:$0xff]
        %v3195 = vld [vmem:[%s4 + $0x38] sm:$0xff]
        %v3196 = vld [vmem:[%s4 + $0x40] sm:$0xff]
        %v3197 = vld [vmem:[%s4 + $0x48] sm:$0xff]
        %v3198 = vld [vmem:[%s4 + $0x50] sm:$0xff]
        %v3199 = vld [vmem:[%s4 + $0x58] sm:$0xff]
        %v3200 = vld [vmem:[%s4 + $0x60] sm:$0xff]
        %v3201 = vld [vmem:[%s4 + $0x68] sm:$0xff]
        %v3202 = vld [vmem:[%s4 + $0x70] sm:$0xff]
        %v3203 = vld [vmem:[%s4 + $0x78] sm:$0xff]
        %v3204 = vld [vmem:[%s4 + $0x80] sm:$0xff]
        %v3205 = vld [vmem:[%s4 + $0x88] sm:$0xff]
        %v3206 = vld [vmem:[%s4 + $0x90] sm:$0xff]
        %v3207 = vld [vmem:[%s4 + $0x98] sm:$0xff]
        %v3208 = vld [vmem:[%s4 + $0xa0] sm:$0xff]
        %v3209 = vld [vmem:[%s4 + $0xa8] sm:$0xff]
        %v3210 = vld [vmem:[%s4 + $0xb0] sm:$0xff]
        %v3211 = vld [vmem:[%s4 + $0xb8] sm:$0xff]
        %v3212 = vld [vmem:[%s4 + $0xc0] sm:$0xff]
        %v3213 = vld [vmem:[%s4 + $0xc8] sm:$0xff]
        %v3214 = vld [vmem:[%s4 + $0xd0] sm:$0xff]
        %v3215 = vld [vmem:[%s4 + $0xd8] sm:$0xff]
        %v3216 = vld [vmem:[%s4 + $0xe0] sm:$0xff]
        %v3217 = vld [vmem:[%s4 + $0xe8] sm:$0xff]
        %v3218 = vld [vmem:[%s4 + $0xf0] sm:$0xff]
        %v3219 = vld [vmem:[%s4 + $0xf8] sm:$0xff]
        %v3220 = vld [vmem:[%s4 + $0x100] sm:$0xff]
        %v3221 = vld [vmem:[%s4 + $0x108] sm:$0xff]
        %v3222 = vld [vmem:[%s4 + $0x110] sm:$0xff]
        %v3223 = vld [vmem:[%s4 + $0x118] sm:$0xff]
        %v3224 = vld [vmem:[%s4 + $0x120] sm:$0xff]
        %v3225 = vld [vmem:[%s4 + $0x128] sm:$0xff]
        %v3226 = vld [vmem:[%s4 + $0x130] sm:$0xff]
        %v3227 = vld [vmem:[%s4 + $0x138] sm:$0xff]
        %v3228 = vld [vmem:[%s4 + $0x140] sm:$0xff]
        %v3229 = vld [vmem:[%s4 + $0x148] sm:$0xff]
        %v3230 = vld [vmem:[%s4 + $0x150] sm:$0xff]
        %v3231 = vld [vmem:[%s4 + $0x158] sm:$0xff]
        %v3232 = vld [vmem:[%s4 + $0x160] sm:$0xff]
        %v3233 = vld [vmem:[%s4 + $0x168] sm:$0xff]
        %v3234 = vld [vmem:[%s4 + $0x170] sm:$0xff]
        %v3235 = vld [vmem:[%s4 + $0x178] sm:$0xff]
        %v3236 = vld [vmem:[%s4 + $0x180] sm:$0xff]
        %v3237 = vld [vmem:[%s4 + $0x188] sm:$0xff]
        %v3238 = vld [vmem:[%s4 + $0x190] sm:$0xff]
        %v3239 = vld [vmem:[%s4 + $0x198] sm:$0xff]
        %v3240 = vld [vmem:[%s4 + $0x1a0] sm:$0xff]
        %v3241 = vld [vmem:[%s4 + $0x1a8] sm:$0xff]
        %v3242 = vld [vmem:[%s4 + $0x1b0] sm:$0xff]
        %v3243 = vld [vmem:[%s4 + $0x1b8] sm:$0xff]
        %v3244 = vld [vmem:[%s4 + $0x1c0] sm:$0xff]
        %v3245 = vld [vmem:[%s4 + $0x1c8] sm:$0xff]
        %v3246 = vld [vmem:[%s4 + $0x1d0] sm:$0xff]
        %v3247 = vld [vmem:[%s4 + $0x1d8] sm:$0xff]
        %v3248 = vld [vmem:[%s4 + $0x1e0] sm:$0xff]
        %v3249 = vld [vmem:[%s4 + $0x1e8] sm:$0xff]
        %v3250 = vld [vmem:[%s4 + $0x1f0] sm:$0xff]
        %v3251 = vld [vmem:[%s4 + $0x1f8] sm:$0xff]
        %v3252 = vld [vmem:[%s4 + $0x200] sm:$0xff]
        %v3253 = vld [vmem:[%s4 + $0x208] sm:$0xff]
        %v3254 = vld [vmem:[%s4 + $0x210] sm:$0xff]
        %v3255 = vld [vmem:[%s4 + $0x218] sm:$0xff]
        %v3256 = vld [vmem:[%s4 + $0x220] sm:$0xff]
        %v3257 = vld [vmem:[%s4 + $0x228] sm:$0xff]
        %v3258 = vld [vmem:[%s4 + $0x230] sm:$0xff]
        %v3259 = vld [vmem:[%s4 + $0x238] sm:$0xff]
        %v3260 = vld [vmem:[%s4 + $0x240] sm:$0xff]
        %v3261 = vld [vmem:[%s4 + $0x248] sm:$0xff]
        %v3262 = vld [vmem:[%s4 + $0x250] sm:$0xff]
        %v3263 = vld [vmem:[%s4 + $0x258] sm:$0xff]
        %v3264 = vld [vmem:[%s4 + $0x260] sm:$0xff]
        %v3265 = vld [vmem:[%s4 + $0x268] sm:$0xff]
        %v3266 = vld [vmem:[%s4 + $0x270] sm:$0xff]
        %v3267 = vld [vmem:[%s4 + $0x278] sm:$0xff]
        %v3268 = vld [vmem:[%s4 + $0x280] sm:$0xff]
        %v3269 = vld [vmem:[%s4 + $0x288] sm:$0xff]
        %v3270 = vld [vmem:[%s4 + $0x290] sm:$0xff]
        %v3271 = vld [vmem:[%s4 + $0x298] sm:$0xff]
        %v3272 = vld [vmem:[%s4 + $0x2a0] sm:$0xff]
        %v3273 = vld [vmem:[%s4 + $0x2a8] sm:$0xff]
        %v3274 = vld [vmem:[%s4 + $0x2b0] sm:$0xff]
        %v3275 = vld [vmem:[%s4 + $0x2b8] sm:$0xff]
        %v3276 = vld [vmem:[%s4 + $0x2c0] sm:$0xff]
        %v3277 = vld [vmem:[%s4 + $0x2c8] sm:$0xff]
        %v3278 = vld [vmem:[%s4 + $0x2d0] sm:$0xff]
        %v3279 = vld [vmem:[%s4 + $0x2d8] sm:$0xff]
        %v3280 = vld [vmem:[%s4 + $0x2e0] sm:$0xff]
        %v3281 = vld [vmem:[%s4 + $0x2e8] sm:$0xff]
        %v3282 = vld [vmem:[%s4 + $0x2f0] sm:$0xff]
        %v3283 = vld [vmem:[%s4 + $0x2f8] sm:$0xff]
        %v3284 = vld [vmem:[%s4 + $0x300] sm:$0xff]
        %v3285 = vld [vmem:[%s4 + $0x308] sm:$0xff]
        %v3286 = vld [vmem:[%s4 + $0x310] sm:$0xff]
        %v3287 = vld [vmem:[%s4 + $0x318] sm:$0xff]
        %v3288 = vld [vmem:[%s4 + $0x320] sm:$0xff]
        %v3289 = vld [vmem:[%s4 + $0x328] sm:$0xff]
        %v3290 = vld [vmem:[%s4 + $0x330] sm:$0xff]
        %v3291 = vld [vmem:[%s4 + $0x338] sm:$0xff]
        %v3292 = vld [vmem:[%s4 + $0x340] sm:$0xff]
        %v3293 = vld [vmem:[%s4 + $0x348] sm:$0xff]
        %v3294 = vld [vmem:[%s4 + $0x350] sm:$0xff]
        %v3295 = vld [vmem:[%s4 + $0x358] sm:$0xff]
        %v3296 = vld [vmem:[%s4 + $0x360] sm:$0xff]
        %v3297 = vld [vmem:[%s4 + $0x368] sm:$0xff]
        %v3298 = vld [vmem:[%s4 + $0x370] sm:$0xff]
        %v3299 = vld [vmem:[%s4 + $0x378] sm:$0xff]
        %v3300 = vld [vmem:[%s4 + $0x380] sm:$0xff]
        %v3301 = vld [vmem:[%s4 + $0x388] sm:$0xff]
        %v3302 = vld [vmem:[%s4 + $0x390] sm:$0xff]
        %v3303 = vld [vmem:[%s4 + $0x398] sm:$0xff]
        %v3304 = vld [vmem:[%s4 + $0x3a0] sm:$0xff]
        %v3305 = vld [vmem:[%s4 + $0x3a8] sm:$0xff]
        %v3306 = vld [vmem:[%s4 + $0x3b0] sm:$0xff]
        %v3307 = vld [vmem:[%s4 + $0x3b8] sm:$0xff]
        %v3308 = vld [vmem:[%s4 + $0x3c0] sm:$0xff]
        %v3309 = vld [vmem:[%s4 + $0x3c8] sm:$0xff]
        %v3310 = vld [vmem:[%s4 + $0x3d0] sm:$0xff]
        %v3311 = vld [vmem:[%s4 + $0x3d8] sm:$0xff]
        %v3312 = vld [vmem:[%s4 + $0x3e0] sm:$0xff]
        %v3313 = vld [vmem:[%s4 + $0x3e8] sm:$0xff]
        %v3314 = vld [vmem:[%s4 + $0x3f0] sm:$0xff]
        %v3315 = vld [vmem:[%s4 + $0x3f8] sm:$0xff]
        %v3444 = vunpack.c.l.b16 %v3188
        %v3445 = vunpack.c.h.b16 %v3188
        %v3446 = vunpack.c.l.b16 %v3189
        %v3447 = vunpack.c.h.b16 %v3189
        %v3448 = vunpack.c.l.b16 %v3190
        %v3449 = vunpack.c.h.b16 %v3190
        %v3450 = vunpack.c.l.b16 %v3191
        %v3451 = vunpack.c.h.b16 %v3191
        %v3452 = vunpack.c.l.b16 %v3192
        %v3453 = vunpack.c.h.b16 %v3192
        %v3454 = vunpack.c.l.b16 %v3193
        %v3455 = vunpack.c.h.b16 %v3193
        %v3456 = vunpack.c.l.b16 %v3194
        %v3457 = vunpack.c.h.b16 %v3194
        %v3458 = vunpack.c.l.b16 %v3195
        %v3459 = vunpack.c.h.b16 %v3195
        %v3460 = vunpack.c.l.b16 %v3196
        %v3461 = vunpack.c.h.b16 %v3196
        %v3462 = vunpack.c.l.b16 %v3197
        %v3463 = vunpack.c.h.b16 %v3197
        %v3464 = vunpack.c.l.b16 %v3198
        %v3465 = vunpack.c.h.b16 %v3198
        %v3466 = vunpack.c.l.b16 %v3199
        %v3467 = vunpack.c.h.b16 %v3199
        %v3468 = vunpack.c.l.b16 %v3200
        %v3469 = vunpack.c.h.b16 %v3200
        %v3470 = vunpack.c.l.b16 %v3201
        %v3471 = vunpack.c.h.b16 %v3201
        %v3472 = vunpack.c.l.b16 %v3202
        %v3473 = vunpack.c.h.b16 %v3202
        %v3474 = vunpack.c.l.b16 %v3203
        %v3475 = vunpack.c.h.b16 %v3203
        %v3476 = vunpack.c.l.b16 %v3204
        %v3477 = vunpack.c.h.b16 %v3204
        %v3478 = vunpack.c.l.b16 %v3205
        %v3479 = vunpack.c.h.b16 %v3205
        %v3480 = vunpack.c.l.b16 %v3206
        %v3481 = vunpack.c.h.b16 %v3206
        %v3482 = vunpack.c.l.b16 %v3207
        %v3483 = vunpack.c.h.b16 %v3207
        %v3484 = vunpack.c.l.b16 %v3208
        %v3485 = vunpack.c.h.b16 %v3208
        %v3486 = vunpack.c.l.b16 %v3209
        %v3487 = vunpack.c.h.b16 %v3209
        %v3488 = vunpack.c.l.b16 %v3210
        %v3489 = vunpack.c.h.b16 %v3210
        %v3490 = vunpack.c.l.b16 %v3211
        %v3491 = vunpack.c.h.b16 %v3211
        %v3492 = vunpack.c.l.b16 %v3212
        %v3493 = vunpack.c.h.b16 %v3212
        %v3494 = vunpack.c.l.b16 %v3213
        %v3495 = vunpack.c.h.b16 %v3213
        %v3496 = vunpack.c.l.b16 %v3214
        %v3497 = vunpack.c.h.b16 %v3214
        %v3498 = vunpack.c.l.b16 %v3215
        %v3499 = vunpack.c.h.b16 %v3215
        %v3500 = vunpack.c.l.b16 %v3216
        %v3501 = vunpack.c.h.b16 %v3216
        %v3502 = vunpack.c.l.b16 %v3217
        %v3503 = vunpack.c.h.b16 %v3217
        %v3504 = vunpack.c.l.b16 %v3218
        %v3505 = vunpack.c.h.b16 %v3218
        %v3506 = vunpack.c.l.b16 %v3219
        %v3507 = vunpack.c.h.b16 %v3219
        %v3508 = vunpack.c.l.b16 %v3220
        %v3509 = vunpack.c.h.b16 %v3220
        %v3510 = vunpack.c.l.b16 %v3221
        %v3511 = vunpack.c.h.b16 %v3221
        %v3512 = vunpack.c.l.b16 %v3222
        %v3513 = vunpack.c.h.b16 %v3222
        %v3514 = vunpack.c.l.b16 %v3223
        %v3515 = vunpack.c.h.b16 %v3223
        %v3516 = vunpack.c.l.b16 %v3224
        %v3517 = vunpack.c.h.b16 %v3224
        %v3518 = vunpack.c.l.b16 %v3225
        %v3519 = vunpack.c.h.b16 %v3225
        %v3520 = vunpack.c.l.b16 %v3226
        %v3521 = vunpack.c.h.b16 %v3226
        %v3522 = vunpack.c.l.b16 %v3227
        %v3523 = vunpack.c.h.b16 %v3227
        %v3524 = vunpack.c.l.b16 %v3228
        %v3525 = vunpack.c.h.b16 %v3228
        %v3526 = vunpack.c.l.b16 %v3229
        %v3527 = vunpack.c.h.b16 %v3229
        %v3528 = vunpack.c.l.b16 %v3230
        %v3529 = vunpack.c.h.b16 %v3230
        %v3530 = vunpack.c.l.b16 %v3231
        %v3531 = vunpack.c.h.b16 %v3231
        %v3532 = vunpack.c.l.b16 %v3232
        %v3533 = vunpack.c.h.b16 %v3232
        %v3534 = vunpack.c.l.b16 %v3233
        %v3535 = vunpack.c.h.b16 %v3233
        %v3536 = vunpack.c.l.b16 %v3234
        %v3537 = vunpack.c.h.b16 %v3234
        %v3538 = vunpack.c.l.b16 %v3235
        %v3539 = vunpack.c.h.b16 %v3235
        %v3540 = vunpack.c.l.b16 %v3236
        %v3541 = vunpack.c.h.b16 %v3236
        %v3542 = vunpack.c.l.b16 %v3237
        %v3543 = vunpack.c.h.b16 %v3237
        %v3544 = vunpack.c.l.b16 %v3238
        %v3545 = vunpack.c.h.b16 %v3238
        %v3546 = vunpack.c.l.b16 %v3239
        %v3547 = vunpack.c.h.b16 %v3239
        %v3548 = vunpack.c.l.b16 %v3240
        %v3549 = vunpack.c.h.b16 %v3240
        %v3550 = vunpack.c.l.b16 %v3241
        %v3551 = vunpack.c.h.b16 %v3241
        %v3552 = vunpack.c.l.b16 %v3242
        %v3553 = vunpack.c.h.b16 %v3242
        %v3554 = vunpack.c.l.b16 %v3243
        %v3555 = vunpack.c.h.b16 %v3243
        %v3556 = vunpack.c.l.b16 %v3244
        %v3557 = vunpack.c.h.b16 %v3244
        %v3558 = vunpack.c.l.b16 %v3245
        %v3559 = vunpack.c.h.b16 %v3245
        %v3560 = vunpack.c.l.b16 %v3246
        %v3561 = vunpack.c.h.b16 %v3246
        %v3562 = vunpack.c.l.b16 %v3247
        %v3563 = vunpack.c.h.b16 %v3247
        %v3564 = vunpack.c.l.b16 %v3248
        %v3565 = vunpack.c.h.b16 %v3248
        %v3566 = vunpack.c.l.b16 %v3249
        %v3567 = vunpack.c.h.b16 %v3249
        %v3568 = vunpack.c.l.b16 %v3250
        %v3569 = vunpack.c.h.b16 %v3250
        %v3570 = vunpack.c.l.b16 %v3251
        %v3571 = vunpack.c.h.b16 %v3251
        %v3572 = vunpack.c.l.b16 %v3252
        %v3573 = vunpack.c.h.b16 %v3252
        %v3574 = vunpack.c.l.b16 %v3253
        %v3575 = vunpack.c.h.b16 %v3253
        %v3576 = vunpack.c.l.b16 %v3254
        %v3577 = vunpack.c.h.b16 %v3254
        %v3578 = vunpack.c.l.b16 %v3255
        %v3579 = vunpack.c.h.b16 %v3255
        %v3580 = vunpack.c.l.b16 %v3256
        %v3581 = vunpack.c.h.b16 %v3256
        %v3582 = vunpack.c.l.b16 %v3257
        %v3583 = vunpack.c.h.b16 %v3257
        %v3584 = vunpack.c.l.b16 %v3258
        %v3585 = vunpack.c.h.b16 %v3258
        %v3586 = vunpack.c.l.b16 %v3259
        %v3587 = vunpack.c.h.b16 %v3259
        %v3588 = vunpack.c.l.b16 %v3260
        %v3589 = vunpack.c.h.b16 %v3260
        %v3590 = vunpack.c.l.b16 %v3261
        %v3591 = vunpack.c.h.b16 %v3261
        %v3592 = vunpack.c.l.b16 %v3262
        %v3593 = vunpack.c.h.b16 %v3262
        %v3594 = vunpack.c.l.b16 %v3263
        %v3595 = vunpack.c.h.b16 %v3263
        %v3596 = vunpack.c.l.b16 %v3264
        %v3597 = vunpack.c.h.b16 %v3264
        %v3598 = vunpack.c.l.b16 %v3265
        %v3599 = vunpack.c.h.b16 %v3265
        %v3600 = vunpack.c.l.b16 %v3266
        %v3601 = vunpack.c.h.b16 %v3266
        %v3602 = vunpack.c.l.b16 %v3267
        %v3603 = vunpack.c.h.b16 %v3267
        %v3604 = vunpack.c.l.b16 %v3268
        %v3605 = vunpack.c.h.b16 %v3268
        %v3606 = vunpack.c.l.b16 %v3269
        %v3607 = vunpack.c.h.b16 %v3269
        %v3608 = vunpack.c.l.b16 %v3270
        %v3609 = vunpack.c.h.b16 %v3270
        %v3610 = vunpack.c.l.b16 %v3271
        %v3611 = vunpack.c.h.b16 %v3271
        %v3612 = vunpack.c.l.b16 %v3272
        %v3613 = vunpack.c.h.b16 %v3272
        %v3614 = vunpack.c.l.b16 %v3273
        %v3615 = vunpack.c.h.b16 %v3273
        %v3616 = vunpack.c.l.b16 %v3274
        %v3617 = vunpack.c.h.b16 %v3274
        %v3618 = vunpack.c.l.b16 %v3275
        %v3619 = vunpack.c.h.b16 %v3275
        %v3620 = vunpack.c.l.b16 %v3276
        %v3621 = vunpack.c.h.b16 %v3276
        %v3622 = vunpack.c.l.b16 %v3277
        %v3623 = vunpack.c.h.b16 %v3277
        %v3624 = vunpack.c.l.b16 %v3278
        %v3625 = vunpack.c.h.b16 %v3278
        %v3626 = vunpack.c.l.b16 %v3279
        %v3627 = vunpack.c.h.b16 %v3279
        %v3628 = vunpack.c.l.b16 %v3280
        %v3629 = vunpack.c.h.b16 %v3280
        %v3630 = vunpack.c.l.b16 %v3281
        %v3631 = vunpack.c.h.b16 %v3281
        %v3632 = vunpack.c.l.b16 %v3282
        %v3633 = vunpack.c.h.b16 %v3282
        %v3634 = vunpack.c.l.b16 %v3283
        %v3635 = vunpack.c.h.b16 %v3283
        %v3636 = vunpack.c.l.b16 %v3284
        %v3637 = vunpack.c.h.b16 %v3284
        %v3638 = vunpack.c.l.b16 %v3285
        %v3639 = vunpack.c.h.b16 %v3285
        %v3640 = vunpack.c.l.b16 %v3286
        %v3641 = vunpack.c.h.b16 %v3286
        %v3642 = vunpack.c.l.b16 %v3287
        %v3643 = vunpack.c.h.b16 %v3287
        %v3644 = vunpack.c.l.b16 %v3288
        %v3645 = vunpack.c.h.b16 %v3288
        %v3646 = vunpack.c.l.b16 %v3289
        %v3647 = vunpack.c.h.b16 %v3289
        %v3648 = vunpack.c.l.b16 %v3290
        %v3649 = vunpack.c.h.b16 %v3290
        %v3650 = vunpack.c.l.b16 %v3291
        %v3651 = vunpack.c.h.b16 %v3291
        %v3652 = vunpack.c.l.b16 %v3292
        %v3653 = vunpack.c.h.b16 %v3292
        %v3654 = vunpack.c.l.b16 %v3293
        %v3655 = vunpack.c.h.b16 %v3293
        %v3656 = vunpack.c.l.b16 %v3294
        %v3657 = vunpack.c.h.b16 %v3294
        %v3658 = vunpack.c.l.b16 %v3295
        %v3659 = vunpack.c.h.b16 %v3295
        %v3660 = vunpack.c.l.b16 %v3296
        %v3661 = vunpack.c.h.b16 %v3296
        %v3662 = vunpack.c.l.b16 %v3297
        %v3663 = vunpack.c.h.b16 %v3297
        %v3664 = vunpack.c.l.b16 %v3298
        %v3665 = vunpack.c.h.b16 %v3298
        %v3666 = vunpack.c.l.b16 %v3299
        %v3667 = vunpack.c.h.b16 %v3299
        %v3668 = vunpack.c.l.b16 %v3300
        %v3669 = vunpack.c.h.b16 %v3300
        %v3670 = vunpack.c.l.b16 %v3301
        %v3671 = vunpack.c.h.b16 %v3301
        %v3672 = vunpack.c.l.b16 %v3302
        %v3673 = vunpack.c.h.b16 %v3302
        %v3674 = vunpack.c.l.b16 %v3303
        %v3675 = vunpack.c.h.b16 %v3303
        %v3676 = vunpack.c.l.b16 %v3304
        %v3677 = vunpack.c.h.b16 %v3304
        %v3678 = vunpack.c.l.b16 %v3305
        %v3679 = vunpack.c.h.b16 %v3305
        %v3680 = vunpack.c.l.b16 %v3306
        %v3681 = vunpack.c.h.b16 %v3306
        %v3682 = vunpack.c.l.b16 %v3307
        %v3683 = vunpack.c.h.b16 %v3307
        %v3684 = vunpack.c.l.b16 %v3308
        %v3685 = vunpack.c.h.b16 %v3308
        %v3686 = vunpack.c.l.b16 %v3309
        %v3687 = vunpack.c.h.b16 %v3309
        %v3688 = vunpack.c.l.b16 %v3310
        %v3689 = vunpack.c.h.b16 %v3310
        %v3690 = vunpack.c.l.b16 %v3311
        %v3691 = vunpack.c.h.b16 %v3311
        %v3692 = vunpack.c.l.b16 %v3312
        %v3693 = vunpack.c.h.b16 %v3312
        %v3694 = vunpack.c.l.b16 %v3313
        %v3695 = vunpack.c.h.b16 %v3313
        %v3696 = vunpack.c.l.b16 %v3314
        %v3697 = vunpack.c.h.b16 %v3314
        %v3698 = vunpack.c.l.b16 %v3315
        %v3699 = vunpack.c.h.b16 %v3315
        %v3700 = vpack.c.b16 %v3446, %v3444
        %v3701 = vpack.c.b16 %v3447, %v3445
        %v3702 = vpack.c.b16 %v3450, %v3448
        %v3703 = vpack.c.b16 %v3451, %v3449
        %v3704 = vpack.c.b16 %v3454, %v3452
        %v3705 = vpack.c.b16 %v3455, %v3453
        %v3706 = vpack.c.b16 %v3458, %v3456
        %v3707 = vpack.c.b16 %v3459, %v3457
        %v3708 = vpack.c.b16 %v3462, %v3460
        %v3709 = vpack.c.b16 %v3463, %v3461
        %v3710 = vpack.c.b16 %v3466, %v3464
        %v3711 = vpack.c.b16 %v3467, %v3465
        %v3712 = vpack.c.b16 %v3470, %v3468
        %v3713 = vpack.c.b16 %v3471, %v3469
        %v3714 = vpack.c.b16 %v3474, %v3472
        %v3715 = vpack.c.b16 %v3475, %v3473
        %v3716 = vpack.c.b16 %v3478, %v3476
        %v3717 = vpack.c.b16 %v3479, %v3477
        %v3718 = vpack.c.b16 %v3482, %v3480
        %v3719 = vpack.c.b16 %v3483, %v3481
        %v3720 = vpack.c.b16 %v3486, %v3484
        %v3721 = vpack.c.b16 %v3487, %v3485
        %v3722 = vpack.c.b16 %v3490, %v3488
        %v3723 = vpack.c.b16 %v3491, %v3489
        %v3724 = vpack.c.b16 %v3494, %v3492
        %v3725 = vpack.c.b16 %v3495, %v3493
        %v3726 = vpack.c.b16 %v3498, %v3496
        %v3727 = vpack.c.b16 %v3499, %v3497
        %v3728 = vpack.c.b16 %v3502, %v3500
        %v3729 = vpack.c.b16 %v3503, %v3501
        %v3730 = vpack.c.b16 %v3506, %v3504
        %v3731 = vpack.c.b16 %v3507, %v3505
        %v3732 = vpack.c.b16 %v3510, %v3508
        %v3733 = vpack.c.b16 %v3511, %v3509
        %v3734 = vpack.c.b16 %v3514, %v3512
        %v3735 = vpack.c.b16 %v3515, %v3513
        %v3736 = vpack.c.b16 %v3518, %v3516
        %v3737 = vpack.c.b16 %v3519, %v3517
        %v3738 = vpack.c.b16 %v3522, %v3520
        %v3739 = vpack.c.b16 %v3523, %v3521
        %v3740 = vpack.c.b16 %v3526, %v3524
        %v3741 = vpack.c.b16 %v3527, %v3525
        %v3742 = vpack.c.b16 %v3530, %v3528
        %v3743 = vpack.c.b16 %v3531, %v3529
        %v3744 = vpack.c.b16 %v3534, %v3532
        %v3745 = vpack.c.b16 %v3535, %v3533
        %v3746 = vpack.c.b16 %v3538, %v3536
        %v3747 = vpack.c.b16 %v3539, %v3537
        %v3748 = vpack.c.b16 %v3542, %v3540
        %v3749 = vpack.c.b16 %v3543, %v3541
        %v3750 = vpack.c.b16 %v3546, %v3544
        %v3751 = vpack.c.b16 %v3547, %v3545
        %v3752 = vpack.c.b16 %v3550, %v3548
        %v3753 = vpack.c.b16 %v3551, %v3549
        %v3754 = vpack.c.b16 %v3554, %v3552
        %v3755 = vpack.c.b16 %v3555, %v3553
        %v3756 = vpack.c.b16 %v3558, %v3556
        %v3757 = vpack.c.b16 %v3559, %v3557
        %v3758 = vpack.c.b16 %v3562, %v3560
        %v3759 = vpack.c.b16 %v3563, %v3561
        %v3760 = vpack.c.b16 %v3566, %v3564
        %v3761 = vpack.c.b16 %v3567, %v3565
        %v3762 = vpack.c.b16 %v3570, %v3568
        %v3763 = vpack.c.b16 %v3571, %v3569
        %v3764 = vpack.c.b16 %v3574, %v3572
        %v3765 = vpack.c.b16 %v3575, %v3573
        %v3766 = vpack.c.b16 %v3578, %v3576
        %v3767 = vpack.c.b16 %v3579, %v3577
        %v3768 = vpack.c.b16 %v3582, %v3580
        %v3769 = vpack.c.b16 %v3583, %v3581
        %v3770 = vpack.c.b16 %v3586, %v3584
        %v3771 = vpack.c.b16 %v3587, %v3585
        %v3772 = vpack.c.b16 %v3590, %v3588
        %v3773 = vpack.c.b16 %v3591, %v3589
        %v3774 = vpack.c.b16 %v3594, %v3592
        %v3775 = vpack.c.b16 %v3595, %v3593
        %v3776 = vpack.c.b16 %v3598, %v3596
        %v3777 = vpack.c.b16 %v3599, %v3597
        %v3778 = vpack.c.b16 %v3602, %v3600
        %v3779 = vpack.c.b16 %v3603, %v3601
        %v3780 = vpack.c.b16 %v3606, %v3604
        %v3781 = vpack.c.b16 %v3607, %v3605
        %v3782 = vpack.c.b16 %v3610, %v3608
        %v3783 = vpack.c.b16 %v3611, %v3609
        %v3784 = vpack.c.b16 %v3614, %v3612
        %v3785 = vpack.c.b16 %v3615, %v3613
        %v3786 = vpack.c.b16 %v3618, %v3616
        %v3787 = vpack.c.b16 %v3619, %v3617
        %v3788 = vpack.c.b16 %v3622, %v3620
        %v3789 = vpack.c.b16 %v3623, %v3621
        %v3790 = vpack.c.b16 %v3626, %v3624
        %v3791 = vpack.c.b16 %v3627, %v3625
        %v3792 = vpack.c.b16 %v3630, %v3628
        %v3793 = vpack.c.b16 %v3631, %v3629
        %v3794 = vpack.c.b16 %v3634, %v3632
        %v3795 = vpack.c.b16 %v3635, %v3633
        %v3796 = vpack.c.b16 %v3638, %v3636
        %v3797 = vpack.c.b16 %v3639, %v3637
        %v3798 = vpack.c.b16 %v3642, %v3640
        %v3799 = vpack.c.b16 %v3643, %v3641
        %v3800 = vpack.c.b16 %v3646, %v3644
        %v3801 = vpack.c.b16 %v3647, %v3645
        %v3802 = vpack.c.b16 %v3650, %v3648
        %v3803 = vpack.c.b16 %v3651, %v3649
        %v3804 = vpack.c.b16 %v3654, %v3652
        %v3805 = vpack.c.b16 %v3655, %v3653
        %v3806 = vpack.c.b16 %v3658, %v3656
        %v3807 = vpack.c.b16 %v3659, %v3657
        %v3808 = vpack.c.b16 %v3662, %v3660
        %v3809 = vpack.c.b16 %v3663, %v3661
        %v3810 = vpack.c.b16 %v3666, %v3664
        %v3811 = vpack.c.b16 %v3667, %v3665
        %v3812 = vpack.c.b16 %v3670, %v3668
        %v3813 = vpack.c.b16 %v3671, %v3669
        %v3814 = vpack.c.b16 %v3674, %v3672
        %v3815 = vpack.c.b16 %v3675, %v3673
        %v3816 = vpack.c.b16 %v3678, %v3676
        %v3817 = vpack.c.b16 %v3679, %v3677
        %v3818 = vpack.c.b16 %v3682, %v3680
        %v3819 = vpack.c.b16 %v3683, %v3681
        %v3820 = vpack.c.b16 %v3686, %v3684
        %v3821 = vpack.c.b16 %v3687, %v3685
        %v3822 = vpack.c.b16 %v3690, %v3688
        %v3823 = vpack.c.b16 %v3691, %v3689
        %v3824 = vpack.c.b16 %v3694, %v3692
        %v3825 = vpack.c.b16 %v3695, %v3693
        %v3826 = vpack.c.b16 %v3698, %v3696
        %v3827 = vpack.c.b16 %v3699, %v3697
        %3956 = vmatprep.subr.bf16.mxu0 %v3701
        %3957 = vmatpush1.bf16.msra.mxu0 %v3700
        %3958 = vmatprep.subr.bf16.mxu0 %v3703
        %3959 = vmatpush1.bf16.msra.mxu0 %v3702
        %3960 = vmatprep.subr.bf16.mxu0 %v3705
        %3961 = vmatpush1.bf16.msra.mxu0 %v3704
        %3962 = vmatprep.subr.bf16.mxu0 %v3707
        %3963 = vmatpush1.bf16.msra.mxu0 %v3706
        %3964 = vmatprep.subr.bf16.mxu0 %v3709
        %3965 = vmatpush1.bf16.msra.mxu0 %v3708
        %3966 = vmatprep.subr.bf16.mxu0 %v3711
        %3967 = vmatpush1.bf16.msra.mxu0 %v3710
        %3968 = vmatprep.subr.bf16.mxu0 %v3713
        %3969 = vmatpush1.bf16.msra.mxu0 %v3712
        %3970 = vmatprep.subr.bf16.mxu0 %v3715
        %3971 = vmatpush1.bf16.msra.mxu0 %v3714
        %3972 = vmatprep.subr.bf16.mxu0 %v3717
        %3973 = vmatpush1.bf16.msra.mxu0 %v3716
        %3974 = vmatprep.subr.bf16.mxu0 %v3719
        %3975 = vmatpush1.bf16.msra.mxu0 %v3718
        %3976 = vmatprep.subr.bf16.mxu0 %v3721
        %3977 = vmatpush1.bf16.msra.mxu0 %v3720
        %3978 = vmatprep.subr.bf16.mxu0 %v3723
        %3979 = vmatpush1.bf16.msra.mxu0 %v3722
        %3980 = vmatprep.subr.bf16.mxu0 %v3725
        %3981 = vmatpush1.bf16.msra.mxu0 %v3724
        %3982 = vmatprep.subr.bf16.mxu0 %v3727
        %3983 = vmatpush1.bf16.msra.mxu0 %v3726
        %3984 = vmatprep.subr.bf16.mxu0 %v3729
        %3985 = vmatpush1.bf16.msra.mxu0 %v3728
        %3986 = vmatprep.subr.bf16.mxu0 %v3731
        %3987 = vmatpush1.bf16.msra.mxu0 %v3730
        %3988 = vmatprep.mubr.bf16.mxu0 %v3173
        %3989 = vmatmul.mubr.bf16.gmra.mrb[0].mxu0 %v3172
        %v3990 = vpop.f32.mrb[0].mxu0
        %v3991 = vadd.f32 0.0, %v3990
        %v3992 = vpop.f32.mrb[0].mxu0
        %v3993 = vadd.f32 0.0, %v3992
        %v3994 = vpop.f32.mrb[0].mxu0
        %v3995 = vadd.f32 0.0, %v3994
        %v3996 = vpop.f32.mrb[0].mxu0
        %v3997 = vadd.f32 0.0, %v3996
        %3998 = vmatprep.mubr.bf16.mxu0 %v3181
        %3999 = vmatmul.mubr.bf16.gmra.mrb[0].mxu0 %v3180
        %v4000 = vpop.f32.mrb[0].mxu0
        %v4001 = vadd.f32 0.0, %v4000
        %v4002 = vpop.f32.mrb[0].mxu0
        %v4003 = vadd.f32 0.0, %v4002
        %v4004 = vpop.f32.mrb[0].mxu0
        %v4005 = vadd.f32 0.0, %v4004
        %v4006 = vpop.f32.mrb[0].mxu0
        %v4007 = vadd.f32 0.0, %v4006
        %4008 = vdwg.mxu0
        %4009 = vmatprep.subr.bf16.mxu0 %v3733
        %4010 = vmatpush1.bf16.msra.mxu0 %v3732
        %4011 = vmatprep.subr.bf16.mxu0 %v3735
        %4012 = vmatpush1.bf16.msra.mxu0 %v3734
        %4013 = vmatprep.subr.bf16.mxu0 %v3737
        %4014 = vmatpush1.bf16.msra.mxu0 %v3736
        %4015 = vmatprep.subr.bf16.mxu0 %v3739
        %4016 = vmatpush1.bf16.msra.mxu0 %v3738
        %4017 = vmatprep.subr.bf16.mxu0 %v3741
        %4018 = vmatpush1.bf16.msra.mxu0 %v3740
        %4019 = vmatprep.subr.bf16.mxu0 %v3743
        %4020 = vmatpush1.bf16.msra.mxu0 %v3742
        %4021 = vmatprep.subr.bf16.mxu0 %v3745
        %4022 = vmatpush1.bf16.msra.mxu0 %v3744
        %4023 = vmatprep.subr.bf16.mxu0 %v3747
        %4024 = vmatpush1.bf16.msra.mxu0 %v3746
        %4025 = vmatprep.subr.bf16.mxu0 %v3749
        %4026 = vmatpush1.bf16.msra.mxu0 %v3748
        %4027 = vmatprep.subr.bf16.mxu0 %v3751
        %4028 = vmatpush1.bf16.msra.mxu0 %v3750
        %4029 = vmatprep.subr.bf16.mxu0 %v3753
        %4030 = vmatpush1.bf16.msra.mxu0 %v3752
        %4031 = vmatprep.subr.bf16.mxu0 %v3755
        %4032 = vmatpush1.bf16.msra.mxu0 %v3754
        %4033 = vmatprep.subr.bf16.mxu0 %v3757
        %4034 = vmatpush1.bf16.msra.mxu0 %v3756
        %4035 = vmatprep.subr.bf16.mxu0 %v3759
        %4036 = vmatpush1.bf16.msra.mxu0 %v3758
        %4037 = vmatprep.subr.bf16.mxu0 %v3761
        %4038 = vmatpush1.bf16.msra.mxu0 %v3760
        %4039 = vmatprep.subr.bf16.mxu0 %v3763
        %4040 = vmatpush1.bf16.msra.mxu0 %v3762
        %4041 = vmatprep.mubr.bf16.mxu0 %v3175
        %4042 = vmatmul.mubr.bf16.gmra.mrb[0].mxu0 %v3174
        %v4043 = vpop.f32.mrb[0].mxu0
        %v4044 = vadd.f32 %v3991, %v4043
        %v4045 = vpop.f32.mrb[0].mxu0
        %v4046 = vadd.f32 %v3993, %v4045
        %v4047 = vpop.f32.mrb[0].mxu0
        %v4048 = vadd.f32 %v3995, %v4047
        %v4049 = vpop.f32.mrb[0].mxu0
        %v4050 = vadd.f32 %v3997, %v4049
        %4051 = vmatprep.mubr.bf16.mxu0 %v3183
        %4052 = vmatmul.mubr.bf16.gmra.mrb[0].mxu0 %v3182
        %v4053 = vpop.f32.mrb[0].mxu0
        %v4054 = vadd.f32 %v4001, %v4053
        %v4055 = vpop.f32.mrb[0].mxu0
        %v4056 = vadd.f32 %v4003, %v4055
        %v4057 = vpop.f32.mrb[0].mxu0
        %v4058 = vadd.f32 %v4005, %v4057
        %v4059 = vpop.f32.mrb[0].mxu0
        %v4060 = vadd.f32 %v4007, %v4059
        %4061 = vdwg.mxu0
        %4062 = vmatprep.subr.bf16.mxu0 %v3765
        %4063 = vmatpush1.bf16.msra.mxu0 %v3764
        %4064 = vmatprep.subr.bf16.mxu0 %v3767
        %4065 = vmatpush1.bf16.msra.mxu0 %v3766
        %4066 = vmatprep.subr.bf16.mxu0 %v3769
        %4067 = vmatpush1.bf16.msra.mxu0 %v3768
        %4068 = vmatprep.subr.bf16.mxu0 %v3771
        %4069 = vmatpush1.bf16.msra.mxu0 %v3770
        %4070 = vmatprep.subr.bf16.mxu0 %v3773
        %4071 = vmatpush1.bf16.msra.mxu0 %v3772
        %4072 = vmatprep.subr.bf16.mxu0 %v3775
        %4073 = vmatpush1.bf16.msra.mxu0 %v3774
        %4074 = vmatprep.subr.bf16.mxu0 %v3777
        %4075 = vmatpush1.bf16.msra.mxu0 %v3776
        %4076 = vmatprep.subr.bf16.mxu0 %v3779
        %4077 = vmatpush1.bf16.msra.mxu0 %v3778
        %4078 = vmatprep.subr.bf16.mxu0 %v3781
        %4079 = vmatpush1.bf16.msra.mxu0 %v3780
        %4080 = vmatprep.subr.bf16.mxu0 %v3783
        %4081 = vmatpush1.bf16.msra.mxu0 %v3782
        %4082 = vmatprep.subr.bf16.mxu0 %v3785
        %4083 = vmatpush1.bf16.msra.mxu0 %v3784
        %4084 = vmatprep.subr.bf16.mxu0 %v3787
        %4085 = vmatpush1.bf16.msra.mxu0 %v3786
        %4086 = vmatprep.subr.bf16.mxu0 %v3789
        %4087 = vmatpush1.bf16.msra.mxu0 %v3788
        %4088 = vmatprep.subr.bf16.mxu0 %v3791
        %4089 = vmatpush1.bf16.msra.mxu0 %v3790
        %4090 = vmatprep.subr.bf16.mxu0 %v3793
        %4091 = vmatpush1.bf16.msra.mxu0 %v3792
        %4092 = vmatprep.subr.bf16.mxu0 %v3795
        %4093 = vmatpush1.bf16.msra.mxu0 %v3794
        %4094 = vmatprep.mubr.bf16.mxu0 %v3177
        %4095 = vmatmul.mubr.bf16.gmra.mrb[0].mxu0 %v3176
        %v4096 = vpop.f32.mrb[0].mxu0
        %v4097 = vadd.f32 %v4044, %v4096
        %v4098 = vpop.f32.mrb[0].mxu0
        %v4099 = vadd.f32 %v4046, %v4098
        %v4100 = vpop.f32.mrb[0].mxu0
        %v4101 = vadd.f32 %v4048, %v4100
        %v4102 = vpop.f32.mrb[0].mxu0
        %v4103 = vadd.f32 %v4050, %v4102
        %4104 = vmatprep.mubr.bf16.mxu0 %v3185
        %4105 = vmatmul.mubr.bf16.gmra.mrb[0].mxu0 %v3184
        %v4106 = vpop.f32.mrb[0].mxu0
        %v4107 = vadd.f32 %v4054, %v4106
        %v4108 = vpop.f32.mrb[0].mxu0
        %v4109 = vadd.f32 %v4056, %v4108
        %v4110 = vpop.f32.mrb[0].mxu0
        %v4111 = vadd.f32 %v4058, %v4110
        %v4112 = vpop.f32.mrb[0].mxu0
        %v4113 = vadd.f32 %v4060, %v4112
        %4114 = vdwg.mxu0
        %4115 = vmatprep.subr.bf16.mxu0 %v3797
        %4116 = vmatpush1.bf16.msra.mxu0 %v3796
        %4117 = vmatprep.subr.bf16.mxu0 %v3799
        %4118 = vmatpush1.bf16.msra.mxu0 %v3798
        %4119 = vmatprep.subr.bf16.mxu0 %v3801
        %4120 = vmatpush1.bf16.msra.mxu0 %v3800
        %4121 = vmatprep.subr.bf16.mxu0 %v3803
        %4122 = vmatpush1.bf16.msra.mxu0 %v3802
        %4123 = vmatprep.subr.bf16.mxu0 %v3805
        %4124 = vmatpush1.bf16.msra.mxu0 %v3804
        %4125 = vmatprep.subr.bf16.mxu0 %v3807
        %4126 = vmatpush1.bf16.msra.mxu0 %v3806
        %4127 = vmatprep.subr.bf16.mxu0 %v3809
        %4128 = vmatpush1.bf16.msra.mxu0 %v3808
        %4129 = vmatprep.subr.bf16.mxu0 %v3811
        %4130 = vmatpush1.bf16.msra.mxu0 %v3810
        %4131 = vmatprep.subr.bf16.mxu0 %v3813
        %4132 = vmatpush1.bf16.msra.mxu0 %v3812
        %4133 = vmatprep.subr.bf16.mxu0 %v3815
        %4134 = vmatpush1.bf16.msra.mxu0 %v3814
        %4135 = vmatprep.subr.bf16.mxu0 %v3817
        %4136 = vmatpush1.bf16.msra.mxu0 %v3816
        %4137 = vmatprep.subr.bf16.mxu0 %v3819
        %4138 = vmatpush1.bf16.msra.mxu0 %v3818
        %4139 = vmatprep.subr.bf16.mxu0 %v3821
        %4140 = vmatpush1.bf16.msra.mxu0 %v3820
        %4141 = vmatprep.subr.bf16.mxu0 %v3823
        %4142 = vmatpush1.bf16.msra.mxu0 %v3822
        %4143 = vmatprep.subr.bf16.mxu0 %v3825
        %4144 = vmatpush1.bf16.msra.mxu0 %v3824
        %4145 = vmatprep.subr.bf16.mxu0 %v3827
        %4146 = vmatpush1.bf16.msra.mxu0 %v3826
        %4147 = vmatprep.mubr.bf16.mxu0 %v3179
        %4148 = vmatmul.mubr.bf16.gmra.mrb[0].mxu0 %v3178
        %v4149 = vpop.f32.mrb[0].mxu0
        %v4150 = vadd.f32 %v4097, %v4149
        %v4151 = vpop.f32.mrb[0].mxu0
        %v4152 = vadd.f32 %v4099, %v4151
        %v4153 = vpop.f32.mrb[0].mxu0
        %v4154 = vadd.f32 %v4101, %v4153
        %v4155 = vpop.f32.mrb[0].mxu0
        %v4156 = vadd.f32 %v4103, %v4155
        %4157 = vmatprep.mubr.bf16.mxu0 %v3187
        %4158 = vmatmul.mubr.bf16.gmra.mrb[0].mxu0 %v3186
        %v4159 = vpop.f32.mrb[0].mxu0
        %v4160 = vadd.f32 %v4107, %v4159
        %v4161 = vpop.f32.mrb[0].mxu0
        %v4162 = vadd.f32 %v4109, %v4161
        %v4163 = vpop.f32.mrb[0].mxu0
        %v4164 = vadd.f32 %v4111, %v4163
        %v4165 = vpop.f32.mrb[0].mxu0
        %v4166 = vadd.f32 %v4113, %v4165
        %4167 = vdwg.mxu0
        %4168 = vst [vmem:[%s217] sm:$0xff] %v4150
        %4169 = vst [vmem:[%s217 + $0x8] sm:$0xff] %v4152
        %4170 = vst [vmem:[%s217 + $0x10] sm:$0xff] %v4154
        %4171 = vst [vmem:[%s217 + $0x18] sm:$0xff] %v4156
        %4172 = vst [vmem:[%s217 + $0x20] sm:$0xff] %v4160
        %4173 = vst [vmem:[%s217 + $0x28] sm:$0xff] %v4162
        %4174 = vst [vmem:[%s217 + $0x30] sm:$0xff] %v4164
        %4175 = vst [vmem:[%s217 + $0x38] sm:$0xff] %v4166
        %s4176 = sand.u32 %s137, 1
        %s4177 = scalar_lea.sflag [#allocation5], %s4176
        %s4178 = sand.u32 %s137, 1
        %s4179 = smul.addr %s4178, 64
        %s4180 = scalar_lea.vmem [#allocation4], %s4179
        // Predicated region
        $region41: #{tpu_custom_call.1} parent=39 // pred_check
          %p4181 = pneg %p147
        $region42: #{tpu_custom_call.1} parent=39 // pred_check_branch
          %4183 = sbr.rel (%p4181) target = $region44
        $region43: #{tpu_custom_call.1} parent=39 // pred_region
          %s4185 = ssub.s32 1024, 1024
          %4186 = vsyncadd %s4177, %s4185
          %s4187 = smul.addr %s19, 8
          %s4188 = smul.addr %s4187, 128
          %s4189 = scalar_lea.hbm %s5, %s4188
          %s4190 = sshll.u32 %s4180, 4
          %s4191 = int_to_ptr.vmem [resolvable:$true] %s4190
          %4196 = dma.vmem_to_hbm [thread:$0]  %s4191, 1024, %s4189, %s4177, 256, 256, 16
        $region44: #{tpu_custom_call.1} parent=39 // pred_fallthru
          _
      $region40: #{tpu_custom_call.1} parent=5 // pred_fallthru
        _
      %p4197 = scmp.le.s32.totalorder 2, %s14
      // Predicated region
      $region45: #{tpu_custom_call.1} parent=5 // pred_check
        %p4198 = pneg %p4197
      $region46: #{tpu_custom_call.1} parent=5 // pred_check_branch
        %4200 = sbr.rel (%p4198) target = $region48
      $region47: #{tpu_custom_call.1} parent=5 // pred_region
        %s4201 = ssub.s32 %s14, 2
        // Predicated region
        $region49: #{tpu_custom_call.1} parent=47 // pred_check
          %p4202 = pneg %p153
        $region50: #{tpu_custom_call.1} parent=47 // pred_check_branch
          %4204 = sbr.rel (%p4202) target = $region52
        $region51: #{tpu_custom_call.1} parent=47 // pred_region
          %s4205 = sand.u32 %s138, 1
          %s4206 = scalar_lea.sflag [#allocation5], %s4205
          %s4207 = sand.u32 %s138, 1
          %s4208 = smul.addr %s4207, 64
          %s4209 = scalar_lea.vmem [#allocation4], %s4208
          %4210 = dma.done %s4206, 1024
        $region52: #{tpu_custom_call.1} parent=47 // pred_fallthru
          _
      $region48: #{tpu_custom_call.1} parent=5 // pred_fallthru
        _
    $region6: #{tpu_custom_call.1} parent=1 // loop_footer
      %s18 = sadd.s32 1, %s14
    $region7: #{tpu_custom_call.1} parent=1 // loop_footer_branch
      %13 = sbr.rel target = $region3
    $region8: #{tpu_custom_call.1} parent=1 // loop_exit
      _
    %4211 = vsyncpa [#allocation5], 1
    %s4212 = scalar_lea.sflag [#allocation5], 1
    %4213 = vsyncpa %s4212, 1

</llo_original>
